<compile_context>
chip_gen: v7x
topology: tpu7x:2x2x1
jax: 0.10.0
libtpu: 0.0.40
codegen_flags: <defaults>
</compile_context>

<pallas_src>
import numpy as np
import jax
import jax.numpy as jnp
from jax.experimental import pallas as pl
from jax.experimental.pallas import tpu as pltpu

BLOCK_SIZE = 64
N_EMBD = 64
N_EMBD2 = 128
LANE = 128

# The original module derives VOCAB_SIZE from a text corpus; use a small
# deterministic in-script text instead of reading a file.
text = "the quick brown fox jumps over the lazy dog"
chars = sorted(list(set(text)))
VOCAB_SIZE = len(chars)


# --------------------------- Pallas kernel ---------------------------------

def mlp_lm_kernel(epad_ref, w1_ref, b1_ref, w2_ref, b2_ref, o_ref):
    """Fused causal-window MLP for one batch element.

    epad_ref : (T + BLOCK_SIZE - 1, N_EMBD) bf16   fill-padded embedded sequence
    w1_ref   : (BLOCK_SIZE*N_EMBD, N_EMBD2) bf16   resident
    b1_ref   : (1, N_EMBD2) f32
    w2_ref   : (N_EMBD2, Vp) bf16                  resident (vocab lane-padded)
    b2_ref   : (1, Vp) f32
    o_ref    : (T, Vp) f32
    """
    T = o_ref.shape[0]
    acc = jnp.zeros((T, N_EMBD2), jnp.float32)
    # x[t, k*N_EMBD:(k+1)*N_EMBD] == epad[t + BLOCK_SIZE-1-k]; instead of
    # materialising the 64x-duplicated x, accumulate the shifted windows:
    #   h = sum_k epad[BLOCK_SIZE-1-k : BLOCK_SIZE-1-k + T] @ W1_k
    for k in range(BLOCK_SIZE):                       # static unroll, static slices
        xk = epad_ref[pl.ds(BLOCK_SIZE - 1 - k, T), :]          # (T, N_EMBD) bf16
        wk = w1_ref[pl.ds(k * N_EMBD, N_EMBD), :]               # (N_EMBD, N_EMBD2)
        acc = acc + jnp.dot(xk, wk, preferred_element_type=jnp.float32)
    h = jnp.tanh(acc + b1_ref[...])
    logits = jnp.dot(h.astype(jnp.bfloat16), w2_ref[...],
                     preferred_element_type=jnp.float32) + b2_ref[...]
    o_ref[...] = logits.astype(o_ref.dtype)


def mlp_lm_forward(idx, params):
    """Full forward: idx (B, T) int32 -> logits (B, T, VOCAB_SIZE) f32."""
    wte, w1, b1, w2, b2 = params
    B, T = idx.shape
    D = BLOCK_SIZE * N_EMBD
    H = N_EMBD2
    V = w2.shape[1]

    # Lane-pad the vocab/output dim to a full 128-lane vreg width: unmasked
    # stores on the output block + dense MXU lanes on the second matmul.
    Vp = LANE * pl.cdiv(V, LANE)                               # 27 -> 128
    w2p = jnp.pad(w2, ((0, 0), (0, Vp - V))).astype(jnp.bfloat16)
    b2p = jnp.pad(b2, ((0, 0), (0, Vp - V)))
    w1b = w1.astype(jnp.bfloat16)

    # TODO(synk): the per-token embedding gather (wte[idx], 128 B/token) stays
    # in XLA; pulling it into the kernel would need per-row DMA / one-hot matmul
    # for marginal gain at this table size.
    emb = wte[idx]                                             # (B, T, N_EMBD) f32
    fill = jnp.broadcast_to(wte[VOCAB_SIZE][None, None, :],
                            (B, BLOCK_SIZE - 1, N_EMBD))
    epad = jnp.concatenate([fill, emb], axis=1).astype(jnp.bfloat16)  # (B, T+63, 64)
    Tw = T + BLOCK_SIZE - 1

    # VMEM/step: W1 1 MiB (x2 buffers) + W2/biases ~64 KiB + epad ~(T+63)*128 B
    # + out T*512 B  ->  far below every generation's default scoped limit.
    out = pl.pallas_call(
        mlp_lm_kernel,
        out_shape=jax.ShapeDtypeStruct((B, T, Vp), jnp.float32),
        grid_spec=pltpu.PrefetchScalarGridSpec(
            num_scalar_prefetch=0,
            grid=(B,),
            in_specs=[
                pl.BlockSpec((None, Tw, N_EMBD), lambda b: (b, 0, 0)),  # epad (streamed)
                pl.BlockSpec((D, H), lambda b: (0, 0)),                 # W1  (resident)
                pl.BlockSpec((1, H), lambda b: (0, 0)),                 # b1  (resident)
                pl.BlockSpec((H, Vp), lambda b: (0, 0)),                # W2  (resident)
                pl.BlockSpec((1, Vp), lambda b: (0, 0)),                # b2  (resident)
            ],
            out_specs=pl.BlockSpec((None, T, Vp), lambda b: (b, 0, 0)),
        ),
        compiler_params=pltpu.CompilerParams(
            dimension_semantics=("parallel",)),   # batch elems -> both v7x TCs
    )(epad, w1b, b1, w2p, b2p)

    return out[:, :, :V]
    # TODO(synk): optional cross_entropy loss (targets != None) not implemented.


# --------------------------- pure-JAX reference glue ------------------------

def build_features(idx, wte):
    """Reference-only reproduction of the roll/fill/embed/concat loop.

    idx: (B, T) int32, wte: (VOCAB_SIZE+1, N_EMBD) -> (B, T, BLOCK_SIZE*N_EMBD)
    """
    B, T = idx.shape
    t = jnp.arange(T)[:, None]              # (T, 1)
    k = jnp.arange(BLOCK_SIZE)[None, :]     # (1, K)
    src = t - k                             # (T, K) source position for shift k
    valid = src >= 0
    src_clipped = jnp.clip(src, 0, T - 1)
    gidx = jnp.where(valid[None, :, :], idx[:, src_clipped], VOCAB_SIZE)  # (B,T,K)
    emb = wte[gidx]                         # (B, T, K, N_EMBD)
    return emb.reshape(B, T, BLOCK_SIZE * N_EMBD)


def init_params(key):
    k_wte, k_w1, k_b1, k_w2, k_b2 = jax.random.split(key, 5)
    D = BLOCK_SIZE * N_EMBD
    # nn.Embedding default: N(0, 1)
    wte = jax.random.normal(k_wte, (VOCAB_SIZE + 1, N_EMBD), jnp.float32)
    # nn.Linear default: U(-1/sqrt(fan_in), 1/sqrt(fan_in)); stored as (in, out)
    lim1 = 1.0 / np.sqrt(D)
    w1 = jax.random.uniform(k_w1, (D, N_EMBD2), jnp.float32, -lim1, lim1)
    b1 = jax.random.uniform(k_b1, (1, N_EMBD2), jnp.float32, -lim1, lim1)
    lim2 = 1.0 / np.sqrt(N_EMBD2)
    w2 = jax.random.uniform(k_w2, (N_EMBD2, VOCAB_SIZE), jnp.float32, -lim2, lim2)
    b2 = jax.random.uniform(k_b2, (1, VOCAB_SIZE), jnp.float32, -lim2, lim2)
    return wte, w1, b1, w2, b2


# --------------------------- main -------------------------------------------

if __name__ == "__main__":
    key = jax.random.PRNGKey(0)
    k_params, k_idx = jax.random.split(key, 2)

    B, T = 2, 8  # small batch / sequence
    idx = jax.random.randint(k_idx, (B, T), 0, VOCAB_SIZE, dtype=jnp.int32)
    params = init_params(k_params)

    logits = jax.jit(mlp_lm_forward)(idx, params)
    jax.block_until_ready(logits)
    assert logits.shape == (B, T, VOCAB_SIZE)

    wte, w1, b1, w2, b2 = params
    x = build_features(idx, wte).reshape(B * T, -1)

    # Reference 1: same bf16 operand precision / f32 accumulation (plain jnp).
    xb = x.astype(jnp.bfloat16)
    w1b = w1.astype(jnp.bfloat16)
    w2b = w2.astype(jnp.bfloat16)
    h = jnp.tanh(jnp.dot(xb, w1b, preferred_element_type=jnp.float32) + b1)
    ref_bf16 = (jnp.dot(h.astype(jnp.bfloat16), w2b,
                        preferred_element_type=jnp.float32) + b2
                ).reshape(B, T, VOCAB_SIZE)
    assert jnp.allclose(logits, ref_bf16, atol=1e-3, rtol=1e-3), "kernel mismatch"

    # Reference 2: original full-f32 math -- check at bf16-level tolerance.
    ref_f32 = (jnp.tanh(x @ w1 + b1) @ w2 + b2).reshape(B, T, VOCAB_SIZE)
    assert jnp.allclose(logits, ref_f32, atol=5e-2, rtol=5e-2), "semantics drift"

    print("KERNEL_OK")
</pallas_src>

<mosaic_0001>
module attributes {stable_mosaic.version = 11 : i64} {
  func.func @mlp_lm_kernel(%arg0: i32, %arg1: memref<1x71x64xbf16, #tpu.memory_space<vmem>>, %arg2: memref<4096x128xbf16, #tpu.memory_space<vmem>>, %arg3: memref<1x128xf32, #tpu.memory_space<vmem>>, %arg4: memref<128x128xbf16, #tpu.memory_space<vmem>>, %arg5: memref<1x128xf32, #tpu.memory_space<vmem>>, %arg6: memref<1x8x128xf32, #tpu.memory_space<vmem>>) attributes {dimension_semantics = [#tpu.dimension_semantics<parallel>], iteration_bounds = array<i64: 2>, scalar_prefetch = 0 : i64, scratch_operands = 0 : i64, tpu.core_type = #tpu.core_type<tc>, window_params = [{transform_indices = @transform_0, window_bounds = array<i64: 1, 71, 64>}, {pipeline_mode = #tpu.pipeline_mode<synchronous>, transform_indices = @transform_1, window_bounds = array<i64: 4096, 128>}, {pipeline_mode = #tpu.pipeline_mode<synchronous>, transform_indices = @transform_2, window_bounds = array<i64: 1, 128>}, {pipeline_mode = #tpu.pipeline_mode<synchronous>, transform_indices = @transform_3, window_bounds = array<i64: 128, 128>}, {pipeline_mode = #tpu.pipeline_mode<synchronous>, transform_indices = @transform_4, window_bounds = array<i64: 1, 128>}, {transform_indices = @transform_5, window_bounds = array<i64: 1, 8, 128>}]} {
    %cst = arith.constant 0.000000e+00 : f32
    %0 = vector.broadcast %cst : f32 to vector<8x128xf32>
    %c0 = arith.constant 0 : index
    %c63 = arith.constant 63 : index
    %c0_0 = arith.constant 0 : index
    %1 = vector.load %arg1[%c0, %c63, %c0_0] : memref<1x71x64xbf16, #tpu.memory_space<vmem>>, vector<1x8x64xbf16>
    %2 = vector.shape_cast %1 : vector<1x8x64xbf16> to vector<8x64xbf16>
    %c0_1 = arith.constant 0 : index
    %c0_2 = arith.constant 0 : index
    %3 = vector.load %arg2[%c0_1, %c0_2] : memref<4096x128xbf16, #tpu.memory_space<vmem>>, vector<64x128xbf16>
    %cst_3 = arith.constant dense<0.000000e+00> : vector<8x128xf32>
    %4 = tpu.matmul %2, %3, %cst_3 {dimension_numbers = #tpu.dot_dimension_numbers<[1], [0], [0], [1], [0, 0, 1, 1], [], []>} : vector<8x64xbf16>, vector<64x128xbf16>, vector<8x128xf32> -> vector<8x128xf32>
    %5 = arith.addf %0, %4 : vector<8x128xf32>
    %c0_4 = arith.constant 0 : index
    %c62 = arith.constant 62 : index
    %c0_5 = arith.constant 0 : index
    %6 = vector.load %arg1[%c0_4, %c62, %c0_5] : memref<1x71x64xbf16, #tpu.memory_space<vmem>>, vector<1x8x64xbf16>
    %7 = vector.shape_cast %6 : vector<1x8x64xbf16> to vector<8x64xbf16>
    %c64 = arith.constant 64 : index
    %c0_6 = arith.constant 0 : index
    %8 = vector.load %arg2[%c64, %c0_6] : memref<4096x128xbf16, #tpu.memory_space<vmem>>, vector<64x128xbf16>
    %cst_7 = arith.constant dense<0.000000e+00> : vector<8x128xf32>
    %9 = tpu.matmul %7, %8, %cst_7 {dimension_numbers = #tpu.dot_dimension_numbers<[1], [0], [0], [1], [0, 0, 1, 1], [], []>} : vector<8x64xbf16>, vector<64x128xbf16>, vector<8x128xf32> -> vector<8x128xf32>
    %10 = arith.addf %5, %9 : vector<8x128xf32>
    %c0_8 = arith.constant 0 : index
    %c61 = arith.constant 61 : index
    %c0_9 = arith.constant 0 : index
    %11 = vector.load %arg1[%c0_8, %c61, %c0_9] : memref<1x71x64xbf16, #tpu.memory_space<vmem>>, vector<1x8x64xbf16>
    %12 = vector.shape_cast %11 : vector<1x8x64xbf16> to vector<8x64xbf16>
    %c128 = arith.constant 128 : index
    %c0_10 = arith.constant 0 : index
    %13 = vector.load %arg2[%c128, %c0_10] : memref<4096x128xbf16, #tpu.memory_space<vmem>>, vector<64x128xbf16>
    %cst_11 = arith.constant dense<0.000000e+00> : vector<8x128xf32>
    %14 = tpu.matmul %12, %13, %cst_11 {dimension_numbers = #tpu.dot_dimension_numbers<[1], [0], [0], [1], [0, 0, 1, 1], [], []>} : vector<8x64xbf16>, vector<64x128xbf16>, vector<8x128xf32> -> vector<8x128xf32>
    %15 = arith.addf %10, %14 : vector<8x128xf32>
    %c0_12 = arith.constant 0 : index
    %c60 = arith.constant 60 : index
    %c0_13 = arith.constant 0 : index
    %16 = vector.load %arg1[%c0_12, %c60, %c0_13] : memref<1x71x64xbf16, #tpu.memory_space<vmem>>, vector<1x8x64xbf16>
    %17 = vector.shape_cast %16 : vector<1x8x64xbf16> to vector<8x64xbf16>
    %c192 = arith.constant 192 : index
    %c0_14 = arith.constant 0 : index
    %18 = vector.load %arg2[%c192, %c0_14] : memref<4096x128xbf16, #tpu.memory_space<vmem>>, vector<64x128xbf16>
    %cst_15 = arith.constant dense<0.000000e+00> : vector<8x128xf32>
    %19 = tpu.matmul %17, %18, %cst_15 {dimension_numbers = #tpu.dot_dimension_numbers<[1], [0], [0], [1], [0, 0, 1, 1], [], []>} : vector<8x64xbf16>, vector<64x128xbf16>, vector<8x128xf32> -> vector<8x128xf32>
    %20 = arith.addf %15, %19 : vector<8x128xf32>
    %c0_16 = arith.constant 0 : index
    %c59 = arith.constant 59 : index
    %c0_17 = arith.constant 0 : index
    %21 = vector.load %arg1[%c0_16, %c59, %c0_17] : memref<1x71x64xbf16, #tpu.memory_space<vmem>>, vector<1x8x64xbf16>
    %22 = vector.shape_cast %21 : vector<1x8x64xbf16> to vector<8x64xbf16>
    %c256 = arith.constant 256 : index
    %c0_18 = arith.constant 0 : index
    %23 = vector.load %arg2[%c256, %c0_18] : memref<4096x128xbf16, #tpu.memory_space<vmem>>, vector<64x128xbf16>
    %cst_19 = arith.constant dense<0.000000e+00> : vector<8x128xf32>
    %24 = tpu.matmul %22, %23, %cst_19 {dimension_numbers = #tpu.dot_dimension_numbers<[1], [0], [0], [1], [0, 0, 1, 1], [], []>} : vector<8x64xbf16>, vector<64x128xbf16>, vector<8x128xf32> -> vector<8x128xf32>
    %25 = arith.addf %20, %24 : vector<8x128xf32>
    %c0_20 = arith.constant 0 : index
    %c58 = arith.constant 58 : index
    %c0_21 = arith.constant 0 : index
    %26 = vector.load %arg1[%c0_20, %c58, %c0_21] : memref<1x71x64xbf16, #tpu.memory_space<vmem>>, vector<1x8x64xbf16>
    %27 = vector.shape_cast %26 : vector<1x8x64xbf16> to vector<8x64xbf16>
    %c320 = arith.constant 320 : index
    %c0_22 = arith.constant 0 : index
    %28 = vector.load %arg2[%c320, %c0_22] : memref<4096x128xbf16, #tpu.memory_space<vmem>>, vector<64x128xbf16>
    %cst_23 = arith.constant dense<0.000000e+00> : vector<8x128xf32>
    %29 = tpu.matmul %27, %28, %cst_23 {dimension_numbers = #tpu.dot_dimension_numbers<[1], [0], [0], [1], [0, 0, 1, 1], [], []>} : vector<8x64xbf16>, vector<64x128xbf16>, vector<8x128xf32> -> vector<8x128xf32>
    %30 = arith.addf %25, %29 : vector<8x128xf32>
    %c0_24 = arith.constant 0 : index
    %c57 = arith.constant 57 : index
    %c0_25 = arith.constant 0 : index
    %31 = vector.load %arg1[%c0_24, %c57, %c0_25] : memref<1x71x64xbf16, #tpu.memory_space<vmem>>, vector<1x8x64xbf16>
    %32 = vector.shape_cast %31 : vector<1x8x64xbf16> to vector<8x64xbf16>
    %c384 = arith.constant 384 : index
    %c0_26 = arith.constant 0 : index
    %33 = vector.load %arg2[%c384, %c0_26] : memref<4096x128xbf16, #tpu.memory_space<vmem>>, vector<64x128xbf16>
    %cst_27 = arith.constant dense<0.000000e+00> : vector<8x128xf32>
    %34 = tpu.matmul %32, %33, %cst_27 {dimension_numbers = #tpu.dot_dimension_numbers<[1], [0], [0], [1], [0, 0, 1, 1], [], []>} : vector<8x64xbf16>, vector<64x128xbf16>, vector<8x128xf32> -> vector<8x128xf32>
    %35 = arith.addf %30, %34 : vector<8x128xf32>
    %c0_28 = arith.constant 0 : index
    %c56 = arith.constant 56 : index
    %c0_29 = arith.constant 0 : index
    %36 = vector.load %arg1[%c0_28, %c56, %c0_29] : memref<1x71x64xbf16, #tpu.memory_space<vmem>>, vector<1x8x64xbf16>
    %37 = vector.shape_cast %36 : vector<1x8x64xbf16> to vector<8x64xbf16>
    %c448 = arith.constant 448 : index
    %c0_30 = arith.constant 0 : index
    %38 = vector.load %arg2[%c448, %c0_30] : memref<4096x128xbf16, #tpu.memory_space<vmem>>, vector<64x128xbf16>
    %cst_31 = arith.constant dense<0.000000e+00> : vector<8x128xf32>
    %39 = tpu.matmul %37, %38, %cst_31 {dimension_numbers = #tpu.dot_dimension_numbers<[1], [0], [0], [1], [0, 0, 1, 1], [], []>} : vector<8x64xbf16>, vector<64x128xbf16>, vector<8x128xf32> -> vector<8x128xf32>
    %40 = arith.addf %35, %39 : vector<8x128xf32>
    %c0_32 = arith.constant 0 : index
    %c55 = arith.constant 55 : index
    %c0_33 = arith.constant 0 : index
    %41 = vector.load %arg1[%c0_32, %c55, %c0_33] : memref<1x71x64xbf16, #tpu.memory_space<vmem>>, vector<1x8x64xbf16>
    %42 = vector.shape_cast %41 : vector<1x8x64xbf16> to vector<8x64xbf16>
    %c512 = arith.constant 512 : index
    %c0_34 = arith.constant 0 : index
    %43 = vector.load %arg2[%c512, %c0_34] : memref<4096x128xbf16, #tpu.memory_space<vmem>>, vector<64x128xbf16>
    %cst_35 = arith.constant dense<0.000000e+00> : vector<8x128xf32>
    %44 = tpu.matmul %42, %43, %cst_35 {dimension_numbers = #tpu.dot_dimension_numbers<[1], [0], [0], [1], [0, 0, 1, 1], [], []>} : vector<8x64xbf16>, vector<64x128xbf16>, vector<8x128xf32> -> vector<8x128xf32>
    %45 = arith.addf %40, %44 : vector<8x128xf32>
    %c0_36 = arith.constant 0 : index
    %c54 = arith.constant 54 : index
    %c0_37 = arith.constant 0 : index
    %46 = vector.load %arg1[%c0_36, %c54, %c0_37] : memref<1x71x64xbf16, #tpu.memory_space<vmem>>, vector<1x8x64xbf16>
    %47 = vector.shape_cast %46 : vector<1x8x64xbf16> to vector<8x64xbf16>
    %c576 = arith.constant 576 : index
    %c0_38 = arith.constant 0 : index
    %48 = vector.load %arg2[%c576, %c0_38] : memref<4096x128xbf16, #tpu.memory_space<vmem>>, vector<64x128xbf16>
    %cst_39 = arith.constant dense<0.000000e+00> : vector<8x128xf32>
    %49 = tpu.matmul %47, %48, %cst_39 {dimension_numbers = #tpu.dot_dimension_numbers<[1], [0], [0], [1], [0, 0, 1, 1], [], []>} : vector<8x64xbf16>, vector<64x128xbf16>, vector<8x128xf32> -> vector<8x128xf32>
    %50 = arith.addf %45, %49 : vector<8x128xf32>
    %c0_40 = arith.constant 0 : index
    %c53 = arith.constant 53 : index
    %c0_41 = arith.constant 0 : index
    %51 = vector.load %arg1[%c0_40, %c53, %c0_41] : memref<1x71x64xbf16, #tpu.memory_space<vmem>>, vector<1x8x64xbf16>
    %52 = vector.shape_cast %51 : vector<1x8x64xbf16> to vector<8x64xbf16>
    %c640 = arith.constant 640 : index
    %c0_42 = arith.constant 0 : index
    %53 = vector.load %arg2[%c640, %c0_42] : memref<4096x128xbf16, #tpu.memory_space<vmem>>, vector<64x128xbf16>
    %cst_43 = arith.constant dense<0.000000e+00> : vector<8x128xf32>
    %54 = tpu.matmul %52, %53, %cst_43 {dimension_numbers = #tpu.dot_dimension_numbers<[1], [0], [0], [1], [0, 0, 1, 1], [], []>} : vector<8x64xbf16>, vector<64x128xbf16>, vector<8x128xf32> -> vector<8x128xf32>
    %55 = arith.addf %50, %54 : vector<8x128xf32>
    %c0_44 = arith.constant 0 : index
    %c52 = arith.constant 52 : index
    %c0_45 = arith.constant 0 : index
    %56 = vector.load %arg1[%c0_44, %c52, %c0_45] : memref<1x71x64xbf16, #tpu.memory_space<vmem>>, vector<1x8x64xbf16>
    %57 = vector.shape_cast %56 : vector<1x8x64xbf16> to vector<8x64xbf16>
    %c704 = arith.constant 704 : index
    %c0_46 = arith.constant 0 : index
    %58 = vector.load %arg2[%c704, %c0_46] : memref<4096x128xbf16, #tpu.memory_space<vmem>>, vector<64x128xbf16>
    %cst_47 = arith.constant dense<0.000000e+00> : vector<8x128xf32>
    %59 = tpu.matmul %57, %58, %cst_47 {dimension_numbers = #tpu.dot_dimension_numbers<[1], [0], [0], [1], [0, 0, 1, 1], [], []>} : vector<8x64xbf16>, vector<64x128xbf16>, vector<8x128xf32> -> vector<8x128xf32>
    %60 = arith.addf %55, %59 : vector<8x128xf32>
    %c0_48 = arith.constant 0 : index
    %c51 = arith.constant 51 : index
    %c0_49 = arith.constant 0 : index
    %61 = vector.load %arg1[%c0_48, %c51, %c0_49] : memref<1x71x64xbf16, #tpu.memory_space<vmem>>, vector<1x8x64xbf16>
    %62 = vector.shape_cast %61 : vector<1x8x64xbf16> to vector<8x64xbf16>
    %c768 = arith.constant 768 : index
    %c0_50 = arith.constant 0 : index
    %63 = vector.load %arg2[%c768, %c0_50] : memref<4096x128xbf16, #tpu.memory_space<vmem>>, vector<64x128xbf16>
    %cst_51 = arith.constant dense<0.000000e+00> : vector<8x128xf32>
    %64 = tpu.matmul %62, %63, %cst_51 {dimension_numbers = #tpu.dot_dimension_numbers<[1], [0], [0], [1], [0, 0, 1, 1], [], []>} : vector<8x64xbf16>, vector<64x128xbf16>, vector<8x128xf32> -> vector<8x128xf32>
    %65 = arith.addf %60, %64 : vector<8x128xf32>
    %c0_52 = arith.constant 0 : index
    %c50 = arith.constant 50 : index
    %c0_53 = arith.constant 0 : index
    %66 = vector.load %arg1[%c0_52, %c50, %c0_53] : memref<1x71x64xbf16, #tpu.memory_space<vmem>>, vector<1x8x64xbf16>
    %67 = vector.shape_cast %66 : vector<1x8x64xbf16> to vector<8x64xbf16>
    %c832 = arith.constant 832 : index
    %c0_54 = arith.constant 0 : index
    %68 = vector.load %arg2[%c832, %c0_54] : memref<4096x128xbf16, #tpu.memory_space<vmem>>, vector<64x128xbf16>
    %cst_55 = arith.constant dense<0.000000e+00> : vector<8x128xf32>
    %69 = tpu.matmul %67, %68, %cst_55 {dimension_numbers = #tpu.dot_dimension_numbers<[1], [0], [0], [1], [0, 0, 1, 1], [], []>} : vector<8x64xbf16>, vector<64x128xbf16>, vector<8x128xf32> -> vector<8x128xf32>
    %70 = arith.addf %65, %69 : vector<8x128xf32>
    %c0_56 = arith.constant 0 : index
    %c49 = arith.constant 49 : index
    %c0_57 = arith.constant 0 : index
    %71 = vector.load %arg1[%c0_56, %c49, %c0_57] : memref<1x71x64xbf16, #tpu.memory_space<vmem>>, vector<1x8x64xbf16>
    %72 = vector.shape_cast %71 : vector<1x8x64xbf16> to vector<8x64xbf16>
    %c896 = arith.constant 896 : index
    %c0_58 = arith.constant 0 : index
    %73 = vector.load %arg2[%c896, %c0_58] : memref<4096x128xbf16, #tpu.memory_space<vmem>>, vector<64x128xbf16>
    %cst_59 = arith.constant dense<0.000000e+00> : vector<8x128xf32>
    %74 = tpu.matmul %72, %73, %cst_59 {dimension_numbers = #tpu.dot_dimension_numbers<[1], [0], [0], [1], [0, 0, 1, 1], [], []>} : vector<8x64xbf16>, vector<64x128xbf16>, vector<8x128xf32> -> vector<8x128xf32>
    %75 = arith.addf %70, %74 : vector<8x128xf32>
    %c0_60 = arith.constant 0 : index
    %c48 = arith.constant 48 : index
    %c0_61 = arith.constant 0 : index
    %76 = vector.load %arg1[%c0_60, %c48, %c0_61] : memref<1x71x64xbf16, #tpu.memory_space<vmem>>, vector<1x8x64xbf16>
    %77 = vector.shape_cast %76 : vector<1x8x64xbf16> to vector<8x64xbf16>
    %c960 = arith.constant 960 : index
    %c0_62 = arith.constant 0 : index
    %78 = vector.load %arg2[%c960, %c0_62] : memref<4096x128xbf16, #tpu.memory_space<vmem>>, vector<64x128xbf16>
    %cst_63 = arith.constant dense<0.000000e+00> : vector<8x128xf32>
    %79 = tpu.matmul %77, %78, %cst_63 {dimension_numbers = #tpu.dot_dimension_numbers<[1], [0], [0], [1], [0, 0, 1, 1], [], []>} : vector<8x64xbf16>, vector<64x128xbf16>, vector<8x128xf32> -> vector<8x128xf32>
    %80 = arith.addf %75, %79 : vector<8x128xf32>
    %c0_64 = arith.constant 0 : index
    %c47 = arith.constant 47 : index
    %c0_65 = arith.constant 0 : index
    %81 = vector.load %arg1[%c0_64, %c47, %c0_65] : memref<1x71x64xbf16, #tpu.memory_space<vmem>>, vector<1x8x64xbf16>
    %82 = vector.shape_cast %81 : vector<1x8x64xbf16> to vector<8x64xbf16>
    %c1024 = arith.constant 1024 : index
    %c0_66 = arith.constant 0 : index
    %83 = vector.load %arg2[%c1024, %c0_66] : memref<4096x128xbf16, #tpu.memory_space<vmem>>, vector<64x128xbf16>
    %cst_67 = arith.constant dense<0.000000e+00> : vector<8x128xf32>
    %84 = tpu.matmul %82, %83, %cst_67 {dimension_numbers = #tpu.dot_dimension_numbers<[1], [0], [0], [1], [0, 0, 1, 1], [], []>} : vector<8x64xbf16>, vector<64x128xbf16>, vector<8x128xf32> -> vector<8x128xf32>
    %85 = arith.addf %80, %84 : vector<8x128xf32>
    %c0_68 = arith.constant 0 : index
    %c46 = arith.constant 46 : index
    %c0_69 = arith.constant 0 : index
    %86 = vector.load %arg1[%c0_68, %c46, %c0_69] : memref<1x71x64xbf16, #tpu.memory_space<vmem>>, vector<1x8x64xbf16>
    %87 = vector.shape_cast %86 : vector<1x8x64xbf16> to vector<8x64xbf16>
    %c1088 = arith.constant 1088 : index
    %c0_70 = arith.constant 0 : index
    %88 = vector.load %arg2[%c1088, %c0_70] : memref<4096x128xbf16, #tpu.memory_space<vmem>>, vector<64x128xbf16>
    %cst_71 = arith.constant dense<0.000000e+00> : vector<8x128xf32>
    %89 = tpu.matmul %87, %88, %cst_71 {dimension_numbers = #tpu.dot_dimension_numbers<[1], [0], [0], [1], [0, 0, 1, 1], [], []>} : vector<8x64xbf16>, vector<64x128xbf16>, vector<8x128xf32> -> vector<8x128xf32>
    %90 = arith.addf %85, %89 : vector<8x128xf32>
    %c0_72 = arith.constant 0 : index
    %c45 = arith.constant 45 : index
    %c0_73 = arith.constant 0 : index
    %91 = vector.load %arg1[%c0_72, %c45, %c0_73] : memref<1x71x64xbf16, #tpu.memory_space<vmem>>, vector<1x8x64xbf16>
    %92 = vector.shape_cast %91 : vector<1x8x64xbf16> to vector<8x64xbf16>
    %c1152 = arith.constant 1152 : index
    %c0_74 = arith.constant 0 : index
    %93 = vector.load %arg2[%c1152, %c0_74] : memref<4096x128xbf16, #tpu.memory_space<vmem>>, vector<64x128xbf16>
    %cst_75 = arith.constant dense<0.000000e+00> : vector<8x128xf32>
    %94 = tpu.matmul %92, %93, %cst_75 {dimension_numbers = #tpu.dot_dimension_numbers<[1], [0], [0], [1], [0, 0, 1, 1], [], []>} : vector<8x64xbf16>, vector<64x128xbf16>, vector<8x128xf32> -> vector<8x128xf32>
    %95 = arith.addf %90, %94 : vector<8x128xf32>
    %c0_76 = arith.constant 0 : index
    %c44 = arith.constant 44 : index
    %c0_77 = arith.constant 0 : index
    %96 = vector.load %arg1[%c0_76, %c44, %c0_77] : memref<1x71x64xbf16, #tpu.memory_space<vmem>>, vector<1x8x64xbf16>
    %97 = vector.shape_cast %96 : vector<1x8x64xbf16> to vector<8x64xbf16>
    %c1216 = arith.constant 1216 : index
    %c0_78 = arith.constant 0 : index
    %98 = vector.load %arg2[%c1216, %c0_78] : memref<4096x128xbf16, #tpu.memory_space<vmem>>, vector<64x128xbf16>
    %cst_79 = arith.constant dense<0.000000e+00> : vector<8x128xf32>
    %99 = tpu.matmul %97, %98, %cst_79 {dimension_numbers = #tpu.dot_dimension_numbers<[1], [0], [0], [1], [0, 0, 1, 1], [], []>} : vector<8x64xbf16>, vector<64x128xbf16>, vector<8x128xf32> -> vector<8x128xf32>
    %100 = arith.addf %95, %99 : vector<8x128xf32>
    %c0_80 = arith.constant 0 : index
    %c43 = arith.constant 43 : index
    %c0_81 = arith.constant 0 : index
    %101 = vector.load %arg1[%c0_80, %c43, %c0_81] : memref<1x71x64xbf16, #tpu.memory_space<vmem>>, vector<1x8x64xbf16>
    %102 = vector.shape_cast %101 : vector<1x8x64xbf16> to vector<8x64xbf16>
    %c1280 = arith.constant 1280 : index
    %c0_82 = arith.constant 0 : index
    %103 = vector.load %arg2[%c1280, %c0_82] : memref<4096x128xbf16, #tpu.memory_space<vmem>>, vector<64x128xbf16>
    %cst_83 = arith.constant dense<0.000000e+00> : vector<8x128xf32>
    %104 = tpu.matmul %102, %103, %cst_83 {dimension_numbers = #tpu.dot_dimension_numbers<[1], [0], [0], [1], [0, 0, 1, 1], [], []>} : vector<8x64xbf16>, vector<64x128xbf16>, vector<8x128xf32> -> vector<8x128xf32>
    %105 = arith.addf %100, %104 : vector<8x128xf32>
    %c0_84 = arith.constant 0 : index
    %c42 = arith.constant 42 : index
    %c0_85 = arith.constant 0 : index
    %106 = vector.load %arg1[%c0_84, %c42, %c0_85] : memref<1x71x64xbf16, #tpu.memory_space<vmem>>, vector<1x8x64xbf16>
    %107 = vector.shape_cast %106 : vector<1x8x64xbf16> to vector<8x64xbf16>
    %c1344 = arith.constant 1344 : index
    %c0_86 = arith.constant 0 : index
    %108 = vector.load %arg2[%c1344, %c0_86] : memref<4096x128xbf16, #tpu.memory_space<vmem>>, vector<64x128xbf16>
    %cst_87 = arith.constant dense<0.000000e+00> : vector<8x128xf32>
    %109 = tpu.matmul %107, %108, %cst_87 {dimension_numbers = #tpu.dot_dimension_numbers<[1], [0], [0], [1], [0, 0, 1, 1], [], []>} : vector<8x64xbf16>, vector<64x128xbf16>, vector<8x128xf32> -> vector<8x128xf32>
    %110 = arith.addf %105, %109 : vector<8x128xf32>
    %c0_88 = arith.constant 0 : index
    %c41 = arith.constant 41 : index
    %c0_89 = arith.constant 0 : index
    %111 = vector.load %arg1[%c0_88, %c41, %c0_89] : memref<1x71x64xbf16, #tpu.memory_space<vmem>>, vector<1x8x64xbf16>
    %112 = vector.shape_cast %111 : vector<1x8x64xbf16> to vector<8x64xbf16>
    %c1408 = arith.constant 1408 : index
    %c0_90 = arith.constant 0 : index
    %113 = vector.load %arg2[%c1408, %c0_90] : memref<4096x128xbf16, #tpu.memory_space<vmem>>, vector<64x128xbf16>
    %cst_91 = arith.constant dense<0.000000e+00> : vector<8x128xf32>
    %114 = tpu.matmul %112, %113, %cst_91 {dimension_numbers = #tpu.dot_dimension_numbers<[1], [0], [0], [1], [0, 0, 1, 1], [], []>} : vector<8x64xbf16>, vector<64x128xbf16>, vector<8x128xf32> -> vector<8x128xf32>
    %115 = arith.addf %110, %114 : vector<8x128xf32>
    %c0_92 = arith.constant 0 : index
    %c40 = arith.constant 40 : index
    %c0_93 = arith.constant 0 : index
    %116 = vector.load %arg1[%c0_92, %c40, %c0_93] : memref<1x71x64xbf16, #tpu.memory_space<vmem>>, vector<1x8x64xbf16>
    %117 = vector.shape_cast %116 : vector<1x8x64xbf16> to vector<8x64xbf16>
    %c1472 = arith.constant 1472 : index
    %c0_94 = arith.constant 0 : index
    %118 = vector.load %arg2[%c1472, %c0_94] : memref<4096x128xbf16, #tpu.memory_space<vmem>>, vector<64x128xbf16>
    %cst_95 = arith.constant dense<0.000000e+00> : vector<8x128xf32>
    %119 = tpu.matmul %117, %118, %cst_95 {dimension_numbers = #tpu.dot_dimension_numbers<[1], [0], [0], [1], [0, 0, 1, 1], [], []>} : vector<8x64xbf16>, vector<64x128xbf16>, vector<8x128xf32> -> vector<8x128xf32>
    %120 = arith.addf %115, %119 : vector<8x128xf32>
    %c0_96 = arith.constant 0 : index
    %c39 = arith.constant 39 : index
    %c0_97 = arith.constant 0 : index
    %121 = vector.load %arg1[%c0_96, %c39, %c0_97] : memref<1x71x64xbf16, #tpu.memory_space<vmem>>, vector<1x8x64xbf16>
    %122 = vector.shape_cast %121 : vector<1x8x64xbf16> to vector<8x64xbf16>
    %c1536 = arith.constant 1536 : index
    %c0_98 = arith.constant 0 : index
    %123 = vector.load %arg2[%c1536, %c0_98] : memref<4096x128xbf16, #tpu.memory_space<vmem>>, vector<64x128xbf16>
    %cst_99 = arith.constant dense<0.000000e+00> : vector<8x128xf32>
    %124 = tpu.matmul %122, %123, %cst_99 {dimension_numbers = #tpu.dot_dimension_numbers<[1], [0], [0], [1], [0, 0, 1, 1], [], []>} : vector<8x64xbf16>, vector<64x128xbf16>, vector<8x128xf32> -> vector<8x128xf32>
    %125 = arith.addf %120, %124 : vector<8x128xf32>
    %c0_100 = arith.constant 0 : index
    %c38 = arith.constant 38 : index
    %c0_101 = arith.constant 0 : index
    %126 = vector.load %arg1[%c0_100, %c38, %c0_101] : memref<1x71x64xbf16, #tpu.memory_space<vmem>>, vector<1x8x64xbf16>
    %127 = vector.shape_cast %126 : vector<1x8x64xbf16> to vector<8x64xbf16>
    %c1600 = arith.constant 1600 : index
    %c0_102 = arith.constant 0 : index
    %128 = vector.load %arg2[%c1600, %c0_102] : memref<4096x128xbf16, #tpu.memory_space<vmem>>, vector<64x128xbf16>
    %cst_103 = arith.constant dense<0.000000e+00> : vector<8x128xf32>
    %129 = tpu.matmul %127, %128, %cst_103 {dimension_numbers = #tpu.dot_dimension_numbers<[1], [0], [0], [1], [0, 0, 1, 1], [], []>} : vector<8x64xbf16>, vector<64x128xbf16>, vector<8x128xf32> -> vector<8x128xf32>
    %130 = arith.addf %125, %129 : vector<8x128xf32>
    %c0_104 = arith.constant 0 : index
    %c37 = arith.constant 37 : index
    %c0_105 = arith.constant 0 : index
    %131 = vector.load %arg1[%c0_104, %c37, %c0_105] : memref<1x71x64xbf16, #tpu.memory_space<vmem>>, vector<1x8x64xbf16>
    %132 = vector.shape_cast %131 : vector<1x8x64xbf16> to vector<8x64xbf16>
    %c1664 = arith.constant 1664 : index
    %c0_106 = arith.constant 0 : index
    %133 = vector.load %arg2[%c1664, %c0_106] : memref<4096x128xbf16, #tpu.memory_space<vmem>>, vector<64x128xbf16>
    %cst_107 = arith.constant dense<0.000000e+00> : vector<8x128xf32>
    %134 = tpu.matmul %132, %133, %cst_107 {dimension_numbers = #tpu.dot_dimension_numbers<[1], [0], [0], [1], [0, 0, 1, 1], [], []>} : vector<8x64xbf16>, vector<64x128xbf16>, vector<8x128xf32> -> vector<8x128xf32>
    %135 = arith.addf %130, %134 : vector<8x128xf32>
    %c0_108 = arith.constant 0 : index
    %c36 = arith.constant 36 : index
    %c0_109 = arith.constant 0 : index
    %136 = vector.load %arg1[%c0_108, %c36, %c0_109] : memref<1x71x64xbf16, #tpu.memory_space<vmem>>, vector<1x8x64xbf16>
    %137 = vector.shape_cast %136 : vector<1x8x64xbf16> to vector<8x64xbf16>
    %c1728 = arith.constant 1728 : index
    %c0_110 = arith.constant 0 : index
    %138 = vector.load %arg2[%c1728, %c0_110] : memref<4096x128xbf16, #tpu.memory_space<vmem>>, vector<64x128xbf16>
    %cst_111 = arith.constant dense<0.000000e+00> : vector<8x128xf32>
    %139 = tpu.matmul %137, %138, %cst_111 {dimension_numbers = #tpu.dot_dimension_numbers<[1], [0], [0], [1], [0, 0, 1, 1], [], []>} : vector<8x64xbf16>, vector<64x128xbf16>, vector<8x128xf32> -> vector<8x128xf32>
    %140 = arith.addf %135, %139 : vector<8x128xf32>
    %c0_112 = arith.constant 0 : index
    %c35 = arith.constant 35 : index
    %c0_113 = arith.constant 0 : index
    %141 = vector.load %arg1[%c0_112, %c35, %c0_113] : memref<1x71x64xbf16, #tpu.memory_space<vmem>>, vector<1x8x64xbf16>
    %142 = vector.shape_cast %141 : vector<1x8x64xbf16> to vector<8x64xbf16>
    %c1792 = arith.constant 1792 : index
    %c0_114 = arith.constant 0 : index
    %143 = vector.load %arg2[%c1792, %c0_114] : memref<4096x128xbf16, #tpu.memory_space<vmem>>, vector<64x128xbf16>
    %cst_115 = arith.constant dense<0.000000e+00> : vector<8x128xf32>
    %144 = tpu.matmul %142, %143, %cst_115 {dimension_numbers = #tpu.dot_dimension_numbers<[1], [0], [0], [1], [0, 0, 1, 1], [], []>} : vector<8x64xbf16>, vector<64x128xbf16>, vector<8x128xf32> -> vector<8x128xf32>
    %145 = arith.addf %140, %144 : vector<8x128xf32>
    %c0_116 = arith.constant 0 : index
    %c34 = arith.constant 34 : index
    %c0_117 = arith.constant 0 : index
    %146 = vector.load %arg1[%c0_116, %c34, %c0_117] : memref<1x71x64xbf16, #tpu.memory_space<vmem>>, vector<1x8x64xbf16>
    %147 = vector.shape_cast %146 : vector<1x8x64xbf16> to vector<8x64xbf16>
    %c1856 = arith.constant 1856 : index
    %c0_118 = arith.constant 0 : index
    %148 = vector.load %arg2[%c1856, %c0_118] : memref<4096x128xbf16, #tpu.memory_space<vmem>>, vector<64x128xbf16>
    %cst_119 = arith.constant dense<0.000000e+00> : vector<8x128xf32>
    %149 = tpu.matmul %147, %148, %cst_119 {dimension_numbers = #tpu.dot_dimension_numbers<[1], [0], [0], [1], [0, 0, 1, 1], [], []>} : vector<8x64xbf16>, vector<64x128xbf16>, vector<8x128xf32> -> vector<8x128xf32>
    %150 = arith.addf %145, %149 : vector<8x128xf32>
    %c0_120 = arith.constant 0 : index
    %c33 = arith.constant 33 : index
    %c0_121 = arith.constant 0 : index
    %151 = vector.load %arg1[%c0_120, %c33, %c0_121] : memref<1x71x64xbf16, #tpu.memory_space<vmem>>, vector<1x8x64xbf16>
    %152 = vector.shape_cast %151 : vector<1x8x64xbf16> to vector<8x64xbf16>
    %c1920 = arith.constant 1920 : index
    %c0_122 = arith.constant 0 : index
    %153 = vector.load %arg2[%c1920, %c0_122] : memref<4096x128xbf16, #tpu.memory_space<vmem>>, vector<64x128xbf16>
    %cst_123 = arith.constant dense<0.000000e+00> : vector<8x128xf32>
    %154 = tpu.matmul %152, %153, %cst_123 {dimension_numbers = #tpu.dot_dimension_numbers<[1], [0], [0], [1], [0, 0, 1, 1], [], []>} : vector<8x64xbf16>, vector<64x128xbf16>, vector<8x128xf32> -> vector<8x128xf32>
    %155 = arith.addf %150, %154 : vector<8x128xf32>
    %c0_124 = arith.constant 0 : index
    %c32 = arith.constant 32 : index
    %c0_125 = arith.constant 0 : index
    %156 = vector.load %arg1[%c0_124, %c32, %c0_125] : memref<1x71x64xbf16, #tpu.memory_space<vmem>>, vector<1x8x64xbf16>
    %157 = vector.shape_cast %156 : vector<1x8x64xbf16> to vector<8x64xbf16>
    %c1984 = arith.constant 1984 : index
    %c0_126 = arith.constant 0 : index
    %158 = vector.load %arg2[%c1984, %c0_126] : memref<4096x128xbf16, #tpu.memory_space<vmem>>, vector<64x128xbf16>
    %cst_127 = arith.constant dense<0.000000e+00> : vector<8x128xf32>
    %159 = tpu.matmul %157, %158, %cst_127 {dimension_numbers = #tpu.dot_dimension_numbers<[1], [0], [0], [1], [0, 0, 1, 1], [], []>} : vector<8x64xbf16>, vector<64x128xbf16>, vector<8x128xf32> -> vector<8x128xf32>
    %160 = arith.addf %155, %159 : vector<8x128xf32>
    %c0_128 = arith.constant 0 : index
    %c31 = arith.constant 31 : index
    %c0_129 = arith.constant 0 : index
    %161 = vector.load %arg1[%c0_128, %c31, %c0_129] : memref<1x71x64xbf16, #tpu.memory_space<vmem>>, vector<1x8x64xbf16>
    %162 = vector.shape_cast %161 : vector<1x8x64xbf16> to vector<8x64xbf16>
    %c2048 = arith.constant 2048 : index
    %c0_130 = arith.constant 0 : index
    %163 = vector.load %arg2[%c2048, %c0_130] : memref<4096x128xbf16, #tpu.memory_space<vmem>>, vector<64x128xbf16>
    %cst_131 = arith.constant dense<0.000000e+00> : vector<8x128xf32>
    %164 = tpu.matmul %162, %163, %cst_131 {dimension_numbers = #tpu.dot_dimension_numbers<[1], [0], [0], [1], [0, 0, 1, 1], [], []>} : vector<8x64xbf16>, vector<64x128xbf16>, vector<8x128xf32> -> vector<8x128xf32>
    %165 = arith.addf %160, %164 : vector<8x128xf32>
    %c0_132 = arith.constant 0 : index
    %c30 = arith.constant 30 : index
    %c0_133 = arith.constant 0 : index
    %166 = vector.load %arg1[%c0_132, %c30, %c0_133] : memref<1x71x64xbf16, #tpu.memory_space<vmem>>, vector<1x8x64xbf16>
    %167 = vector.shape_cast %166 : vector<1x8x64xbf16> to vector<8x64xbf16>
    %c2112 = arith.constant 2112 : index
    %c0_134 = arith.constant 0 : index
    %168 = vector.load %arg2[%c2112, %c0_134] : memref<4096x128xbf16, #tpu.memory_space<vmem>>, vector<64x128xbf16>
    %cst_135 = arith.constant dense<0.000000e+00> : vector<8x128xf32>
    %169 = tpu.matmul %167, %168, %cst_135 {dimension_numbers = #tpu.dot_dimension_numbers<[1], [0], [0], [1], [0, 0, 1, 1], [], []>} : vector<8x64xbf16>, vector<64x128xbf16>, vector<8x128xf32> -> vector<8x128xf32>
    %170 = arith.addf %165, %169 : vector<8x128xf32>
    %c0_136 = arith.constant 0 : index
    %c29 = arith.constant 29 : index
    %c0_137 = arith.constant 0 : index
    %171 = vector.load %arg1[%c0_136, %c29, %c0_137] : memref<1x71x64xbf16, #tpu.memory_space<vmem>>, vector<1x8x64xbf16>
    %172 = vector.shape_cast %171 : vector<1x8x64xbf16> to vector<8x64xbf16>
    %c2176 = arith.constant 2176 : index
    %c0_138 = arith.constant 0 : index
    %173 = vector.load %arg2[%c2176, %c0_138] : memref<4096x128xbf16, #tpu.memory_space<vmem>>, vector<64x128xbf16>
    %cst_139 = arith.constant dense<0.000000e+00> : vector<8x128xf32>
    %174 = tpu.matmul %172, %173, %cst_139 {dimension_numbers = #tpu.dot_dimension_numbers<[1], [0], [0], [1], [0, 0, 1, 1], [], []>} : vector<8x64xbf16>, vector<64x128xbf16>, vector<8x128xf32> -> vector<8x128xf32>
    %175 = arith.addf %170, %174 : vector<8x128xf32>
    %c0_140 = arith.constant 0 : index
    %c28 = arith.constant 28 : index
    %c0_141 = arith.constant 0 : index
    %176 = vector.load %arg1[%c0_140, %c28, %c0_141] : memref<1x71x64xbf16, #tpu.memory_space<vmem>>, vector<1x8x64xbf16>
    %177 = vector.shape_cast %176 : vector<1x8x64xbf16> to vector<8x64xbf16>
    %c2240 = arith.constant 2240 : index
    %c0_142 = arith.constant 0 : index
    %178 = vector.load %arg2[%c2240, %c0_142] : memref<4096x128xbf16, #tpu.memory_space<vmem>>, vector<64x128xbf16>
    %cst_143 = arith.constant dense<0.000000e+00> : vector<8x128xf32>
    %179 = tpu.matmul %177, %178, %cst_143 {dimension_numbers = #tpu.dot_dimension_numbers<[1], [0], [0], [1], [0, 0, 1, 1], [], []>} : vector<8x64xbf16>, vector<64x128xbf16>, vector<8x128xf32> -> vector<8x128xf32>
    %180 = arith.addf %175, %179 : vector<8x128xf32>
    %c0_144 = arith.constant 0 : index
    %c27 = arith.constant 27 : index
    %c0_145 = arith.constant 0 : index
    %181 = vector.load %arg1[%c0_144, %c27, %c0_145] : memref<1x71x64xbf16, #tpu.memory_space<vmem>>, vector<1x8x64xbf16>
    %182 = vector.shape_cast %181 : vector<1x8x64xbf16> to vector<8x64xbf16>
    %c2304 = arith.constant 2304 : index
    %c0_146 = arith.constant 0 : index
    %183 = vector.load %arg2[%c2304, %c0_146] : memref<4096x128xbf16, #tpu.memory_space<vmem>>, vector<64x128xbf16>
    %cst_147 = arith.constant dense<0.000000e+00> : vector<8x128xf32>
    %184 = tpu.matmul %182, %183, %cst_147 {dimension_numbers = #tpu.dot_dimension_numbers<[1], [0], [0], [1], [0, 0, 1, 1], [], []>} : vector<8x64xbf16>, vector<64x128xbf16>, vector<8x128xf32> -> vector<8x128xf32>
    %185 = arith.addf %180, %184 : vector<8x128xf32>
    %c0_148 = arith.constant 0 : index
    %c26 = arith.constant 26 : index
    %c0_149 = arith.constant 0 : index
    %186 = vector.load %arg1[%c0_148, %c26, %c0_149] : memref<1x71x64xbf16, #tpu.memory_space<vmem>>, vector<1x8x64xbf16>
    %187 = vector.shape_cast %186 : vector<1x8x64xbf16> to vector<8x64xbf16>
    %c2368 = arith.constant 2368 : index
    %c0_150 = arith.constant 0 : index
    %188 = vector.load %arg2[%c2368, %c0_150] : memref<4096x128xbf16, #tpu.memory_space<vmem>>, vector<64x128xbf16>
    %cst_151 = arith.constant dense<0.000000e+00> : vector<8x128xf32>
    %189 = tpu.matmul %187, %188, %cst_151 {dimension_numbers = #tpu.dot_dimension_numbers<[1], [0], [0], [1], [0, 0, 1, 1], [], []>} : vector<8x64xbf16>, vector<64x128xbf16>, vector<8x128xf32> -> vector<8x128xf32>
    %190 = arith.addf %185, %189 : vector<8x128xf32>
    %c0_152 = arith.constant 0 : index
    %c25 = arith.constant 25 : index
    %c0_153 = arith.constant 0 : index
    %191 = vector.load %arg1[%c0_152, %c25, %c0_153] : memref<1x71x64xbf16, #tpu.memory_space<vmem>>, vector<1x8x64xbf16>
    %192 = vector.shape_cast %191 : vector<1x8x64xbf16> to vector<8x64xbf16>
    %c2432 = arith.constant 2432 : index
    %c0_154 = arith.constant 0 : index
    %193 = vector.load %arg2[%c2432, %c0_154] : memref<4096x128xbf16, #tpu.memory_space<vmem>>, vector<64x128xbf16>
    %cst_155 = arith.constant dense<0.000000e+00> : vector<8x128xf32>
    %194 = tpu.matmul %192, %193, %cst_155 {dimension_numbers = #tpu.dot_dimension_numbers<[1], [0], [0], [1], [0, 0, 1, 1], [], []>} : vector<8x64xbf16>, vector<64x128xbf16>, vector<8x128xf32> -> vector<8x128xf32>
    %195 = arith.addf %190, %194 : vector<8x128xf32>
    %c0_156 = arith.constant 0 : index
    %c24 = arith.constant 24 : index
    %c0_157 = arith.constant 0 : index
    %196 = vector.load %arg1[%c0_156, %c24, %c0_157] : memref<1x71x64xbf16, #tpu.memory_space<vmem>>, vector<1x8x64xbf16>
    %197 = vector.shape_cast %196 : vector<1x8x64xbf16> to vector<8x64xbf16>
    %c2496 = arith.constant 2496 : index
    %c0_158 = arith.constant 0 : index
    %198 = vector.load %arg2[%c2496, %c0_158] : memref<4096x128xbf16, #tpu.memory_space<vmem>>, vector<64x128xbf16>
    %cst_159 = arith.constant dense<0.000000e+00> : vector<8x128xf32>
    %199 = tpu.matmul %197, %198, %cst_159 {dimension_numbers = #tpu.dot_dimension_numbers<[1], [0], [0], [1], [0, 0, 1, 1], [], []>} : vector<8x64xbf16>, vector<64x128xbf16>, vector<8x128xf32> -> vector<8x128xf32>
    %200 = arith.addf %195, %199 : vector<8x128xf32>
    %c0_160 = arith.constant 0 : index
    %c23 = arith.constant 23 : index
    %c0_161 = arith.constant 0 : index
    %201 = vector.load %arg1[%c0_160, %c23, %c0_161] : memref<1x71x64xbf16, #tpu.memory_space<vmem>>, vector<1x8x64xbf16>
    %202 = vector.shape_cast %201 : vector<1x8x64xbf16> to vector<8x64xbf16>
    %c2560 = arith.constant 2560 : index
    %c0_162 = arith.constant 0 : index
    %203 = vector.load %arg2[%c2560, %c0_162] : memref<4096x128xbf16, #tpu.memory_space<vmem>>, vector<64x128xbf16>
    %cst_163 = arith.constant dense<0.000000e+00> : vector<8x128xf32>
    %204 = tpu.matmul %202, %203, %cst_163 {dimension_numbers = #tpu.dot_dimension_numbers<[1], [0], [0], [1], [0, 0, 1, 1], [], []>} : vector<8x64xbf16>, vector<64x128xbf16>, vector<8x128xf32> -> vector<8x128xf32>
    %205 = arith.addf %200, %204 : vector<8x128xf32>
    %c0_164 = arith.constant 0 : index
    %c22 = arith.constant 22 : index
    %c0_165 = arith.constant 0 : index
    %206 = vector.load %arg1[%c0_164, %c22, %c0_165] : memref<1x71x64xbf16, #tpu.memory_space<vmem>>, vector<1x8x64xbf16>
    %207 = vector.shape_cast %206 : vector<1x8x64xbf16> to vector<8x64xbf16>
    %c2624 = arith.constant 2624 : index
    %c0_166 = arith.constant 0 : index
    %208 = vector.load %arg2[%c2624, %c0_166] : memref<4096x128xbf16, #tpu.memory_space<vmem>>, vector<64x128xbf16>
    %cst_167 = arith.constant dense<0.000000e+00> : vector<8x128xf32>
    %209 = tpu.matmul %207, %208, %cst_167 {dimension_numbers = #tpu.dot_dimension_numbers<[1], [0], [0], [1], [0, 0, 1, 1], [], []>} : vector<8x64xbf16>, vector<64x128xbf16>, vector<8x128xf32> -> vector<8x128xf32>
    %210 = arith.addf %205, %209 : vector<8x128xf32>
    %c0_168 = arith.constant 0 : index
    %c21 = arith.constant 21 : index
    %c0_169 = arith.constant 0 : index
    %211 = vector.load %arg1[%c0_168, %c21, %c0_169] : memref<1x71x64xbf16, #tpu.memory_space<vmem>>, vector<1x8x64xbf16>
    %212 = vector.shape_cast %211 : vector<1x8x64xbf16> to vector<8x64xbf16>
    %c2688 = arith.constant 2688 : index
    %c0_170 = arith.constant 0 : index
    %213 = vector.load %arg2[%c2688, %c0_170] : memref<4096x128xbf16, #tpu.memory_space<vmem>>, vector<64x128xbf16>
    %cst_171 = arith.constant dense<0.000000e+00> : vector<8x128xf32>
    %214 = tpu.matmul %212, %213, %cst_171 {dimension_numbers = #tpu.dot_dimension_numbers<[1], [0], [0], [1], [0, 0, 1, 1], [], []>} : vector<8x64xbf16>, vector<64x128xbf16>, vector<8x128xf32> -> vector<8x128xf32>
    %215 = arith.addf %210, %214 : vector<8x128xf32>
    %c0_172 = arith.constant 0 : index
    %c20 = arith.constant 20 : index
    %c0_173 = arith.constant 0 : index
    %216 = vector.load %arg1[%c0_172, %c20, %c0_173] : memref<1x71x64xbf16, #tpu.memory_space<vmem>>, vector<1x8x64xbf16>
    %217 = vector.shape_cast %216 : vector<1x8x64xbf16> to vector<8x64xbf16>
    %c2752 = arith.constant 2752 : index
    %c0_174 = arith.constant 0 : index
    %218 = vector.load %arg2[%c2752, %c0_174] : memref<4096x128xbf16, #tpu.memory_space<vmem>>, vector<64x128xbf16>
    %cst_175 = arith.constant dense<0.000000e+00> : vector<8x128xf32>
    %219 = tpu.matmul %217, %218, %cst_175 {dimension_numbers = #tpu.dot_dimension_numbers<[1], [0], [0], [1], [0, 0, 1, 1], [], []>} : vector<8x64xbf16>, vector<64x128xbf16>, vector<8x128xf32> -> vector<8x128xf32>
    %220 = arith.addf %215, %219 : vector<8x128xf32>
    %c0_176 = arith.constant 0 : index
    %c19 = arith.constant 19 : index
    %c0_177 = arith.constant 0 : index
    %221 = vector.load %arg1[%c0_176, %c19, %c0_177] : memref<1x71x64xbf16, #tpu.memory_space<vmem>>, vector<1x8x64xbf16>
    %222 = vector.shape_cast %221 : vector<1x8x64xbf16> to vector<8x64xbf16>
    %c2816 = arith.constant 2816 : index
    %c0_178 = arith.constant 0 : index
    %223 = vector.load %arg2[%c2816, %c0_178] : memref<4096x128xbf16, #tpu.memory_space<vmem>>, vector<64x128xbf16>
    %cst_179 = arith.constant dense<0.000000e+00> : vector<8x128xf32>
    %224 = tpu.matmul %222, %223, %cst_179 {dimension_numbers = #tpu.dot_dimension_numbers<[1], [0], [0], [1], [0, 0, 1, 1], [], []>} : vector<8x64xbf16>, vector<64x128xbf16>, vector<8x128xf32> -> vector<8x128xf32>
    %225 = arith.addf %220, %224 : vector<8x128xf32>
    %c0_180 = arith.constant 0 : index
    %c18 = arith.constant 18 : index
    %c0_181 = arith.constant 0 : index
    %226 = vector.load %arg1[%c0_180, %c18, %c0_181] : memref<1x71x64xbf16, #tpu.memory_space<vmem>>, vector<1x8x64xbf16>
    %227 = vector.shape_cast %226 : vector<1x8x64xbf16> to vector<8x64xbf16>
    %c2880 = arith.constant 2880 : index
    %c0_182 = arith.constant 0 : index
    %228 = vector.load %arg2[%c2880, %c0_182] : memref<4096x128xbf16, #tpu.memory_space<vmem>>, vector<64x128xbf16>
    %cst_183 = arith.constant dense<0.000000e+00> : vector<8x128xf32>
    %229 = tpu.matmul %227, %228, %cst_183 {dimension_numbers = #tpu.dot_dimension_numbers<[1], [0], [0], [1], [0, 0, 1, 1], [], []>} : vector<8x64xbf16>, vector<64x128xbf16>, vector<8x128xf32> -> vector<8x128xf32>
    %230 = arith.addf %225, %229 : vector<8x128xf32>
    %c0_184 = arith.constant 0 : index
    %c17 = arith.constant 17 : index
    %c0_185 = arith.constant 0 : index
    %231 = vector.load %arg1[%c0_184, %c17, %c0_185] : memref<1x71x64xbf16, #tpu.memory_space<vmem>>, vector<1x8x64xbf16>
    %232 = vector.shape_cast %231 : vector<1x8x64xbf16> to vector<8x64xbf16>
    %c2944 = arith.constant 2944 : index
    %c0_186 = arith.constant 0 : index
    %233 = vector.load %arg2[%c2944, %c0_186] : memref<4096x128xbf16, #tpu.memory_space<vmem>>, vector<64x128xbf16>
    %cst_187 = arith.constant dense<0.000000e+00> : vector<8x128xf32>
    %234 = tpu.matmul %232, %233, %cst_187 {dimension_numbers = #tpu.dot_dimension_numbers<[1], [0], [0], [1], [0, 0, 1, 1], [], []>} : vector<8x64xbf16>, vector<64x128xbf16>, vector<8x128xf32> -> vector<8x128xf32>
    %235 = arith.addf %230, %234 : vector<8x128xf32>
    %c0_188 = arith.constant 0 : index
    %c16 = arith.constant 16 : index
    %c0_189 = arith.constant 0 : index
    %236 = vector.load %arg1[%c0_188, %c16, %c0_189] : memref<1x71x64xbf16, #tpu.memory_space<vmem>>, vector<1x8x64xbf16>
    %237 = vector.shape_cast %236 : vector<1x8x64xbf16> to vector<8x64xbf16>
    %c3008 = arith.constant 3008 : index
    %c0_190 = arith.constant 0 : index
    %238 = vector.load %arg2[%c3008, %c0_190] : memref<4096x128xbf16, #tpu.memory_space<vmem>>, vector<64x128xbf16>
    %cst_191 = arith.constant dense<0.000000e+00> : vector<8x128xf32>
    %239 = tpu.matmul %237, %238, %cst_191 {dimension_numbers = #tpu.dot_dimension_numbers<[1], [0], [0], [1], [0, 0, 1, 1], [], []>} : vector<8x64xbf16>, vector<64x128xbf16>, vector<8x128xf32> -> vector<8x128xf32>
    %240 = arith.addf %235, %239 : vector<8x128xf32>
    %c0_192 = arith.constant 0 : index
    %c15 = arith.constant 15 : index
    %c0_193 = arith.constant 0 : index
    %241 = vector.load %arg1[%c0_192, %c15, %c0_193] : memref<1x71x64xbf16, #tpu.memory_space<vmem>>, vector<1x8x64xbf16>
    %242 = vector.shape_cast %241 : vector<1x8x64xbf16> to vector<8x64xbf16>
    %c3072 = arith.constant 3072 : index
    %c0_194 = arith.constant 0 : index
    %243 = vector.load %arg2[%c3072, %c0_194] : memref<4096x128xbf16, #tpu.memory_space<vmem>>, vector<64x128xbf16>
    %cst_195 = arith.constant dense<0.000000e+00> : vector<8x128xf32>
    %244 = tpu.matmul %242, %243, %cst_195 {dimension_numbers = #tpu.dot_dimension_numbers<[1], [0], [0], [1], [0, 0, 1, 1], [], []>} : vector<8x64xbf16>, vector<64x128xbf16>, vector<8x128xf32> -> vector<8x128xf32>
    %245 = arith.addf %240, %244 : vector<8x128xf32>
    %c0_196 = arith.constant 0 : index
    %c14 = arith.constant 14 : index
    %c0_197 = arith.constant 0 : index
    %246 = vector.load %arg1[%c0_196, %c14, %c0_197] : memref<1x71x64xbf16, #tpu.memory_space<vmem>>, vector<1x8x64xbf16>
    %247 = vector.shape_cast %246 : vector<1x8x64xbf16> to vector<8x64xbf16>
    %c3136 = arith.constant 3136 : index
    %c0_198 = arith.constant 0 : index
    %248 = vector.load %arg2[%c3136, %c0_198] : memref<4096x128xbf16, #tpu.memory_space<vmem>>, vector<64x128xbf16>
    %cst_199 = arith.constant dense<0.000000e+00> : vector<8x128xf32>
    %249 = tpu.matmul %247, %248, %cst_199 {dimension_numbers = #tpu.dot_dimension_numbers<[1], [0], [0], [1], [0, 0, 1, 1], [], []>} : vector<8x64xbf16>, vector<64x128xbf16>, vector<8x128xf32> -> vector<8x128xf32>
    %250 = arith.addf %245, %249 : vector<8x128xf32>
    %c0_200 = arith.constant 0 : index
    %c13 = arith.constant 13 : index
    %c0_201 = arith.constant 0 : index
    %251 = vector.load %arg1[%c0_200, %c13, %c0_201] : memref<1x71x64xbf16, #tpu.memory_space<vmem>>, vector<1x8x64xbf16>
    %252 = vector.shape_cast %251 : vector<1x8x64xbf16> to vector<8x64xbf16>
    %c3200 = arith.constant 3200 : index
    %c0_202 = arith.constant 0 : index
    %253 = vector.load %arg2[%c3200, %c0_202] : memref<4096x128xbf16, #tpu.memory_space<vmem>>, vector<64x128xbf16>
    %cst_203 = arith.constant dense<0.000000e+00> : vector<8x128xf32>
    %254 = tpu.matmul %252, %253, %cst_203 {dimension_numbers = #tpu.dot_dimension_numbers<[1], [0], [0], [1], [0, 0, 1, 1], [], []>} : vector<8x64xbf16>, vector<64x128xbf16>, vector<8x128xf32> -> vector<8x128xf32>
    %255 = arith.addf %250, %254 : vector<8x128xf32>
    %c0_204 = arith.constant 0 : index
    %c12 = arith.constant 12 : index
    %c0_205 = arith.constant 0 : index
    %256 = vector.load %arg1[%c0_204, %c12, %c0_205] : memref<1x71x64xbf16, #tpu.memory_space<vmem>>, vector<1x8x64xbf16>
    %257 = vector.shape_cast %256 : vector<1x8x64xbf16> to vector<8x64xbf16>
    %c3264 = arith.constant 3264 : index
    %c0_206 = arith.constant 0 : index
    %258 = vector.load %arg2[%c3264, %c0_206] : memref<4096x128xbf16, #tpu.memory_space<vmem>>, vector<64x128xbf16>
    %cst_207 = arith.constant dense<0.000000e+00> : vector<8x128xf32>
    %259 = tpu.matmul %257, %258, %cst_207 {dimension_numbers = #tpu.dot_dimension_numbers<[1], [0], [0], [1], [0, 0, 1, 1], [], []>} : vector<8x64xbf16>, vector<64x128xbf16>, vector<8x128xf32> -> vector<8x128xf32>
    %260 = arith.addf %255, %259 : vector<8x128xf32>
    %c0_208 = arith.constant 0 : index
    %c11 = arith.constant 11 : index
    %c0_209 = arith.constant 0 : index
    %261 = vector.load %arg1[%c0_208, %c11, %c0_209] : memref<1x71x64xbf16, #tpu.memory_space<vmem>>, vector<1x8x64xbf16>
    %262 = vector.shape_cast %261 : vector<1x8x64xbf16> to vector<8x64xbf16>
    %c3328 = arith.constant 3328 : index
    %c0_210 = arith.constant 0 : index
    %263 = vector.load %arg2[%c3328, %c0_210] : memref<4096x128xbf16, #tpu.memory_space<vmem>>, vector<64x128xbf16>
    %cst_211 = arith.constant dense<0.000000e+00> : vector<8x128xf32>
    %264 = tpu.matmul %262, %263, %cst_211 {dimension_numbers = #tpu.dot_dimension_numbers<[1], [0], [0], [1], [0, 0, 1, 1], [], []>} : vector<8x64xbf16>, vector<64x128xbf16>, vector<8x128xf32> -> vector<8x128xf32>
    %265 = arith.addf %260, %264 : vector<8x128xf32>
    %c0_212 = arith.constant 0 : index
    %c10 = arith.constant 10 : index
    %c0_213 = arith.constant 0 : index
    %266 = vector.load %arg1[%c0_212, %c10, %c0_213] : memref<1x71x64xbf16, #tpu.memory_space<vmem>>, vector<1x8x64xbf16>
    %267 = vector.shape_cast %266 : vector<1x8x64xbf16> to vector<8x64xbf16>
    %c3392 = arith.constant 3392 : index
    %c0_214 = arith.constant 0 : index
    %268 = vector.load %arg2[%c3392, %c0_214] : memref<4096x128xbf16, #tpu.memory_space<vmem>>, vector<64x128xbf16>
    %cst_215 = arith.constant dense<0.000000e+00> : vector<8x128xf32>
    %269 = tpu.matmul %267, %268, %cst_215 {dimension_numbers = #tpu.dot_dimension_numbers<[1], [0], [0], [1], [0, 0, 1, 1], [], []>} : vector<8x64xbf16>, vector<64x128xbf16>, vector<8x128xf32> -> vector<8x128xf32>
    %270 = arith.addf %265, %269 : vector<8x128xf32>
    %c0_216 = arith.constant 0 : index
    %c9 = arith.constant 9 : index
    %c0_217 = arith.constant 0 : index
    %271 = vector.load %arg1[%c0_216, %c9, %c0_217] : memref<1x71x64xbf16, #tpu.memory_space<vmem>>, vector<1x8x64xbf16>
    %272 = vector.shape_cast %271 : vector<1x8x64xbf16> to vector<8x64xbf16>
    %c3456 = arith.constant 3456 : index
    %c0_218 = arith.constant 0 : index
    %273 = vector.load %arg2[%c3456, %c0_218] : memref<4096x128xbf16, #tpu.memory_space<vmem>>, vector<64x128xbf16>
    %cst_219 = arith.constant dense<0.000000e+00> : vector<8x128xf32>
    %274 = tpu.matmul %272, %273, %cst_219 {dimension_numbers = #tpu.dot_dimension_numbers<[1], [0], [0], [1], [0, 0, 1, 1], [], []>} : vector<8x64xbf16>, vector<64x128xbf16>, vector<8x128xf32> -> vector<8x128xf32>
    %275 = arith.addf %270, %274 : vector<8x128xf32>
    %c0_220 = arith.constant 0 : index
    %c8 = arith.constant 8 : index
    %c0_221 = arith.constant 0 : index
    %276 = vector.load %arg1[%c0_220, %c8, %c0_221] : memref<1x71x64xbf16, #tpu.memory_space<vmem>>, vector<1x8x64xbf16>
    %277 = vector.shape_cast %276 : vector<1x8x64xbf16> to vector<8x64xbf16>
    %c3520 = arith.constant 3520 : index
    %c0_222 = arith.constant 0 : index
    %278 = vector.load %arg2[%c3520, %c0_222] : memref<4096x128xbf16, #tpu.memory_space<vmem>>, vector<64x128xbf16>
    %cst_223 = arith.constant dense<0.000000e+00> : vector<8x128xf32>
    %279 = tpu.matmul %277, %278, %cst_223 {dimension_numbers = #tpu.dot_dimension_numbers<[1], [0], [0], [1], [0, 0, 1, 1], [], []>} : vector<8x64xbf16>, vector<64x128xbf16>, vector<8x128xf32> -> vector<8x128xf32>
    %280 = arith.addf %275, %279 : vector<8x128xf32>
    %c0_224 = arith.constant 0 : index
    %c7 = arith.constant 7 : index
    %c0_225 = arith.constant 0 : index
    %281 = vector.load %arg1[%c0_224, %c7, %c0_225] : memref<1x71x64xbf16, #tpu.memory_space<vmem>>, vector<1x8x64xbf16>
    %282 = vector.shape_cast %281 : vector<1x8x64xbf16> to vector<8x64xbf16>
    %c3584 = arith.constant 3584 : index
    %c0_226 = arith.constant 0 : index
    %283 = vector.load %arg2[%c3584, %c0_226] : memref<4096x128xbf16, #tpu.memory_space<vmem>>, vector<64x128xbf16>
    %cst_227 = arith.constant dense<0.000000e+00> : vector<8x128xf32>
    %284 = tpu.matmul %282, %283, %cst_227 {dimension_numbers = #tpu.dot_dimension_numbers<[1], [0], [0], [1], [0, 0, 1, 1], [], []>} : vector<8x64xbf16>, vector<64x128xbf16>, vector<8x128xf32> -> vector<8x128xf32>
    %285 = arith.addf %280, %284 : vector<8x128xf32>
    %c0_228 = arith.constant 0 : index
    %c6 = arith.constant 6 : index
    %c0_229 = arith.constant 0 : index
    %286 = vector.load %arg1[%c0_228, %c6, %c0_229] : memref<1x71x64xbf16, #tpu.memory_space<vmem>>, vector<1x8x64xbf16>
    %287 = vector.shape_cast %286 : vector<1x8x64xbf16> to vector<8x64xbf16>
    %c3648 = arith.constant 3648 : index
    %c0_230 = arith.constant 0 : index
    %288 = vector.load %arg2[%c3648, %c0_230] : memref<4096x128xbf16, #tpu.memory_space<vmem>>, vector<64x128xbf16>
    %cst_231 = arith.constant dense<0.000000e+00> : vector<8x128xf32>
    %289 = tpu.matmul %287, %288, %cst_231 {dimension_numbers = #tpu.dot_dimension_numbers<[1], [0], [0], [1], [0, 0, 1, 1], [], []>} : vector<8x64xbf16>, vector<64x128xbf16>, vector<8x128xf32> -> vector<8x128xf32>
    %290 = arith.addf %285, %289 : vector<8x128xf32>
    %c0_232 = arith.constant 0 : index
    %c5 = arith.constant 5 : index
    %c0_233 = arith.constant 0 : index
    %291 = vector.load %arg1[%c0_232, %c5, %c0_233] : memref<1x71x64xbf16, #tpu.memory_space<vmem>>, vector<1x8x64xbf16>
    %292 = vector.shape_cast %291 : vector<1x8x64xbf16> to vector<8x64xbf16>
    %c3712 = arith.constant 3712 : index
    %c0_234 = arith.constant 0 : index
    %293 = vector.load %arg2[%c3712, %c0_234] : memref<4096x128xbf16, #tpu.memory_space<vmem>>, vector<64x128xbf16>
    %cst_235 = arith.constant dense<0.000000e+00> : vector<8x128xf32>
    %294 = tpu.matmul %292, %293, %cst_235 {dimension_numbers = #tpu.dot_dimension_numbers<[1], [0], [0], [1], [0, 0, 1, 1], [], []>} : vector<8x64xbf16>, vector<64x128xbf16>, vector<8x128xf32> -> vector<8x128xf32>
    %295 = arith.addf %290, %294 : vector<8x128xf32>
    %c0_236 = arith.constant 0 : index
    %c4 = arith.constant 4 : index
    %c0_237 = arith.constant 0 : index
    %296 = vector.load %arg1[%c0_236, %c4, %c0_237] : memref<1x71x64xbf16, #tpu.memory_space<vmem>>, vector<1x8x64xbf16>
    %297 = vector.shape_cast %296 : vector<1x8x64xbf16> to vector<8x64xbf16>
    %c3776 = arith.constant 3776 : index
    %c0_238 = arith.constant 0 : index
    %298 = vector.load %arg2[%c3776, %c0_238] : memref<4096x128xbf16, #tpu.memory_space<vmem>>, vector<64x128xbf16>
    %cst_239 = arith.constant dense<0.000000e+00> : vector<8x128xf32>
    %299 = tpu.matmul %297, %298, %cst_239 {dimension_numbers = #tpu.dot_dimension_numbers<[1], [0], [0], [1], [0, 0, 1, 1], [], []>} : vector<8x64xbf16>, vector<64x128xbf16>, vector<8x128xf32> -> vector<8x128xf32>
    %300 = arith.addf %295, %299 : vector<8x128xf32>
    %c0_240 = arith.constant 0 : index
    %c3 = arith.constant 3 : index
    %c0_241 = arith.constant 0 : index
    %301 = vector.load %arg1[%c0_240, %c3, %c0_241] : memref<1x71x64xbf16, #tpu.memory_space<vmem>>, vector<1x8x64xbf16>
    %302 = vector.shape_cast %301 : vector<1x8x64xbf16> to vector<8x64xbf16>
    %c3840 = arith.constant 3840 : index
    %c0_242 = arith.constant 0 : index
    %303 = vector.load %arg2[%c3840, %c0_242] : memref<4096x128xbf16, #tpu.memory_space<vmem>>, vector<64x128xbf16>
    %cst_243 = arith.constant dense<0.000000e+00> : vector<8x128xf32>
    %304 = tpu.matmul %302, %303, %cst_243 {dimension_numbers = #tpu.dot_dimension_numbers<[1], [0], [0], [1], [0, 0, 1, 1], [], []>} : vector<8x64xbf16>, vector<64x128xbf16>, vector<8x128xf32> -> vector<8x128xf32>
    %305 = arith.addf %300, %304 : vector<8x128xf32>
    %c0_244 = arith.constant 0 : index
    %c2 = arith.constant 2 : index
    %c0_245 = arith.constant 0 : index
    %306 = vector.load %arg1[%c0_244, %c2, %c0_245] : memref<1x71x64xbf16, #tpu.memory_space<vmem>>, vector<1x8x64xbf16>
    %307 = vector.shape_cast %306 : vector<1x8x64xbf16> to vector<8x64xbf16>
    %c3904 = arith.constant 3904 : index
    %c0_246 = arith.constant 0 : index
    %308 = vector.load %arg2[%c3904, %c0_246] : memref<4096x128xbf16, #tpu.memory_space<vmem>>, vector<64x128xbf16>
    %cst_247 = arith.constant dense<0.000000e+00> : vector<8x128xf32>
    %309 = tpu.matmul %307, %308, %cst_247 {dimension_numbers = #tpu.dot_dimension_numbers<[1], [0], [0], [1], [0, 0, 1, 1], [], []>} : vector<8x64xbf16>, vector<64x128xbf16>, vector<8x128xf32> -> vector<8x128xf32>
    %310 = arith.addf %305, %309 : vector<8x128xf32>
    %c0_248 = arith.constant 0 : index
    %c1 = arith.constant 1 : index
    %c0_249 = arith.constant 0 : index
    %311 = vector.load %arg1[%c0_248, %c1, %c0_249] : memref<1x71x64xbf16, #tpu.memory_space<vmem>>, vector<1x8x64xbf16>
    %312 = vector.shape_cast %311 : vector<1x8x64xbf16> to vector<8x64xbf16>
    %c3968 = arith.constant 3968 : index
    %c0_250 = arith.constant 0 : index
    %313 = vector.load %arg2[%c3968, %c0_250] : memref<4096x128xbf16, #tpu.memory_space<vmem>>, vector<64x128xbf16>
    %cst_251 = arith.constant dense<0.000000e+00> : vector<8x128xf32>
    %314 = tpu.matmul %312, %313, %cst_251 {dimension_numbers = #tpu.dot_dimension_numbers<[1], [0], [0], [1], [0, 0, 1, 1], [], []>} : vector<8x64xbf16>, vector<64x128xbf16>, vector<8x128xf32> -> vector<8x128xf32>
    %315 = arith.addf %310, %314 : vector<8x128xf32>
    %c0_252 = arith.constant 0 : index
    %c0_253 = arith.constant 0 : index
    %c0_254 = arith.constant 0 : index
    %316 = vector.load %arg1[%c0_252, %c0_253, %c0_254] : memref<1x71x64xbf16, #tpu.memory_space<vmem>>, vector<1x8x64xbf16>
    %317 = vector.shape_cast %316 : vector<1x8x64xbf16> to vector<8x64xbf16>
    %c4032 = arith.constant 4032 : index
    %c0_255 = arith.constant 0 : index
    %318 = vector.load %arg2[%c4032, %c0_255] : memref<4096x128xbf16, #tpu.memory_space<vmem>>, vector<64x128xbf16>
    %cst_256 = arith.constant dense<0.000000e+00> : vector<8x128xf32>
    %319 = tpu.matmul %317, %318, %cst_256 {dimension_numbers = #tpu.dot_dimension_numbers<[1], [0], [0], [1], [0, 0, 1, 1], [], []>} : vector<8x64xbf16>, vector<64x128xbf16>, vector<8x128xf32> -> vector<8x128xf32>
    %320 = arith.addf %315, %319 : vector<8x128xf32>
    %c0_257 = arith.constant 0 : index
    %c0_258 = arith.constant 0 : index
    %321 = vector.load %arg3[%c0_257, %c0_258] : memref<1x128xf32, #tpu.memory_space<vmem>>, vector<1x128xf32>
    %322 = vector.broadcast %321 : vector<1x128xf32> to vector<8x128xf32>
    %323 = arith.addf %320, %322 : vector<8x128xf32>
    %324 = math.tanh %323 : vector<8x128xf32>
    %325 = arith.truncf %324 : vector<8x128xf32> to vector<8x128xbf16>
    %c0_259 = arith.constant 0 : index
    %c0_260 = arith.constant 0 : index
    %326 = vector.load %arg4[%c0_259, %c0_260] : memref<128x128xbf16, #tpu.memory_space<vmem>>, vector<128x128xbf16>
    %cst_261 = arith.constant dense<0.000000e+00> : vector<8x128xf32>
    %327 = tpu.matmul %325, %326, %cst_261 {dimension_numbers = #tpu.dot_dimension_numbers<[1], [0], [0], [1], [0, 0, 1, 1], [], []>} : vector<8x128xbf16>, vector<128x128xbf16>, vector<8x128xf32> -> vector<8x128xf32>
    %c0_262 = arith.constant 0 : index
    %c0_263 = arith.constant 0 : index
    %328 = vector.load %arg5[%c0_262, %c0_263] : memref<1x128xf32, #tpu.memory_space<vmem>>, vector<1x128xf32>
    %329 = vector.broadcast %328 : vector<1x128xf32> to vector<8x128xf32>
    %330 = arith.addf %327, %329 : vector<8x128xf32>
    %c0_264 = arith.constant 0 : index
    %c0_265 = arith.constant 0 : index
    %c0_266 = arith.constant 0 : index
    %331 = vector.load %arg6[%c0_264, %c0_265, %c0_266] : memref<1x8x128xf32, #tpu.memory_space<vmem>>, vector<1x8x128xf32>
    %332 = vector.shape_cast %331 : vector<1x8x128xf32> to vector<8x128xf32>
    %333 = vector.shape_cast %330 : vector<8x128xf32> to vector<1x8x128xf32>
    tpu.vector_store %arg6[%c0_264, %c0_265, %c0_266], %333 {strides = array<i32>} : memref<1x8x128xf32, #tpu.memory_space<vmem>>, vector<1x8x128xf32>,
    return
  }
  func.func @transform_0(%arg0: i32) -> (i32, i32, i32) {
    %c0_i32 = arith.constant 0 : i32
    %c0_i32_0 = arith.constant 0 : i32
    %c0_i32_1 = arith.constant 0 : i32
    return %arg0, %c0_i32, %c0_i32_0 : i32, i32, i32
  }
  func.func @transform_1(%arg0: i32) -> (i32, i32) {
    %c0_i32 = arith.constant 0 : i32
    %c0_i32_0 = arith.constant 0 : i32
    %c0_i32_1 = arith.constant 0 : i32
    return %c0_i32, %c0_i32_0 : i32, i32
  }
  func.func @transform_2(%arg0: i32) -> (i32, i32) {
    %c0_i32 = arith.constant 0 : i32
    %c0_i32_0 = arith.constant 0 : i32
    %c0_i32_1 = arith.constant 0 : i32
    return %c0_i32, %c0_i32_0 : i32, i32
  }
  func.func @transform_3(%arg0: i32) -> (i32, i32) {
    %c0_i32 = arith.constant 0 : i32
    %c0_i32_0 = arith.constant 0 : i32
    %c0_i32_1 = arith.constant 0 : i32
    return %c0_i32, %c0_i32_0 : i32, i32
  }
  func.func @transform_4(%arg0: i32) -> (i32, i32) {
    %c0_i32 = arith.constant 0 : i32
    %c0_i32_0 = arith.constant 0 : i32
    %c0_i32_1 = arith.constant 0 : i32
    return %c0_i32, %c0_i32_0 : i32, i32
  }
  func.func @transform_5(%arg0: i32) -> (i32, i32, i32) {
    %c0_i32 = arith.constant 0 : i32
    %c0_i32_0 = arith.constant 0 : i32
    %c0_i32_1 = arith.constant 0 : i32
    return %arg0, %c0_i32, %c0_i32_0 : i32, i32, i32
  }
}

</mosaic_0001>

<llo_original>
// kernel: mlp_lm_forward.1
$region0: #{mlp_lm_forward.1}
  #allocation0 [shape = 'u32[]', space=smem, size = 0x4, offset = 0x4, fixed_abs, tag = 'smem constant byte address 0x4 - core index']
  #allocation1 [shape = 'u32[144,128]{1,0:T(1,128)}', space=vmem, size = 0x12000, scoped, tag = 'internal scratch']
  %s0 = inlined_call_operand.vmem [shape: bf16[2,71,64], index: 0, kind: input, shape index: {}]
  %s1 = inlined_call_operand.vmem [shape: bf16[4096,128], index: 1, kind: input, shape index: {}]
  %s2 = inlined_call_operand.vmem [shape: f32[1,128], index: 2, kind: input, shape index: {}]
  %s3 = inlined_call_operand.vmem [shape: bf16[128,128], index: 3, kind: input, shape index: {}]
  %s4 = inlined_call_operand.vmem [shape: f32[1,128], index: 4, kind: input, shape index: {}]
  %s5 = inlined_call_operand.hbm [shape: f32[2,8,128], index: 5, kind: output, shape index: {}]
  %s6 = sld [smem:[#allocation0]]
  $region53: #{mlp_lm_forward.1} parent=0
    _
  %s8 = ssub.s32 1, %s6
  %s9 = scalar_select 0, %s8, %s6
  $region1: #{mlp_lm_forward.1} parent=0
    #allocation2 [shape = 'u8[8192]{0}', space=vmem, size = 0x2000, scoped, tag = 'output window, operand 0']
    #allocation3 [shape = 's32[2]{0}', space=sflag, size = 0x8, scoped, tag = 'scoped memory for mlp_lm_forward.1']
    %10 = vsyncpa [#allocation3], 0
    %s11 = scalar_lea.sflag [#allocation3], 1
    %12 = vsyncpa %s11, 0
    loop: start=0, step=1, limit=4
    $region2: #{mlp_lm_forward.1} parent=1 // loop_pre_header
      _
    $region3: #{mlp_lm_forward.1} parent=1 // loop_header
      %s14 = sphi 0, %s18
      %p15 = scmp.ge.s32.totalorder %s14, 4
      %s24 = sphi 0, %s26
      %s27 = sphi 0, %s24
      %s28 = sphi 0, %s27
      %s44 = sphi 0, %s28
      %s48 = sphi 0, %s48
      %s50 = sphi 0, %s48
      %s51 = sphi 0, %s50
      %s65 = sphi 0, %s51
      %s69 = sphi 0, %s69
      %s71 = sphi 0, %s69
      %s72 = sphi 0, %s71
      %s86 = sphi 0, %s72
      %s90 = sphi 0, %s90
      %s92 = sphi 0, %s90
      %s93 = sphi 0, %s92
      %s107 = sphi 0, %s93
      %s111 = sphi 0, %s111
      %s113 = sphi 0, %s111
      %s114 = sphi 0, %s113
      %s128 = sphi 0, %s114
      %s134 = sphi 0, %s136
      %s137 = sphi 0, %s134
      %s138 = sphi 0, %s137
      %s154 = sphi 0, %s138
    $region4: #{mlp_lm_forward.1} parent=1 // loop_header_branch
      %17 = sbr.rel (%p15) target = $region8
    $region5: #{mlp_lm_forward.1} parent=1 // loop_body
      %s19 = ssub.s32 %s14, 1
      %s20 = ssub.s32 %s14, 2
      %s21 = sadd.s32 %s14, 1
      %s22 = ssub.s32 %s14, %s21
      %p23 = scmp.eq.s32.totalorder %s22, 0
      %s25 = sadd.s32 %s24, 1
      %s26 = scalar_select %p23, %s24, %s25
      %p29 = pneg %p23
      %p30 = scmp.eq.s32.totalorder %s14, 1
      %p31 = por %p29, %p30
      %p32 = scmp.ne.s32.totalorder %s24, %s27
      %p33 = scmp.eq.s32.totalorder %s14, 0
      %p34 = por %p32, %p33
      %p35 = scmp.ne.s32.totalorder %s24, %s27
      %p36 = scmp.eq.s32.totalorder %s19, 1
      %p37 = por %p35, %p36
      %p38 = scmp.ne.s32.totalorder %s27, %s28
      %p39 = scmp.eq.s32.totalorder %s19, 0
      %p40 = por %p38, %p39
      %p41 = scmp.ne.s32.totalorder %s27, %s28
      %p42 = scmp.eq.s32.totalorder %s20, 1
      %p43 = por %p41, %p42
      %p45 = scmp.ne.s32.totalorder %s28, %s44
      %p46 = scmp.eq.s32.totalorder %s20, 0
      %p47 = por %p45, %p46
      %s49 = sadd.s32 %s48, 1
      %p52 = scmp.eq.s32.totalorder %s14, 1
      %p53 = scmp.ne.s32.totalorder %s48, %s50
      %p54 = scmp.eq.s32.totalorder %s14, 0
      %p55 = por %p53, %p54
      %p56 = scmp.ne.s32.totalorder %s48, %s50
      %p57 = scmp.eq.s32.totalorder %s19, 1
      %p58 = por %p56, %p57
      %p59 = scmp.ne.s32.totalorder %s50, %s51
      %p60 = scmp.eq.s32.totalorder %s19, 0
      %p61 = por %p59, %p60
      %p62 = scmp.ne.s32.totalorder %s50, %s51
      %p63 = scmp.eq.s32.totalorder %s20, 1
      %p64 = por %p62, %p63
      %p66 = scmp.ne.s32.totalorder %s51, %s65
      %p67 = scmp.eq.s32.totalorder %s20, 0
      %p68 = por %p66, %p67
      %s70 = sadd.s32 %s69, 1
      %p73 = scmp.eq.s32.totalorder %s14, 1
      %p74 = scmp.ne.s32.totalorder %s69, %s71
      %p75 = scmp.eq.s32.totalorder %s14, 0
      %p76 = por %p74, %p75
      %p77 = scmp.ne.s32.totalorder %s69, %s71
      %p78 = scmp.eq.s32.totalorder %s19, 1
      %p79 = por %p77, %p78
      %p80 = scmp.ne.s32.totalorder %s71, %s72
      %p81 = scmp.eq.s32.totalorder %s19, 0
      %p82 = por %p80, %p81
      %p83 = scmp.ne.s32.totalorder %s71, %s72
      %p84 = scmp.eq.s32.totalorder %s20, 1
      %p85 = por %p83, %p84
      %p87 = scmp.ne.s32.totalorder %s72, %s86
      %p88 = scmp.eq.s32.totalorder %s20, 0
      %p89 = por %p87, %p88
      %s91 = sadd.s32 %s90, 1
      %p94 = scmp.eq.s32.totalorder %s14, 1
      %p95 = scmp.ne.s32.totalorder %s90, %s92
      %p96 = scmp.eq.s32.totalorder %s14, 0
      %p97 = por %p95, %p96
      %p98 = scmp.ne.s32.totalorder %s90, %s92
      %p99 = scmp.eq.s32.totalorder %s19, 1
      %p100 = por %p98, %p99
      %p101 = scmp.ne.s32.totalorder %s92, %s93
      %p102 = scmp.eq.s32.totalorder %s19, 0
      %p103 = por %p101, %p102
      %p104 = scmp.ne.s32.totalorder %s92, %s93
      %p105 = scmp.eq.s32.totalorder %s20, 1
      %p106 = por %p104, %p105
      %p108 = scmp.ne.s32.totalorder %s93, %s107
      %p109 = scmp.eq.s32.totalorder %s20, 0
      %p110 = por %p108, %p109
      %s112 = sadd.s32 %s111, 1
      %p115 = scmp.eq.s32.totalorder %s14, 1
      %p116 = scmp.ne.s32.totalorder %s111, %s113
      %p117 = scmp.eq.s32.totalorder %s14, 0
      %p118 = por %p116, %p117
      %p119 = scmp.ne.s32.totalorder %s111, %s113
      %p120 = scmp.eq.s32.totalorder %s19, 1
      %p121 = por %p119, %p120
      %p122 = scmp.ne.s32.totalorder %s113, %s114
      %p123 = scmp.eq.s32.totalorder %s19, 0
      %p124 = por %p122, %p123
      %p125 = scmp.ne.s32.totalorder %s113, %s114
      %p126 = scmp.eq.s32.totalorder %s20, 1
      %p127 = por %p125, %p126
      %p129 = scmp.ne.s32.totalorder %s114, %s128
      %p130 = scmp.eq.s32.totalorder %s20, 0
      %p131 = por %p129, %p130
      %s132 = ssub.s32 %s14, %s21
      %p133 = scmp.eq.s32.totalorder %s132, 0
      %s135 = sadd.s32 %s134, 1
      %s136 = scalar_select %p133, %s134, %s135
      %p139 = pneg %p133
      %p140 = scmp.eq.s32.totalorder %s14, 1
      %p141 = por %p139, %p140
      %p142 = scmp.ne.s32.totalorder %s134, %s137
      %p143 = scmp.eq.s32.totalorder %s14, 0
      %p144 = por %p142, %p143
      %p145 = scmp.ne.s32.totalorder %s134, %s137
      %p146 = scmp.eq.s32.totalorder %s19, 1
      %p147 = por %p145, %p146
      %p148 = scmp.ne.s32.totalorder %s137, %s138
      %p149 = scmp.eq.s32.totalorder %s19, 0
      %p150 = por %p148, %p149
      %p151 = scmp.ne.s32.totalorder %s137, %s138
      %p152 = scmp.eq.s32.totalorder %s20, 1
      %p153 = por %p151, %p152
      %p155 = scmp.ne.s32.totalorder %s138, %s154
      %p156 = scmp.eq.s32.totalorder %s20, 0
      %p157 = por %p155, %p156
      %p158 = scmp.le.s32.totalorder 1, %s14
      %p159 = scmp.lt.s32.totalorder %s14, 3
      %p160 = pnand %p158, %p159
      %p161 = pneg %p160
      // Predicated region
      $region9: #{mlp_lm_forward.1} parent=5 // pred_check
        _
      $region10: #{mlp_lm_forward.1} parent=5 // pred_check_branch
        %163 = sbr.rel (%p160) target = $region12
      $region11: #{mlp_lm_forward.1} parent=5 // pred_region
        %s164 = ssub.s32 %s14, 1
        // Predicated region
        $region13: #{mlp_lm_forward.1} parent=11 // pred_check
          %p165 = pneg %p61
        $region14: #{mlp_lm_forward.1} parent=11 // pred_check_branch
          %167 = sbr.rel (%p165) target = $region16
        $region15: #{mlp_lm_forward.1} parent=11 // pred_region
          _
        $region16: #{mlp_lm_forward.1} parent=11 // pred_fallthru
          _
        // Predicated region
        $region17: #{mlp_lm_forward.1} parent=11 // pred_check
          %p168 = pneg %p82
        $region18: #{mlp_lm_forward.1} parent=11 // pred_check_branch
          %170 = sbr.rel (%p168) target = $region20
        $region19: #{mlp_lm_forward.1} parent=11 // pred_region
          _
        $region20: #{mlp_lm_forward.1} parent=11 // pred_fallthru
          _
        // Predicated region
        $region21: #{mlp_lm_forward.1} parent=11 // pred_check
          %p171 = pneg %p103
        $region22: #{mlp_lm_forward.1} parent=11 // pred_check_branch
          %173 = sbr.rel (%p171) target = $region24
        $region23: #{mlp_lm_forward.1} parent=11 // pred_region
          _
        $region24: #{mlp_lm_forward.1} parent=11 // pred_fallthru
          _
        // Predicated region
        $region25: #{mlp_lm_forward.1} parent=11 // pred_check
          %p174 = pneg %p124
        $region26: #{mlp_lm_forward.1} parent=11 // pred_check_branch
          %176 = sbr.rel (%p174) target = $region28
        $region27: #{mlp_lm_forward.1} parent=11 // pred_region
          _
        $region28: #{mlp_lm_forward.1} parent=11 // pred_fallthru
          _
      $region12: #{mlp_lm_forward.1} parent=5 // pred_fallthru
        _
      %p177 = scmp.lt.s32.totalorder %s14, 2
      // Predicated region
      $region29: #{mlp_lm_forward.1} parent=5 // pred_check
        %p178 = pneg %p177
      $region30: #{mlp_lm_forward.1} parent=5 // pred_check_branch
        %180 = sbr.rel (%p178) target = $region32
      $region31: #{mlp_lm_forward.1} parent=5 // pred_region
        // Predicated region
        $region33: #{mlp_lm_forward.1} parent=31 // pred_check
          %p181 = pneg %p34
        $region34: #{mlp_lm_forward.1} parent=31 // pred_check_branch
          %183 = sbr.rel (%p181) target = $region36
        $region35: #{mlp_lm_forward.1} parent=31 // pred_region
          %p184 = scmp.lt.s32.totalorder %s14, 1
          %s185 = scalar_select %p184, %s14, 1
          %s186 = smul.addr %s185, 9
          %s187 = smul.addr %s186, 4
          %s188 = scalar_lea.vmem %s0, %s187
        $region36: #{mlp_lm_forward.1} parent=31 // pred_fallthru
          _
      $region32: #{mlp_lm_forward.1} parent=5 // pred_fallthru
        _
      %p189 = scmp.le.s32.totalorder 1, %s14
      %p190 = scmp.lt.s32.totalorder %s14, 3
      %p191 = pnand %p189, %p190
      %p192 = pneg %p191
      // Predicated region
      $region37: #{mlp_lm_forward.1} parent=5 // pred_check
        _
      $region38: #{mlp_lm_forward.1} parent=5 // pred_check_branch
        %194 = sbr.rel (%p191) target = $region40
      $region39: #{mlp_lm_forward.1} parent=5 // pred_region
        %s195 = ssub.s32 %s14, 1
        %p196 = scmp.lt.s32.totalorder %s19, 1
        %s197 = scalar_select %p196, %s19, 1
        %s198 = smul.addr %s197, 9
        %s199 = smul.addr %s198, 4
        %s200 = scalar_lea.vmem %s0, %s199
        %p201 = pneg %p40
        %p202 = pneg %p37
        %p203 = pneg %p61
        %p204 = pneg %p58
        %p205 = pneg %p82
        %p206 = pneg %p79
        %p207 = pneg %p103
        %p208 = pneg %p100
        %p209 = pneg %p124
        %p210 = pneg %p121
        %p211 = pneg %p150
        %p212 = pneg %p147
        %s213 = sand.u32 %s137, 1
        %s214 = scalar_lea.sflag [#allocation3], %s213
        %s215 = sand.u32 %s137, 1
        %s216 = smul.addr %s215, 8
        %s217 = scalar_lea.vmem [#allocation2], %s216
        %p218 = scmp.lt.s32.totalorder %s19, 1
        %s219 = scalar_select %p218, %s19, 1
        %s220 = smul.addr %s219, 9
        %s221 = smul.addr %s220, 4
        %s222 = scalar_lea.vmem %s0, %s221
        %v224 = vld [vmem:[%s222 + $0x1c] sm:$0x8]
        %v225 = vld [vmem:[%s222 + $0x20] sm:$0xf]
        %v226 = vld [vmem:[%s1] sm:$0xf]
        %v227 = vld [vmem:[%s1 + $0x4] sm:$0xf]
        %v228 = vld [vmem:[%s1 + $0x8] sm:$0xf]
        %v229 = vld [vmem:[%s1 + $0xc] sm:$0xf]
        %v230 = vld [vmem:[%s1 + $0x10] sm:$0xf]
        %v231 = vld [vmem:[%s1 + $0x14] sm:$0xf]
        %v232 = vld [vmem:[%s1 + $0x18] sm:$0xf]
        %v233 = vld [vmem:[%s1 + $0x1c] sm:$0xf]
        %v234 = vld [vmem:[%s222 + $0x20] sm:$0x7]
        %v235 = vld [vmem:[%s1 + $0x20] sm:$0xf]
        %v236 = vld [vmem:[%s1 + $0x24] sm:$0xf]
        %v237 = vld [vmem:[%s1 + $0x28] sm:$0xf]
        %v238 = vld [vmem:[%s1 + $0x2c] sm:$0xf]
        %v239 = vld [vmem:[%s1 + $0x30] sm:$0xf]
        %v240 = vld [vmem:[%s1 + $0x34] sm:$0xf]
        %v241 = vld [vmem:[%s1 + $0x38] sm:$0xf]
        %v242 = vld [vmem:[%s1 + $0x3c] sm:$0xf]
        %v245 = vunpack.c.l.b16 %v224
        %v246 = vunpack.c.l.b16 %v234
        %v247 = vpack.c.b16 %v246, %v245
        %v248 = vrot.slane %v247, 3
        %v257 = vunpack.c.l.b16 %v235
        %v258 = vunpack.c.l.b16 %v236
        %v259 = vunpack.c.l.b16 %v237
        %v260 = vunpack.c.l.b16 %v238
        %v261 = vunpack.c.l.b16 %v239
        %v262 = vunpack.c.l.b16 %v240
        %v263 = vunpack.c.l.b16 %v241
        %v264 = vunpack.c.l.b16 %v242
        %v265 = vpack.c.b16 %v258, %v257
        %v266 = vpack.c.b16 %v260, %v259
        %v267 = vpack.c.b16 %v262, %v261
        %v268 = vpack.c.b16 %v264, %v263
        %vm273 = vcmask 523264
        %v275 = vsel %vm273, %v248, 0
        %277 = vmatprep.subr.bf16.mxu0 0
        %278 = vmatpush1.bf16.msra.mxu0 %v265
        %279 = vmatprep.subr.bf16.mxu0 0
        %280 = vmatpush1.bf16.msra.mxu0 %v266
        %281 = vmatprep.subr.bf16.mxu0 0
        %282 = vmatpush1.bf16.msra.mxu0 %v267
        %283 = vmatprep.subr.bf16.mxu0 0
        %284 = vmatpush1.bf16.msra.mxu0 %v268
        %285 = vmatprep.subr.bf16.mxu0 0
        %286 = vmatpush1.bf16.msra.mxu0 0
        %287 = vmatprep.subr.bf16.mxu0 0
        %288 = vmatpush1.bf16.msra.mxu0 0
        %289 = vmatprep.subr.bf16.mxu0 0
        %290 = vmatpush1.bf16.msra.mxu0 0
        %291 = vmatprep.subr.bf16.mxu0 0
        %292 = vmatpush1.bf16.msra.mxu0 0
        %293 = vmatprep.subr.bf16.mxu0 0
        %294 = vmatpush1.bf16.msra.mxu0 0
        %295 = vmatprep.subr.bf16.mxu0 0
        %296 = vmatpush1.bf16.msra.mxu0 0
        %297 = vmatprep.subr.bf16.mxu0 0
        %298 = vmatpush1.bf16.msra.mxu0 0
        %299 = vmatprep.subr.bf16.mxu0 0
        %300 = vmatpush1.bf16.msra.mxu0 0
        %301 = vmatprep.subr.bf16.mxu0 0
        %302 = vmatpush1.bf16.msra.mxu0 0
        %303 = vmatprep.subr.bf16.mxu0 0
        %304 = vmatpush1.bf16.msra.mxu0 0
        %305 = vmatprep.subr.bf16.mxu0 0
        %306 = vmatpush1.bf16.msra.mxu0 0
        %307 = vmatprep.subr.bf16.mxu0 0
        %308 = vmatpush1.bf16.msra.mxu0 0
        %309 = vmatprep.mubr.bf16.mxu0 0
        %310 = vmatmul.mubr.bf16.gmra.mrb[0].mxu0 %v275
        %v311 = vpop.f32.mrb[0].mxu0
        %v312 = vadd.f32 0.0, %v311
        %v313 = vpop.f32.mrb[0].mxu0
        %v314 = vpop.f32.mrb[0].mxu0
        %v315 = vpop.f32.mrb[0].mxu0
        %316 = vdwg.mxu0
        %v318 = vunpack.c.l.b16 %v225
        %v319 = vpack.c.b16 %v318, %v245
        %v321 = vshrl.u32 %v319, 16
        %v323 = vrot.slane %v321, 3
        %v324 = vshll.u32 %v319, 16
        %v326 = vrot.slane %v324, 4
        %v327 = vor.u32 %v323, %v326
        %v336 = vunpack.c.l.b16 %v226
        %v337 = vunpack.c.l.b16 %v227
        %v338 = vunpack.c.l.b16 %v228
        %v339 = vunpack.c.l.b16 %v229
        %v340 = vunpack.c.l.b16 %v230
        %v341 = vunpack.c.l.b16 %v231
        %v342 = vunpack.c.l.b16 %v232
        %v343 = vunpack.c.l.b16 %v233
        %v344 = vpack.c.b16 %v337, %v336
        %v345 = vpack.c.b16 %v339, %v338
        %v346 = vpack.c.b16 %v341, %v340
        %v347 = vpack.c.b16 %v343, %v342
        %v353 = vsel %vm273, %v327, 0
        %355 = vmatprep.subr.bf16.mxu0 0
        %356 = vmatpush1.bf16.msra.mxu0 %v344
        %357 = vmatprep.subr.bf16.mxu0 0
        %358 = vmatpush1.bf16.msra.mxu0 %v345
        %359 = vmatprep.subr.bf16.mxu0 0
        %360 = vmatpush1.bf16.msra.mxu0 %v346
        %361 = vmatprep.subr.bf16.mxu0 0
        %362 = vmatpush1.bf16.msra.mxu0 %v347
        %363 = vmatprep.subr.bf16.mxu0 0
        %364 = vmatpush1.bf16.msra.mxu0 0
        %365 = vmatprep.subr.bf16.mxu0 0
        %366 = vmatpush1.bf16.msra.mxu0 0
        %367 = vmatprep.subr.bf16.mxu0 0
        %368 = vmatpush1.bf16.msra.mxu0 0
        %369 = vmatprep.subr.bf16.mxu0 0
        %370 = vmatpush1.bf16.msra.mxu0 0
        %371 = vmatprep.subr.bf16.mxu0 0
        %372 = vmatpush1.bf16.msra.mxu0 0
        %373 = vmatprep.subr.bf16.mxu0 0
        %374 = vmatpush1.bf16.msra.mxu0 0
        %375 = vmatprep.subr.bf16.mxu0 0
        %376 = vmatpush1.bf16.msra.mxu0 0
        %377 = vmatprep.subr.bf16.mxu0 0
        %378 = vmatpush1.bf16.msra.mxu0 0
        %379 = vmatprep.subr.bf16.mxu0 0
        %380 = vmatpush1.bf16.msra.mxu0 0
        %381 = vmatprep.subr.bf16.mxu0 0
        %382 = vmatpush1.bf16.msra.mxu0 0
        %383 = vmatprep.subr.bf16.mxu0 0
        %384 = vmatpush1.bf16.msra.mxu0 0
        %385 = vmatprep.subr.bf16.mxu0 0
        %386 = vmatpush1.bf16.msra.mxu0 0
        %387 = vmatprep.mubr.bf16.mxu0 0
        %388 = vmatmul.mubr.bf16.gmra.mrb[0].mxu0 %v353
        %v389 = vpop.f32.mrb[0].mxu0
        %v390 = vadd.f32 %v312, %v389
        %v391 = vpop.f32.mrb[0].mxu0
        %v392 = vpop.f32.mrb[0].mxu0
        %v393 = vpop.f32.mrb[0].mxu0
        %394 = vdwg.mxu0
        %v395 = vld [vmem:[%s222 + $0x1c] sm:$0xc]
        %v396 = vld [vmem:[%s1 + $0x40] sm:$0xf]
        %v397 = vld [vmem:[%s1 + $0x44] sm:$0xf]
        %v398 = vld [vmem:[%s1 + $0x48] sm:$0xf]
        %v399 = vld [vmem:[%s1 + $0x4c] sm:$0xf]
        %v400 = vld [vmem:[%s1 + $0x50] sm:$0xf]
        %v401 = vld [vmem:[%s1 + $0x54] sm:$0xf]
        %v402 = vld [vmem:[%s1 + $0x58] sm:$0xf]
        %v403 = vld [vmem:[%s1 + $0x5c] sm:$0xf]
        %v405 = vunpack.c.l.b16 %v395
        %v406 = vpack.c.b16 %v246, %v405
        %v408 = vshrl.u32 %v406, 16
        %v410 = vrot.slane %v408, 2
        %v411 = vshll.u32 %v406, 16
        %v413 = vrot.slane %v411, 3
        %v414 = vor.u32 %v410, %v413
        %v423 = vunpack.c.l.b16 %v396
        %v424 = vunpack.c.l.b16 %v397
        %v425 = vunpack.c.l.b16 %v398
        %v426 = vunpack.c.l.b16 %v399
        %v427 = vunpack.c.l.b16 %v400
        %v428 = vunpack.c.l.b16 %v401
        %v429 = vunpack.c.l.b16 %v402
        %v430 = vunpack.c.l.b16 %v403
        %v431 = vpack.c.b16 %v424, %v423
        %v432 = vpack.c.b16 %v426, %v425
        %v433 = vpack.c.b16 %v428, %v427
        %v434 = vpack.c.b16 %v430, %v429
        %v440 = vsel %vm273, %v414, 0
        %442 = vmatprep.subr.bf16.mxu0 0
        %443 = vmatpush1.bf16.msra.mxu0 %v431
        %444 = vmatprep.subr.bf16.mxu0 0
        %445 = vmatpush1.bf16.msra.mxu0 %v432
        %446 = vmatprep.subr.bf16.mxu0 0
        %447 = vmatpush1.bf16.msra.mxu0 %v433
        %448 = vmatprep.subr.bf16.mxu0 0
        %449 = vmatpush1.bf16.msra.mxu0 %v434
        %450 = vmatprep.subr.bf16.mxu0 0
        %451 = vmatpush1.bf16.msra.mxu0 0
        %452 = vmatprep.subr.bf16.mxu0 0
        %453 = vmatpush1.bf16.msra.mxu0 0
        %454 = vmatprep.subr.bf16.mxu0 0
        %455 = vmatpush1.bf16.msra.mxu0 0
        %456 = vmatprep.subr.bf16.mxu0 0
        %457 = vmatpush1.bf16.msra.mxu0 0
        %458 = vmatprep.subr.bf16.mxu0 0
        %459 = vmatpush1.bf16.msra.mxu0 0
        %460 = vmatprep.subr.bf16.mxu0 0
        %461 = vmatpush1.bf16.msra.mxu0 0
        %462 = vmatprep.subr.bf16.mxu0 0
        %463 = vmatpush1.bf16.msra.mxu0 0
        %464 = vmatprep.subr.bf16.mxu0 0
        %465 = vmatpush1.bf16.msra.mxu0 0
        %466 = vmatprep.subr.bf16.mxu0 0
        %467 = vmatpush1.bf16.msra.mxu0 0
        %468 = vmatprep.subr.bf16.mxu0 0
        %469 = vmatpush1.bf16.msra.mxu0 0
        %470 = vmatprep.subr.bf16.mxu0 0
        %471 = vmatpush1.bf16.msra.mxu0 0
        %472 = vmatprep.subr.bf16.mxu0 0
        %473 = vmatpush1.bf16.msra.mxu0 0
        %474 = vmatprep.mubr.bf16.mxu0 0
        %475 = vmatmul.mubr.bf16.gmra.mrb[0].mxu0 %v440
        %v476 = vpop.f32.mrb[0].mxu0
        %v477 = vadd.f32 0.0, %v476
        %v478 = vpop.f32.mrb[0].mxu0
        %v479 = vpop.f32.mrb[0].mxu0
        %v480 = vpop.f32.mrb[0].mxu0
        %481 = vdwg.mxu0
        %v482 = vadd.f32 %v390, %v477
        %v483 = vld [vmem:[%s222 + $0x20] sm:$0x3]
        %v484 = vld [vmem:[%s1 + $0x60] sm:$0xf]
        %v485 = vld [vmem:[%s1 + $0x64] sm:$0xf]
        %v486 = vld [vmem:[%s1 + $0x68] sm:$0xf]
        %v487 = vld [vmem:[%s1 + $0x6c] sm:$0xf]
        %v488 = vld [vmem:[%s1 + $0x70] sm:$0xf]
        %v489 = vld [vmem:[%s1 + $0x74] sm:$0xf]
        %v490 = vld [vmem:[%s1 + $0x78] sm:$0xf]
        %v491 = vld [vmem:[%s1 + $0x7c] sm:$0xf]
        %v493 = vunpack.c.l.b16 %v483
        %v494 = vpack.c.b16 %v493, %v405
        %v495 = vrot.slane %v494, 2
        %v504 = vunpack.c.l.b16 %v484
        %v505 = vunpack.c.l.b16 %v485
        %v506 = vunpack.c.l.b16 %v486
        %v507 = vunpack.c.l.b16 %v487
        %v508 = vunpack.c.l.b16 %v488
        %v509 = vunpack.c.l.b16 %v489
        %v510 = vunpack.c.l.b16 %v490
        %v511 = vunpack.c.l.b16 %v491
        %v512 = vpack.c.b16 %v505, %v504
        %v513 = vpack.c.b16 %v507, %v506
        %v514 = vpack.c.b16 %v509, %v508
        %v515 = vpack.c.b16 %v511, %v510
        %v521 = vsel %vm273, %v495, 0
        %523 = vmatprep.subr.bf16.mxu0 0
        %524 = vmatpush1.bf16.msra.mxu0 %v512
        %525 = vmatprep.subr.bf16.mxu0 0
        %526 = vmatpush1.bf16.msra.mxu0 %v513
        %527 = vmatprep.subr.bf16.mxu0 0
        %528 = vmatpush1.bf16.msra.mxu0 %v514
        %529 = vmatprep.subr.bf16.mxu0 0
        %530 = vmatpush1.bf16.msra.mxu0 %v515
        %531 = vmatprep.subr.bf16.mxu0 0
        %532 = vmatpush1.bf16.msra.mxu0 0
        %533 = vmatprep.subr.bf16.mxu0 0
        %534 = vmatpush1.bf16.msra.mxu0 0
        %535 = vmatprep.subr.bf16.mxu0 0
        %536 = vmatpush1.bf16.msra.mxu0 0
        %537 = vmatprep.subr.bf16.mxu0 0
        %538 = vmatpush1.bf16.msra.mxu0 0
        %539 = vmatprep.subr.bf16.mxu0 0
        %540 = vmatpush1.bf16.msra.mxu0 0
        %541 = vmatprep.subr.bf16.mxu0 0
        %542 = vmatpush1.bf16.msra.mxu0 0
        %543 = vmatprep.subr.bf16.mxu0 0
        %544 = vmatpush1.bf16.msra.mxu0 0
        %545 = vmatprep.subr.bf16.mxu0 0
        %546 = vmatpush1.bf16.msra.mxu0 0
        %547 = vmatprep.subr.bf16.mxu0 0
        %548 = vmatpush1.bf16.msra.mxu0 0
        %549 = vmatprep.subr.bf16.mxu0 0
        %550 = vmatpush1.bf16.msra.mxu0 0
        %551 = vmatprep.subr.bf16.mxu0 0
        %552 = vmatpush1.bf16.msra.mxu0 0
        %553 = vmatprep.subr.bf16.mxu0 0
        %554 = vmatpush1.bf16.msra.mxu0 0
        %555 = vmatprep.mubr.bf16.mxu0 0
        %556 = vmatmul.mubr.bf16.gmra.mrb[0].mxu0 %v521
        %v557 = vpop.f32.mrb[0].mxu0
        %v558 = vadd.f32 0.0, %v557
        %v559 = vpop.f32.mrb[0].mxu0
        %v560 = vpop.f32.mrb[0].mxu0
        %v561 = vpop.f32.mrb[0].mxu0
        %562 = vdwg.mxu0
        %v563 = vadd.f32 %v482, %v558
        %v564 = vld [vmem:[%s222 + $0x1c] sm:$0xe]
        %v565 = vld [vmem:[%s1 + $0x80] sm:$0xf]
        %v566 = vld [vmem:[%s1 + $0x84] sm:$0xf]
        %v567 = vld [vmem:[%s1 + $0x88] sm:$0xf]
        %v568 = vld [vmem:[%s1 + $0x8c] sm:$0xf]
        %v569 = vld [vmem:[%s1 + $0x90] sm:$0xf]
        %v570 = vld [vmem:[%s1 + $0x94] sm:$0xf]
        %v571 = vld [vmem:[%s1 + $0x98] sm:$0xf]
        %v572 = vld [vmem:[%s1 + $0x9c] sm:$0xf]
        %v574 = vunpack.c.l.b16 %v564
        %v575 = vpack.c.b16 %v493, %v574
        %v577 = vshrl.u32 %v575, 16
        %v579 = vrot.slane %v577, 1
        %v580 = vshll.u32 %v575, 16
        %v582 = vrot.slane %v580, 2
        %v583 = vor.u32 %v579, %v582
        %v592 = vunpack.c.l.b16 %v565
        %v593 = vunpack.c.l.b16 %v566
        %v594 = vunpack.c.l.b16 %v567
        %v595 = vunpack.c.l.b16 %v568
        %v596 = vunpack.c.l.b16 %v569
        %v597 = vunpack.c.l.b16 %v570
        %v598 = vunpack.c.l.b16 %v571
        %v599 = vunpack.c.l.b16 %v572
        %v600 = vpack.c.b16 %v593, %v592
        %v601 = vpack.c.b16 %v595, %v594
        %v602 = vpack.c.b16 %v597, %v596
        %v603 = vpack.c.b16 %v599, %v598
        %v609 = vsel %vm273, %v583, 0
        %611 = vmatprep.subr.bf16.mxu0 0
        %612 = vmatpush1.bf16.msra.mxu0 %v600
        %613 = vmatprep.subr.bf16.mxu0 0
        %614 = vmatpush1.bf16.msra.mxu0 %v601
        %615 = vmatprep.subr.bf16.mxu0 0
        %616 = vmatpush1.bf16.msra.mxu0 %v602
        %617 = vmatprep.subr.bf16.mxu0 0
        %618 = vmatpush1.bf16.msra.mxu0 %v603
        %619 = vmatprep.subr.bf16.mxu0 0
        %620 = vmatpush1.bf16.msra.mxu0 0
        %621 = vmatprep.subr.bf16.mxu0 0
        %622 = vmatpush1.bf16.msra.mxu0 0
        %623 = vmatprep.subr.bf16.mxu0 0
        %624 = vmatpush1.bf16.msra.mxu0 0
        %625 = vmatprep.subr.bf16.mxu0 0
        %626 = vmatpush1.bf16.msra.mxu0 0
        %627 = vmatprep.subr.bf16.mxu0 0
        %628 = vmatpush1.bf16.msra.mxu0 0
        %629 = vmatprep.subr.bf16.mxu0 0
        %630 = vmatpush1.bf16.msra.mxu0 0
        %631 = vmatprep.subr.bf16.mxu0 0
        %632 = vmatpush1.bf16.msra.mxu0 0
        %633 = vmatprep.subr.bf16.mxu0 0
        %634 = vmatpush1.bf16.msra.mxu0 0
        %635 = vmatprep.subr.bf16.mxu0 0
        %636 = vmatpush1.bf16.msra.mxu0 0
        %637 = vmatprep.subr.bf16.mxu0 0
        %638 = vmatpush1.bf16.msra.mxu0 0
        %639 = vmatprep.subr.bf16.mxu0 0
        %640 = vmatpush1.bf16.msra.mxu0 0
        %641 = vmatprep.subr.bf16.mxu0 0
        %642 = vmatpush1.bf16.msra.mxu0 0
        %643 = vmatprep.mubr.bf16.mxu0 0
        %644 = vmatmul.mubr.bf16.gmra.mrb[0].mxu0 %v609
        %v645 = vpop.f32.mrb[0].mxu0
        %v646 = vadd.f32 0.0, %v645
        %v647 = vpop.f32.mrb[0].mxu0
        %v648 = vpop.f32.mrb[0].mxu0
        %v649 = vpop.f32.mrb[0].mxu0
        %650 = vdwg.mxu0
        %v651 = vadd.f32 %v563, %v646
        %v652 = vld [vmem:[%s222 + $0x20] sm:$0x1]
        %v653 = vld [vmem:[%s1 + $0xa0] sm:$0xf]
        %v654 = vld [vmem:[%s1 + $0xa4] sm:$0xf]
        %v655 = vld [vmem:[%s1 + $0xa8] sm:$0xf]
        %v656 = vld [vmem:[%s1 + $0xac] sm:$0xf]
        %v657 = vld [vmem:[%s1 + $0xb0] sm:$0xf]
        %v658 = vld [vmem:[%s1 + $0xb4] sm:$0xf]
        %v659 = vld [vmem:[%s1 + $0xb8] sm:$0xf]
        %v660 = vld [vmem:[%s1 + $0xbc] sm:$0xf]
        %v662 = vunpack.c.l.b16 %v652
        %v663 = vpack.c.b16 %v662, %v574
        %v664 = vrot.slane %v663, 1
        %v673 = vunpack.c.l.b16 %v653
        %v674 = vunpack.c.l.b16 %v654
        %v675 = vunpack.c.l.b16 %v655
        %v676 = vunpack.c.l.b16 %v656
        %v677 = vunpack.c.l.b16 %v657
        %v678 = vunpack.c.l.b16 %v658
        %v679 = vunpack.c.l.b16 %v659
        %v680 = vunpack.c.l.b16 %v660
        %v681 = vpack.c.b16 %v674, %v673
        %v682 = vpack.c.b16 %v676, %v675
        %v683 = vpack.c.b16 %v678, %v677
        %v684 = vpack.c.b16 %v680, %v679
        %v690 = vsel %vm273, %v664, 0
        %692 = vmatprep.subr.bf16.mxu0 0
        %693 = vmatpush1.bf16.msra.mxu0 %v681
        %694 = vmatprep.subr.bf16.mxu0 0
        %695 = vmatpush1.bf16.msra.mxu0 %v682
        %696 = vmatprep.subr.bf16.mxu0 0
        %697 = vmatpush1.bf16.msra.mxu0 %v683
        %698 = vmatprep.subr.bf16.mxu0 0
        %699 = vmatpush1.bf16.msra.mxu0 %v684
        %700 = vmatprep.subr.bf16.mxu0 0
        %701 = vmatpush1.bf16.msra.mxu0 0
        %702 = vmatprep.subr.bf16.mxu0 0
        %703 = vmatpush1.bf16.msra.mxu0 0
        %704 = vmatprep.subr.bf16.mxu0 0
        %705 = vmatpush1.bf16.msra.mxu0 0
        %706 = vmatprep.subr.bf16.mxu0 0
        %707 = vmatpush1.bf16.msra.mxu0 0
        %708 = vmatprep.subr.bf16.mxu0 0
        %709 = vmatpush1.bf16.msra.mxu0 0
        %710 = vmatprep.subr.bf16.mxu0 0
        %711 = vmatpush1.bf16.msra.mxu0 0
        %712 = vmatprep.subr.bf16.mxu0 0
        %713 = vmatpush1.bf16.msra.mxu0 0
        %714 = vmatprep.subr.bf16.mxu0 0
        %715 = vmatpush1.bf16.msra.mxu0 0
        %716 = vmatprep.subr.bf16.mxu0 0
        %717 = vmatpush1.bf16.msra.mxu0 0
        %718 = vmatprep.subr.bf16.mxu0 0
        %719 = vmatpush1.bf16.msra.mxu0 0
        %720 = vmatprep.subr.bf16.mxu0 0
        %721 = vmatpush1.bf16.msra.mxu0 0
        %722 = vmatprep.subr.bf16.mxu0 0
        %723 = vmatpush1.bf16.msra.mxu0 0
        %724 = vmatprep.mubr.bf16.mxu0 0
        %725 = vmatmul.mubr.bf16.gmra.mrb[0].mxu0 %v690
        %v726 = vpop.f32.mrb[0].mxu0
        %v727 = vadd.f32 0.0, %v726
        %v728 = vpop.f32.mrb[0].mxu0
        %v729 = vpop.f32.mrb[0].mxu0
        %v730 = vpop.f32.mrb[0].mxu0
        %731 = vdwg.mxu0
        %v732 = vadd.f32 %v651, %v727
        %v733 = vld [vmem:[%s222 + $0x1c] sm:$0xf]
        %v734 = vld [vmem:[%s1 + $0xc0] sm:$0xf]
        %v735 = vld [vmem:[%s1 + $0xc4] sm:$0xf]
        %v736 = vld [vmem:[%s1 + $0xc8] sm:$0xf]
        %v737 = vld [vmem:[%s1 + $0xcc] sm:$0xf]
        %v738 = vld [vmem:[%s1 + $0xd0] sm:$0xf]
        %v739 = vld [vmem:[%s1 + $0xd4] sm:$0xf]
        %v740 = vld [vmem:[%s1 + $0xd8] sm:$0xf]
        %v741 = vld [vmem:[%s1 + $0xdc] sm:$0xf]
        %v743 = vunpack.c.l.b16 %v733
        %v744 = vpack.c.b16 %v662, %v743
        %v746 = vshrl.u32 %v744, 16
        %v748 = vshll.u32 %v744, 16
        %v750 = vrot.slane %v748, 1
        %v751 = vor.u32 %v746, %v750
        %v760 = vunpack.c.l.b16 %v734
        %v761 = vunpack.c.l.b16 %v735
        %v762 = vunpack.c.l.b16 %v736
        %v763 = vunpack.c.l.b16 %v737
        %v764 = vunpack.c.l.b16 %v738
        %v765 = vunpack.c.l.b16 %v739
        %v766 = vunpack.c.l.b16 %v740
        %v767 = vunpack.c.l.b16 %v741
        %v768 = vpack.c.b16 %v761, %v760
        %v769 = vpack.c.b16 %v763, %v762
        %v770 = vpack.c.b16 %v765, %v764
        %v771 = vpack.c.b16 %v767, %v766
        %v777 = vsel %vm273, %v751, 0
        %779 = vmatprep.subr.bf16.mxu0 0
        %780 = vmatpush1.bf16.msra.mxu0 %v768
        %781 = vmatprep.subr.bf16.mxu0 0
        %782 = vmatpush1.bf16.msra.mxu0 %v769
        %783 = vmatprep.subr.bf16.mxu0 0
        %784 = vmatpush1.bf16.msra.mxu0 %v770
        %785 = vmatprep.subr.bf16.mxu0 0
        %786 = vmatpush1.bf16.msra.mxu0 %v771
        %787 = vmatprep.subr.bf16.mxu0 0
        %788 = vmatpush1.bf16.msra.mxu0 0
        %789 = vmatprep.subr.bf16.mxu0 0
        %790 = vmatpush1.bf16.msra.mxu0 0
        %791 = vmatprep.subr.bf16.mxu0 0
        %792 = vmatpush1.bf16.msra.mxu0 0
        %793 = vmatprep.subr.bf16.mxu0 0
        %794 = vmatpush1.bf16.msra.mxu0 0
        %795 = vmatprep.subr.bf16.mxu0 0
        %796 = vmatpush1.bf16.msra.mxu0 0
        %797 = vmatprep.subr.bf16.mxu0 0
        %798 = vmatpush1.bf16.msra.mxu0 0
        %799 = vmatprep.subr.bf16.mxu0 0
        %800 = vmatpush1.bf16.msra.mxu0 0
        %801 = vmatprep.subr.bf16.mxu0 0
        %802 = vmatpush1.bf16.msra.mxu0 0
        %803 = vmatprep.subr.bf16.mxu0 0
        %804 = vmatpush1.bf16.msra.mxu0 0
        %805 = vmatprep.subr.bf16.mxu0 0
        %806 = vmatpush1.bf16.msra.mxu0 0
        %807 = vmatprep.subr.bf16.mxu0 0
        %808 = vmatpush1.bf16.msra.mxu0 0
        %809 = vmatprep.subr.bf16.mxu0 0
        %810 = vmatpush1.bf16.msra.mxu0 0
        %811 = vmatprep.mubr.bf16.mxu0 0
        %812 = vmatmul.mubr.bf16.gmra.mrb[0].mxu0 %v777
        %v813 = vpop.f32.mrb[0].mxu0
        %v814 = vadd.f32 0.0, %v813
        %v815 = vpop.f32.mrb[0].mxu0
        %v816 = vpop.f32.mrb[0].mxu0
        %v817 = vpop.f32.mrb[0].mxu0
        %818 = vdwg.mxu0
        %v819 = vadd.f32 %v732, %v814
        %v820 = vld [vmem:[%s222 + $0x1c] sm:$0xf]
        %v821 = vld [vmem:[%s1 + $0xe0] sm:$0xf]
        %v822 = vld [vmem:[%s1 + $0xe4] sm:$0xf]
        %v823 = vld [vmem:[%s1 + $0xe8] sm:$0xf]
        %v824 = vld [vmem:[%s1 + $0xec] sm:$0xf]
        %v825 = vld [vmem:[%s1 + $0xf0] sm:$0xf]
        %v826 = vld [vmem:[%s1 + $0xf4] sm:$0xf]
        %v827 = vld [vmem:[%s1 + $0xf8] sm:$0xf]
        %v828 = vld [vmem:[%s1 + $0xfc] sm:$0xf]
        %v837 = vunpack.c.l.b16 %v821
        %v838 = vunpack.c.l.b16 %v822
        %v839 = vunpack.c.l.b16 %v823
        %v840 = vunpack.c.l.b16 %v824
        %v841 = vunpack.c.l.b16 %v825
        %v842 = vunpack.c.l.b16 %v826
        %v843 = vunpack.c.l.b16 %v827
        %v844 = vunpack.c.l.b16 %v828
        %v845 = vpack.c.b16 %v838, %v837
        %v846 = vpack.c.b16 %v840, %v839
        %v847 = vpack.c.b16 %v842, %v841
        %v848 = vpack.c.b16 %v844, %v843
        %v854 = vsel %vm273, %v820, 0
        %856 = vmatprep.subr.bf16.mxu0 0
        %857 = vmatpush1.bf16.msra.mxu0 %v845
        %858 = vmatprep.subr.bf16.mxu0 0
        %859 = vmatpush1.bf16.msra.mxu0 %v846
        %860 = vmatprep.subr.bf16.mxu0 0
        %861 = vmatpush1.bf16.msra.mxu0 %v847
        %862 = vmatprep.subr.bf16.mxu0 0
        %863 = vmatpush1.bf16.msra.mxu0 %v848
        %864 = vmatprep.subr.bf16.mxu0 0
        %865 = vmatpush1.bf16.msra.mxu0 0
        %866 = vmatprep.subr.bf16.mxu0 0
        %867 = vmatpush1.bf16.msra.mxu0 0
        %868 = vmatprep.subr.bf16.mxu0 0
        %869 = vmatpush1.bf16.msra.mxu0 0
        %870 = vmatprep.subr.bf16.mxu0 0
        %871 = vmatpush1.bf16.msra.mxu0 0
        %872 = vmatprep.subr.bf16.mxu0 0
        %873 = vmatpush1.bf16.msra.mxu0 0
        %874 = vmatprep.subr.bf16.mxu0 0
        %875 = vmatpush1.bf16.msra.mxu0 0
        %876 = vmatprep.subr.bf16.mxu0 0
        %877 = vmatpush1.bf16.msra.mxu0 0
        %878 = vmatprep.subr.bf16.mxu0 0
        %879 = vmatpush1.bf16.msra.mxu0 0
        %880 = vmatprep.subr.bf16.mxu0 0
        %881 = vmatpush1.bf16.msra.mxu0 0
        %882 = vmatprep.subr.bf16.mxu0 0
        %883 = vmatpush1.bf16.msra.mxu0 0
        %884 = vmatprep.subr.bf16.mxu0 0
        %885 = vmatpush1.bf16.msra.mxu0 0
        %886 = vmatprep.subr.bf16.mxu0 0
        %887 = vmatpush1.bf16.msra.mxu0 0
        %888 = vmatprep.mubr.bf16.mxu0 0
        %889 = vmatmul.mubr.bf16.gmra.mrb[0].mxu0 %v854
        %v890 = vpop.f32.mrb[0].mxu0
        %v891 = vadd.f32 0.0, %v890
        %v892 = vpop.f32.mrb[0].mxu0
        %v893 = vpop.f32.mrb[0].mxu0
        %v894 = vpop.f32.mrb[0].mxu0
        %895 = vdwg.mxu0
        %v896 = vadd.f32 %v819, %v891
        %v897 = vld [vmem:[%s222 + $0x18] sm:$0x8]
        %v898 = vld [vmem:[%s1 + $0x100] sm:$0xf]
        %v899 = vld [vmem:[%s1 + $0x104] sm:$0xf]
        %v900 = vld [vmem:[%s1 + $0x108] sm:$0xf]
        %v901 = vld [vmem:[%s1 + $0x10c] sm:$0xf]
        %v902 = vld [vmem:[%s1 + $0x110] sm:$0xf]
        %v903 = vld [vmem:[%s1 + $0x114] sm:$0xf]
        %v904 = vld [vmem:[%s1 + $0x118] sm:$0xf]
        %v905 = vld [vmem:[%s1 + $0x11c] sm:$0xf]
        %v908 = vunpack.c.l.b16 %v897
        %v909 = vunpack.c.l.b16 %v820
        %v910 = vpack.c.b16 %v909, %v908
        %v912 = vshrl.u32 %v910, 16
        %v914 = vrot.slane %v912, 3
        %v915 = vshll.u32 %v910, 16
        %v917 = vrot.slane %v915, 4
        %v918 = vor.u32 %v914, %v917
        %v927 = vunpack.c.l.b16 %v898
        %v928 = vunpack.c.l.b16 %v899
        %v929 = vunpack.c.l.b16 %v900
        %v930 = vunpack.c.l.b16 %v901
        %v931 = vunpack.c.l.b16 %v902
        %v932 = vunpack.c.l.b16 %v903
        %v933 = vunpack.c.l.b16 %v904
        %v934 = vunpack.c.l.b16 %v905
        %v935 = vpack.c.b16 %v928, %v927
        %v936 = vpack.c.b16 %v930, %v929
        %v937 = vpack.c.b16 %v932, %v931
        %v938 = vpack.c.b16 %v934, %v933
        %v944 = vsel %vm273, %v918, 0
        %946 = vmatprep.subr.bf16.mxu0 0
        %947 = vmatpush1.bf16.msra.mxu0 %v935
        %948 = vmatprep.subr.bf16.mxu0 0
        %949 = vmatpush1.bf16.msra.mxu0 %v936
        %950 = vmatprep.subr.bf16.mxu0 0
        %951 = vmatpush1.bf16.msra.mxu0 %v937
        %952 = vmatprep.subr.bf16.mxu0 0
        %953 = vmatpush1.bf16.msra.mxu0 %v938
        %954 = vmatprep.subr.bf16.mxu0 0
        %955 = vmatpush1.bf16.msra.mxu0 0
        %956 = vmatprep.subr.bf16.mxu0 0
        %957 = vmatpush1.bf16.msra.mxu0 0
        %958 = vmatprep.subr.bf16.mxu0 0
        %959 = vmatpush1.bf16.msra.mxu0 0
        %960 = vmatprep.subr.bf16.mxu0 0
        %961 = vmatpush1.bf16.msra.mxu0 0
        %962 = vmatprep.subr.bf16.mxu0 0
        %963 = vmatpush1.bf16.msra.mxu0 0
        %964 = vmatprep.subr.bf16.mxu0 0
        %965 = vmatpush1.bf16.msra.mxu0 0
        %966 = vmatprep.subr.bf16.mxu0 0
        %967 = vmatpush1.bf16.msra.mxu0 0
        %968 = vmatprep.subr.bf16.mxu0 0
        %969 = vmatpush1.bf16.msra.mxu0 0
        %970 = vmatprep.subr.bf16.mxu0 0
        %971 = vmatpush1.bf16.msra.mxu0 0
        %972 = vmatprep.subr.bf16.mxu0 0
        %973 = vmatpush1.bf16.msra.mxu0 0
        %974 = vmatprep.subr.bf16.mxu0 0
        %975 = vmatpush1.bf16.msra.mxu0 0
        %976 = vmatprep.subr.bf16.mxu0 0
        %977 = vmatpush1.bf16.msra.mxu0 0
        %978 = vmatprep.mubr.bf16.mxu0 0
        %979 = vmatmul.mubr.bf16.gmra.mrb[0].mxu0 %v944
        %v980 = vpop.f32.mrb[0].mxu0
        %v981 = vadd.f32 0.0, %v980
        %v982 = vpop.f32.mrb[0].mxu0
        %v983 = vpop.f32.mrb[0].mxu0
        %v984 = vpop.f32.mrb[0].mxu0
        %985 = vdwg.mxu0
        %v986 = vadd.f32 %v896, %v981
        %v987 = vld [vmem:[%s222 + $0x1c] sm:$0x7]
        %v988 = vld [vmem:[%s1 + $0x120] sm:$0xf]
        %v989 = vld [vmem:[%s1 + $0x124] sm:$0xf]
        %v990 = vld [vmem:[%s1 + $0x128] sm:$0xf]
        %v991 = vld [vmem:[%s1 + $0x12c] sm:$0xf]
        %v992 = vld [vmem:[%s1 + $0x130] sm:$0xf]
        %v993 = vld [vmem:[%s1 + $0x134] sm:$0xf]
        %v994 = vld [vmem:[%s1 + $0x138] sm:$0xf]
        %v995 = vld [vmem:[%s1 + $0x13c] sm:$0xf]
        %v997 = vunpack.c.l.b16 %v987
        %v998 = vpack.c.b16 %v997, %v908
        %v999 = vrot.slane %v998, 3
        %v1008 = vunpack.c.l.b16 %v988
        %v1009 = vunpack.c.l.b16 %v989
        %v1010 = vunpack.c.l.b16 %v990
        %v1011 = vunpack.c.l.b16 %v991
        %v1012 = vunpack.c.l.b16 %v992
        %v1013 = vunpack.c.l.b16 %v993
        %v1014 = vunpack.c.l.b16 %v994
        %v1015 = vunpack.c.l.b16 %v995
        %v1016 = vpack.c.b16 %v1009, %v1008
        %v1017 = vpack.c.b16 %v1011, %v1010
        %v1018 = vpack.c.b16 %v1013, %v1012
        %v1019 = vpack.c.b16 %v1015, %v1014
        %v1025 = vsel %vm273, %v999, 0
        %1027 = vmatprep.subr.bf16.mxu0 0
        %1028 = vmatpush1.bf16.msra.mxu0 %v1016
        %1029 = vmatprep.subr.bf16.mxu0 0
        %1030 = vmatpush1.bf16.msra.mxu0 %v1017
        %1031 = vmatprep.subr.bf16.mxu0 0
        %1032 = vmatpush1.bf16.msra.mxu0 %v1018
        %1033 = vmatprep.subr.bf16.mxu0 0
        %1034 = vmatpush1.bf16.msra.mxu0 %v1019
        %1035 = vmatprep.subr.bf16.mxu0 0
        %1036 = vmatpush1.bf16.msra.mxu0 0
        %1037 = vmatprep.subr.bf16.mxu0 0
        %1038 = vmatpush1.bf16.msra.mxu0 0
        %1039 = vmatprep.subr.bf16.mxu0 0
        %1040 = vmatpush1.bf16.msra.mxu0 0
        %1041 = vmatprep.subr.bf16.mxu0 0
        %1042 = vmatpush1.bf16.msra.mxu0 0
        %1043 = vmatprep.subr.bf16.mxu0 0
        %1044 = vmatpush1.bf16.msra.mxu0 0
        %1045 = vmatprep.subr.bf16.mxu0 0
        %1046 = vmatpush1.bf16.msra.mxu0 0
        %1047 = vmatprep.subr.bf16.mxu0 0
        %1048 = vmatpush1.bf16.msra.mxu0 0
        %1049 = vmatprep.subr.bf16.mxu0 0
        %1050 = vmatpush1.bf16.msra.mxu0 0
        %1051 = vmatprep.subr.bf16.mxu0 0
        %1052 = vmatpush1.bf16.msra.mxu0 0
        %1053 = vmatprep.subr.bf16.mxu0 0
        %1054 = vmatpush1.bf16.msra.mxu0 0
        %1055 = vmatprep.subr.bf16.mxu0 0
        %1056 = vmatpush1.bf16.msra.mxu0 0
        %1057 = vmatprep.subr.bf16.mxu0 0
        %1058 = vmatpush1.bf16.msra.mxu0 0
        %1059 = vmatprep.mubr.bf16.mxu0 0
        %1060 = vmatmul.mubr.bf16.gmra.mrb[0].mxu0 %v1025
        %v1061 = vpop.f32.mrb[0].mxu0
        %v1062 = vadd.f32 0.0, %v1061
        %v1063 = vpop.f32.mrb[0].mxu0
        %v1064 = vpop.f32.mrb[0].mxu0
        %v1065 = vpop.f32.mrb[0].mxu0
        %1066 = vdwg.mxu0
        %v1067 = vadd.f32 %v986, %v1062
        %v1068 = vld [vmem:[%s222 + $0x18] sm:$0xc]
        %v1069 = vld [vmem:[%s1 + $0x140] sm:$0xf]
        %v1070 = vld [vmem:[%s1 + $0x144] sm:$0xf]
        %v1071 = vld [vmem:[%s1 + $0x148] sm:$0xf]
        %v1072 = vld [vmem:[%s1 + $0x14c] sm:$0xf]
        %v1073 = vld [vmem:[%s1 + $0x150] sm:$0xf]
        %v1074 = vld [vmem:[%s1 + $0x154] sm:$0xf]
        %v1075 = vld [vmem:[%s1 + $0x158] sm:$0xf]
        %v1076 = vld [vmem:[%s1 + $0x15c] sm:$0xf]
        %v1078 = vunpack.c.l.b16 %v1068
        %v1079 = vpack.c.b16 %v997, %v1078
        %v1081 = vshrl.u32 %v1079, 16
        %v1083 = vrot.slane %v1081, 2
        %v1084 = vshll.u32 %v1079, 16
        %v1086 = vrot.slane %v1084, 3
        %v1087 = vor.u32 %v1083, %v1086
        %v1096 = vunpack.c.l.b16 %v1069
        %v1097 = vunpack.c.l.b16 %v1070
        %v1098 = vunpack.c.l.b16 %v1071
        %v1099 = vunpack.c.l.b16 %v1072
        %v1100 = vunpack.c.l.b16 %v1073
        %v1101 = vunpack.c.l.b16 %v1074
        %v1102 = vunpack.c.l.b16 %v1075
        %v1103 = vunpack.c.l.b16 %v1076
        %v1104 = vpack.c.b16 %v1097, %v1096
        %v1105 = vpack.c.b16 %v1099, %v1098
        %v1106 = vpack.c.b16 %v1101, %v1100
        %v1107 = vpack.c.b16 %v1103, %v1102
        %v1113 = vsel %vm273, %v1087, 0
        %1115 = vmatprep.subr.bf16.mxu0 0
        %1116 = vmatpush1.bf16.msra.mxu0 %v1104
        %1117 = vmatprep.subr.bf16.mxu0 0
        %1118 = vmatpush1.bf16.msra.mxu0 %v1105
        %1119 = vmatprep.subr.bf16.mxu0 0
        %1120 = vmatpush1.bf16.msra.mxu0 %v1106
        %1121 = vmatprep.subr.bf16.mxu0 0
        %1122 = vmatpush1.bf16.msra.mxu0 %v1107
        %1123 = vmatprep.subr.bf16.mxu0 0
        %1124 = vmatpush1.bf16.msra.mxu0 0
        %1125 = vmatprep.subr.bf16.mxu0 0
        %1126 = vmatpush1.bf16.msra.mxu0 0
        %1127 = vmatprep.subr.bf16.mxu0 0
        %1128 = vmatpush1.bf16.msra.mxu0 0
        %1129 = vmatprep.subr.bf16.mxu0 0
        %1130 = vmatpush1.bf16.msra.mxu0 0
        %1131 = vmatprep.subr.bf16.mxu0 0
        %1132 = vmatpush1.bf16.msra.mxu0 0
        %1133 = vmatprep.subr.bf16.mxu0 0
        %1134 = vmatpush1.bf16.msra.mxu0 0
        %1135 = vmatprep.subr.bf16.mxu0 0
        %1136 = vmatpush1.bf16.msra.mxu0 0
        %1137 = vmatprep.subr.bf16.mxu0 0
        %1138 = vmatpush1.bf16.msra.mxu0 0
        %1139 = vmatprep.subr.bf16.mxu0 0
        %1140 = vmatpush1.bf16.msra.mxu0 0
        %1141 = vmatprep.subr.bf16.mxu0 0
        %1142 = vmatpush1.bf16.msra.mxu0 0
        %1143 = vmatprep.subr.bf16.mxu0 0
        %1144 = vmatpush1.bf16.msra.mxu0 0
        %1145 = vmatprep.subr.bf16.mxu0 0
        %1146 = vmatpush1.bf16.msra.mxu0 0
        %1147 = vmatprep.mubr.bf16.mxu0 0
        %1148 = vmatmul.mubr.bf16.gmra.mrb[0].mxu0 %v1113
        %v1149 = vpop.f32.mrb[0].mxu0
        %v1150 = vadd.f32 0.0, %v1149
        %v1151 = vpop.f32.mrb[0].mxu0
        %v1152 = vpop.f32.mrb[0].mxu0
        %v1153 = vpop.f32.mrb[0].mxu0
        %1154 = vdwg.mxu0
        %v1155 = vadd.f32 %v1067, %v1150
        %v1156 = vld [vmem:[%s222 + $0x1c] sm:$0x3]
        %v1157 = vld [vmem:[%s1 + $0x160] sm:$0xf]
        %v1158 = vld [vmem:[%s1 + $0x164] sm:$0xf]
        %v1159 = vld [vmem:[%s1 + $0x168] sm:$0xf]
        %v1160 = vld [vmem:[%s1 + $0x16c] sm:$0xf]
        %v1161 = vld [vmem:[%s1 + $0x170] sm:$0xf]
        %v1162 = vld [vmem:[%s1 + $0x174] sm:$0xf]
        %v1163 = vld [vmem:[%s1 + $0x178] sm:$0xf]
        %v1164 = vld [vmem:[%s1 + $0x17c] sm:$0xf]
        %v1166 = vunpack.c.l.b16 %v1156
        %v1167 = vpack.c.b16 %v1166, %v1078
        %v1168 = vrot.slane %v1167, 2
        %v1177 = vunpack.c.l.b16 %v1157
        %v1178 = vunpack.c.l.b16 %v1158
        %v1179 = vunpack.c.l.b16 %v1159
        %v1180 = vunpack.c.l.b16 %v1160
        %v1181 = vunpack.c.l.b16 %v1161
        %v1182 = vunpack.c.l.b16 %v1162
        %v1183 = vunpack.c.l.b16 %v1163
        %v1184 = vunpack.c.l.b16 %v1164
        %v1185 = vpack.c.b16 %v1178, %v1177
        %v1186 = vpack.c.b16 %v1180, %v1179
        %v1187 = vpack.c.b16 %v1182, %v1181
        %v1188 = vpack.c.b16 %v1184, %v1183
        %v1194 = vsel %vm273, %v1168, 0
        %1196 = vmatprep.subr.bf16.mxu0 0
        %1197 = vmatpush1.bf16.msra.mxu0 %v1185
        %1198 = vmatprep.subr.bf16.mxu0 0
        %1199 = vmatpush1.bf16.msra.mxu0 %v1186
        %1200 = vmatprep.subr.bf16.mxu0 0
        %1201 = vmatpush1.bf16.msra.mxu0 %v1187
        %1202 = vmatprep.subr.bf16.mxu0 0
        %1203 = vmatpush1.bf16.msra.mxu0 %v1188
        %1204 = vmatprep.subr.bf16.mxu0 0
        %1205 = vmatpush1.bf16.msra.mxu0 0
        %1206 = vmatprep.subr.bf16.mxu0 0
        %1207 = vmatpush1.bf16.msra.mxu0 0
        %1208 = vmatprep.subr.bf16.mxu0 0
        %1209 = vmatpush1.bf16.msra.mxu0 0
        %1210 = vmatprep.subr.bf16.mxu0 0
        %1211 = vmatpush1.bf16.msra.mxu0 0
        %1212 = vmatprep.subr.bf16.mxu0 0
        %1213 = vmatpush1.bf16.msra.mxu0 0
        %1214 = vmatprep.subr.bf16.mxu0 0
        %1215 = vmatpush1.bf16.msra.mxu0 0
        %1216 = vmatprep.subr.bf16.mxu0 0
        %1217 = vmatpush1.bf16.msra.mxu0 0
        %1218 = vmatprep.subr.bf16.mxu0 0
        %1219 = vmatpush1.bf16.msra.mxu0 0
        %1220 = vmatprep.subr.bf16.mxu0 0
        %1221 = vmatpush1.bf16.msra.mxu0 0
        %1222 = vmatprep.subr.bf16.mxu0 0
        %1223 = vmatpush1.bf16.msra.mxu0 0
        %1224 = vmatprep.subr.bf16.mxu0 0
        %1225 = vmatpush1.bf16.msra.mxu0 0
        %1226 = vmatprep.subr.bf16.mxu0 0
        %1227 = vmatpush1.bf16.msra.mxu0 0
        %1228 = vmatprep.mubr.bf16.mxu0 0
        %1229 = vmatmul.mubr.bf16.gmra.mrb[0].mxu0 %v1194
        %v1230 = vpop.f32.mrb[0].mxu0
        %v1231 = vadd.f32 0.0, %v1230
        %v1232 = vpop.f32.mrb[0].mxu0
        %v1233 = vpop.f32.mrb[0].mxu0
        %v1234 = vpop.f32.mrb[0].mxu0
        %1235 = vdwg.mxu0
        %v1236 = vadd.f32 %v1155, %v1231
        %v1237 = vld [vmem:[%s222 + $0x18] sm:$0xe]
        %v1238 = vld [vmem:[%s1 + $0x180] sm:$0xf]
        %v1239 = vld [vmem:[%s1 + $0x184] sm:$0xf]
        %v1240 = vld [vmem:[%s1 + $0x188] sm:$0xf]
        %v1241 = vld [vmem:[%s1 + $0x18c] sm:$0xf]
        %v1242 = vld [vmem:[%s1 + $0x190] sm:$0xf]
        %v1243 = vld [vmem:[%s1 + $0x194] sm:$0xf]
        %v1244 = vld [vmem:[%s1 + $0x198] sm:$0xf]
        %v1245 = vld [vmem:[%s1 + $0x19c] sm:$0xf]
        %v1247 = vunpack.c.l.b16 %v1237
        %v1248 = vpack.c.b16 %v1166, %v1247
        %v1250 = vshrl.u32 %v1248, 16
        %v1252 = vrot.slane %v1250, 1
        %v1253 = vshll.u32 %v1248, 16
        %v1255 = vrot.slane %v1253, 2
        %v1256 = vor.u32 %v1252, %v1255
        %v1265 = vunpack.c.l.b16 %v1238
        %v1266 = vunpack.c.l.b16 %v1239
        %v1267 = vunpack.c.l.b16 %v1240
        %v1268 = vunpack.c.l.b16 %v1241
        %v1269 = vunpack.c.l.b16 %v1242
        %v1270 = vunpack.c.l.b16 %v1243
        %v1271 = vunpack.c.l.b16 %v1244
        %v1272 = vunpack.c.l.b16 %v1245
        %v1273 = vpack.c.b16 %v1266, %v1265
        %v1274 = vpack.c.b16 %v1268, %v1267
        %v1275 = vpack.c.b16 %v1270, %v1269
        %v1276 = vpack.c.b16 %v1272, %v1271
        %v1282 = vsel %vm273, %v1256, 0
        %1284 = vmatprep.subr.bf16.mxu0 0
        %1285 = vmatpush1.bf16.msra.mxu0 %v1273
        %1286 = vmatprep.subr.bf16.mxu0 0
        %1287 = vmatpush1.bf16.msra.mxu0 %v1274
        %1288 = vmatprep.subr.bf16.mxu0 0
        %1289 = vmatpush1.bf16.msra.mxu0 %v1275
        %1290 = vmatprep.subr.bf16.mxu0 0
        %1291 = vmatpush1.bf16.msra.mxu0 %v1276
        %1292 = vmatprep.subr.bf16.mxu0 0
        %1293 = vmatpush1.bf16.msra.mxu0 0
        %1294 = vmatprep.subr.bf16.mxu0 0
        %1295 = vmatpush1.bf16.msra.mxu0 0
        %1296 = vmatprep.subr.bf16.mxu0 0
        %1297 = vmatpush1.bf16.msra.mxu0 0
        %1298 = vmatprep.subr.bf16.mxu0 0
        %1299 = vmatpush1.bf16.msra.mxu0 0
        %1300 = vmatprep.subr.bf16.mxu0 0
        %1301 = vmatpush1.bf16.msra.mxu0 0
        %1302 = vmatprep.subr.bf16.mxu0 0
        %1303 = vmatpush1.bf16.msra.mxu0 0
        %1304 = vmatprep.subr.bf16.mxu0 0
        %1305 = vmatpush1.bf16.msra.mxu0 0
        %1306 = vmatprep.subr.bf16.mxu0 0
        %1307 = vmatpush1.bf16.msra.mxu0 0
        %1308 = vmatprep.subr.bf16.mxu0 0
        %1309 = vmatpush1.bf16.msra.mxu0 0
        %1310 = vmatprep.subr.bf16.mxu0 0
        %1311 = vmatpush1.bf16.msra.mxu0 0
        %1312 = vmatprep.subr.bf16.mxu0 0
        %1313 = vmatpush1.bf16.msra.mxu0 0
        %1314 = vmatprep.subr.bf16.mxu0 0
        %1315 = vmatpush1.bf16.msra.mxu0 0
        %1316 = vmatprep.mubr.bf16.mxu0 0
        %1317 = vmatmul.mubr.bf16.gmra.mrb[0].mxu0 %v1282
        %v1318 = vpop.f32.mrb[0].mxu0
        %v1319 = vadd.f32 0.0, %v1318
        %v1320 = vpop.f32.mrb[0].mxu0
        %v1321 = vpop.f32.mrb[0].mxu0
        %v1322 = vpop.f32.mrb[0].mxu0
        %1323 = vdwg.mxu0
        %v1324 = vadd.f32 %v1236, %v1319
        %v1325 = vld [vmem:[%s222 + $0x1c] sm:$0x1]
        %v1326 = vld [vmem:[%s1 + $0x1a0] sm:$0xf]
        %v1327 = vld [vmem:[%s1 + $0x1a4] sm:$0xf]
        %v1328 = vld [vmem:[%s1 + $0x1a8] sm:$0xf]
        %v1329 = vld [vmem:[%s1 + $0x1ac] sm:$0xf]
        %v1330 = vld [vmem:[%s1 + $0x1b0] sm:$0xf]
        %v1331 = vld [vmem:[%s1 + $0x1b4] sm:$0xf]
        %v1332 = vld [vmem:[%s1 + $0x1b8] sm:$0xf]
        %v1333 = vld [vmem:[%s1 + $0x1bc] sm:$0xf]
        %v1335 = vunpack.c.l.b16 %v1325
        %v1336 = vpack.c.b16 %v1335, %v1247
        %v1337 = vrot.slane %v1336, 1
        %v1346 = vunpack.c.l.b16 %v1326
        %v1347 = vunpack.c.l.b16 %v1327
        %v1348 = vunpack.c.l.b16 %v1328
        %v1349 = vunpack.c.l.b16 %v1329
        %v1350 = vunpack.c.l.b16 %v1330
        %v1351 = vunpack.c.l.b16 %v1331
        %v1352 = vunpack.c.l.b16 %v1332
        %v1353 = vunpack.c.l.b16 %v1333
        %v1354 = vpack.c.b16 %v1347, %v1346
        %v1355 = vpack.c.b16 %v1349, %v1348
        %v1356 = vpack.c.b16 %v1351, %v1350
        %v1357 = vpack.c.b16 %v1353, %v1352
        %v1363 = vsel %vm273, %v1337, 0
        %1365 = vmatprep.subr.bf16.mxu0 0
        %1366 = vmatpush1.bf16.msra.mxu0 %v1354
        %1367 = vmatprep.subr.bf16.mxu0 0
        %1368 = vmatpush1.bf16.msra.mxu0 %v1355
        %1369 = vmatprep.subr.bf16.mxu0 0
        %1370 = vmatpush1.bf16.msra.mxu0 %v1356
        %1371 = vmatprep.subr.bf16.mxu0 0
        %1372 = vmatpush1.bf16.msra.mxu0 %v1357
        %1373 = vmatprep.subr.bf16.mxu0 0
        %1374 = vmatpush1.bf16.msra.mxu0 0
        %1375 = vmatprep.subr.bf16.mxu0 0
        %1376 = vmatpush1.bf16.msra.mxu0 0
        %1377 = vmatprep.subr.bf16.mxu0 0
        %1378 = vmatpush1.bf16.msra.mxu0 0
        %1379 = vmatprep.subr.bf16.mxu0 0
        %1380 = vmatpush1.bf16.msra.mxu0 0
        %1381 = vmatprep.subr.bf16.mxu0 0
        %1382 = vmatpush1.bf16.msra.mxu0 0
        %1383 = vmatprep.subr.bf16.mxu0 0
        %1384 = vmatpush1.bf16.msra.mxu0 0
        %1385 = vmatprep.subr.bf16.mxu0 0
        %1386 = vmatpush1.bf16.msra.mxu0 0
        %1387 = vmatprep.subr.bf16.mxu0 0
        %1388 = vmatpush1.bf16.msra.mxu0 0
        %1389 = vmatprep.subr.bf16.mxu0 0
        %1390 = vmatpush1.bf16.msra.mxu0 0
        %1391 = vmatprep.subr.bf16.mxu0 0
        %1392 = vmatpush1.bf16.msra.mxu0 0
        %1393 = vmatprep.subr.bf16.mxu0 0
        %1394 = vmatpush1.bf16.msra.mxu0 0
        %1395 = vmatprep.subr.bf16.mxu0 0
        %1396 = vmatpush1.bf16.msra.mxu0 0
        %1397 = vmatprep.mubr.bf16.mxu0 0
        %1398 = vmatmul.mubr.bf16.gmra.mrb[0].mxu0 %v1363
        %v1399 = vpop.f32.mrb[0].mxu0
        %v1400 = vadd.f32 0.0, %v1399
        %v1401 = vpop.f32.mrb[0].mxu0
        %v1402 = vpop.f32.mrb[0].mxu0
        %v1403 = vpop.f32.mrb[0].mxu0
        %1404 = vdwg.mxu0
        %v1405 = vadd.f32 %v1324, %v1400
        %v1406 = vld [vmem:[%s222 + $0x18] sm:$0xf]
        %v1407 = vld [vmem:[%s1 + $0x1c0] sm:$0xf]
        %v1408 = vld [vmem:[%s1 + $0x1c4] sm:$0xf]
        %v1409 = vld [vmem:[%s1 + $0x1c8] sm:$0xf]
        %v1410 = vld [vmem:[%s1 + $0x1cc] sm:$0xf]
        %v1411 = vld [vmem:[%s1 + $0x1d0] sm:$0xf]
        %v1412 = vld [vmem:[%s1 + $0x1d4] sm:$0xf]
        %v1413 = vld [vmem:[%s1 + $0x1d8] sm:$0xf]
        %v1414 = vld [vmem:[%s1 + $0x1dc] sm:$0xf]
        %v1416 = vunpack.c.l.b16 %v1406
        %v1417 = vpack.c.b16 %v1335, %v1416
        %v1419 = vshrl.u32 %v1417, 16
        %v1421 = vshll.u32 %v1417, 16
        %v1423 = vrot.slane %v1421, 1
        %v1424 = vor.u32 %v1419, %v1423
        %v1433 = vunpack.c.l.b16 %v1407
        %v1434 = vunpack.c.l.b16 %v1408
        %v1435 = vunpack.c.l.b16 %v1409
        %v1436 = vunpack.c.l.b16 %v1410
        %v1437 = vunpack.c.l.b16 %v1411
        %v1438 = vunpack.c.l.b16 %v1412
        %v1439 = vunpack.c.l.b16 %v1413
        %v1440 = vunpack.c.l.b16 %v1414
        %v1441 = vpack.c.b16 %v1434, %v1433
        %v1442 = vpack.c.b16 %v1436, %v1435
        %v1443 = vpack.c.b16 %v1438, %v1437
        %v1444 = vpack.c.b16 %v1440, %v1439
        %v1450 = vsel %vm273, %v1424, 0
        %1452 = vmatprep.subr.bf16.mxu0 0
        %1453 = vmatpush1.bf16.msra.mxu0 %v1441
        %1454 = vmatprep.subr.bf16.mxu0 0
        %1455 = vmatpush1.bf16.msra.mxu0 %v1442
        %1456 = vmatprep.subr.bf16.mxu0 0
        %1457 = vmatpush1.bf16.msra.mxu0 %v1443
        %1458 = vmatprep.subr.bf16.mxu0 0
        %1459 = vmatpush1.bf16.msra.mxu0 %v1444
        %1460 = vmatprep.subr.bf16.mxu0 0
        %1461 = vmatpush1.bf16.msra.mxu0 0
        %1462 = vmatprep.subr.bf16.mxu0 0
        %1463 = vmatpush1.bf16.msra.mxu0 0
        %1464 = vmatprep.subr.bf16.mxu0 0
        %1465 = vmatpush1.bf16.msra.mxu0 0
        %1466 = vmatprep.subr.bf16.mxu0 0
        %1467 = vmatpush1.bf16.msra.mxu0 0
        %1468 = vmatprep.subr.bf16.mxu0 0
        %1469 = vmatpush1.bf16.msra.mxu0 0
        %1470 = vmatprep.subr.bf16.mxu0 0
        %1471 = vmatpush1.bf16.msra.mxu0 0
        %1472 = vmatprep.subr.bf16.mxu0 0
        %1473 = vmatpush1.bf16.msra.mxu0 0
        %1474 = vmatprep.subr.bf16.mxu0 0
        %1475 = vmatpush1.bf16.msra.mxu0 0
        %1476 = vmatprep.subr.bf16.mxu0 0
        %1477 = vmatpush1.bf16.msra.mxu0 0
        %1478 = vmatprep.subr.bf16.mxu0 0
        %1479 = vmatpush1.bf16.msra.mxu0 0
        %1480 = vmatprep.subr.bf16.mxu0 0
        %1481 = vmatpush1.bf16.msra.mxu0 0
        %1482 = vmatprep.subr.bf16.mxu0 0
        %1483 = vmatpush1.bf16.msra.mxu0 0
        %1484 = vmatprep.mubr.bf16.mxu0 0
        %1485 = vmatmul.mubr.bf16.gmra.mrb[0].mxu0 %v1450
        %v1486 = vpop.f32.mrb[0].mxu0
        %v1487 = vadd.f32 0.0, %v1486
        %v1488 = vpop.f32.mrb[0].mxu0
        %v1489 = vpop.f32.mrb[0].mxu0
        %v1490 = vpop.f32.mrb[0].mxu0
        %1491 = vdwg.mxu0
        %v1492 = vadd.f32 %v1405, %v1487
        %v1493 = vld [vmem:[%s222 + $0x18] sm:$0xf]
        %v1494 = vld [vmem:[%s1 + $0x1e0] sm:$0xf]
        %v1495 = vld [vmem:[%s1 + $0x1e4] sm:$0xf]
        %v1496 = vld [vmem:[%s1 + $0x1e8] sm:$0xf]
        %v1497 = vld [vmem:[%s1 + $0x1ec] sm:$0xf]
        %v1498 = vld [vmem:[%s1 + $0x1f0] sm:$0xf]
        %v1499 = vld [vmem:[%s1 + $0x1f4] sm:$0xf]
        %v1500 = vld [vmem:[%s1 + $0x1f8] sm:$0xf]
        %v1501 = vld [vmem:[%s1 + $0x1fc] sm:$0xf]
        %v1510 = vunpack.c.l.b16 %v1494
        %v1511 = vunpack.c.l.b16 %v1495
        %v1512 = vunpack.c.l.b16 %v1496
        %v1513 = vunpack.c.l.b16 %v1497
        %v1514 = vunpack.c.l.b16 %v1498
        %v1515 = vunpack.c.l.b16 %v1499
        %v1516 = vunpack.c.l.b16 %v1500
        %v1517 = vunpack.c.l.b16 %v1501
        %v1518 = vpack.c.b16 %v1511, %v1510
        %v1519 = vpack.c.b16 %v1513, %v1512
        %v1520 = vpack.c.b16 %v1515, %v1514
        %v1521 = vpack.c.b16 %v1517, %v1516
        %v1527 = vsel %vm273, %v1493, 0
        %1529 = vmatprep.subr.bf16.mxu0 0
        %1530 = vmatpush1.bf16.msra.mxu0 %v1518
        %1531 = vmatprep.subr.bf16.mxu0 0
        %1532 = vmatpush1.bf16.msra.mxu0 %v1519
        %1533 = vmatprep.subr.bf16.mxu0 0
        %1534 = vmatpush1.bf16.msra.mxu0 %v1520
        %1535 = vmatprep.subr.bf16.mxu0 0
        %1536 = vmatpush1.bf16.msra.mxu0 %v1521
        %1537 = vmatprep.subr.bf16.mxu0 0
        %1538 = vmatpush1.bf16.msra.mxu0 0
        %1539 = vmatprep.subr.bf16.mxu0 0
        %1540 = vmatpush1.bf16.msra.mxu0 0
        %1541 = vmatprep.subr.bf16.mxu0 0
        %1542 = vmatpush1.bf16.msra.mxu0 0
        %1543 = vmatprep.subr.bf16.mxu0 0
        %1544 = vmatpush1.bf16.msra.mxu0 0
        %1545 = vmatprep.subr.bf16.mxu0 0
        %1546 = vmatpush1.bf16.msra.mxu0 0
        %1547 = vmatprep.subr.bf16.mxu0 0
        %1548 = vmatpush1.bf16.msra.mxu0 0
        %1549 = vmatprep.subr.bf16.mxu0 0
        %1550 = vmatpush1.bf16.msra.mxu0 0
        %1551 = vmatprep.subr.bf16.mxu0 0
        %1552 = vmatpush1.bf16.msra.mxu0 0
        %1553 = vmatprep.subr.bf16.mxu0 0
        %1554 = vmatpush1.bf16.msra.mxu0 0
        %1555 = vmatprep.subr.bf16.mxu0 0
        %1556 = vmatpush1.bf16.msra.mxu0 0
        %1557 = vmatprep.subr.bf16.mxu0 0
        %1558 = vmatpush1.bf16.msra.mxu0 0
        %1559 = vmatprep.subr.bf16.mxu0 0
        %1560 = vmatpush1.bf16.msra.mxu0 0
        %1561 = vmatprep.mubr.bf16.mxu0 0
        %1562 = vmatmul.mubr.bf16.gmra.mrb[0].mxu0 %v1527
        %v1563 = vpop.f32.mrb[0].mxu0
        %v1564 = vadd.f32 0.0, %v1563
        %v1565 = vpop.f32.mrb[0].mxu0
        %v1566 = vpop.f32.mrb[0].mxu0
        %v1567 = vpop.f32.mrb[0].mxu0
        %1568 = vdwg.mxu0
        %v1569 = vadd.f32 %v1492, %v1564
        %v1570 = vld [vmem:[%s222 + $0x14] sm:$0x8]
        %v1571 = vld [vmem:[%s1 + $0x200] sm:$0xf]
        %v1572 = vld [vmem:[%s1 + $0x204] sm:$0xf]
        %v1573 = vld [vmem:[%s1 + $0x208] sm:$0xf]
        %v1574 = vld [vmem:[%s1 + $0x20c] sm:$0xf]
        %v1575 = vld [vmem:[%s1 + $0x210] sm:$0xf]
        %v1576 = vld [vmem:[%s1 + $0x214] sm:$0xf]
        %v1577 = vld [vmem:[%s1 + $0x218] sm:$0xf]
        %v1578 = vld [vmem:[%s1 + $0x21c] sm:$0xf]
        %v1581 = vunpack.c.l.b16 %v1570
        %v1582 = vunpack.c.l.b16 %v1493
        %v1583 = vpack.c.b16 %v1582, %v1581
        %v1585 = vshrl.u32 %v1583, 16
        %v1587 = vrot.slane %v1585, 3
        %v1588 = vshll.u32 %v1583, 16
        %v1590 = vrot.slane %v1588, 4
        %v1591 = vor.u32 %v1587, %v1590
        %v1600 = vunpack.c.l.b16 %v1571
        %v1601 = vunpack.c.l.b16 %v1572
        %v1602 = vunpack.c.l.b16 %v1573
        %v1603 = vunpack.c.l.b16 %v1574
        %v1604 = vunpack.c.l.b16 %v1575
        %v1605 = vunpack.c.l.b16 %v1576
        %v1606 = vunpack.c.l.b16 %v1577
        %v1607 = vunpack.c.l.b16 %v1578
        %v1608 = vpack.c.b16 %v1601, %v1600
        %v1609 = vpack.c.b16 %v1603, %v1602
        %v1610 = vpack.c.b16 %v1605, %v1604
        %v1611 = vpack.c.b16 %v1607, %v1606
        %v1617 = vsel %vm273, %v1591, 0
        %1619 = vmatprep.subr.bf16.mxu0 0
        %1620 = vmatpush1.bf16.msra.mxu0 %v1608
        %1621 = vmatprep.subr.bf16.mxu0 0
        %1622 = vmatpush1.bf16.msra.mxu0 %v1609
        %1623 = vmatprep.subr.bf16.mxu0 0
        %1624 = vmatpush1.bf16.msra.mxu0 %v1610
        %1625 = vmatprep.subr.bf16.mxu0 0
        %1626 = vmatpush1.bf16.msra.mxu0 %v1611
        %1627 = vmatprep.subr.bf16.mxu0 0
        %1628 = vmatpush1.bf16.msra.mxu0 0
        %1629 = vmatprep.subr.bf16.mxu0 0
        %1630 = vmatpush1.bf16.msra.mxu0 0
        %1631 = vmatprep.subr.bf16.mxu0 0
        %1632 = vmatpush1.bf16.msra.mxu0 0
        %1633 = vmatprep.subr.bf16.mxu0 0
        %1634 = vmatpush1.bf16.msra.mxu0 0
        %1635 = vmatprep.subr.bf16.mxu0 0
        %1636 = vmatpush1.bf16.msra.mxu0 0
        %1637 = vmatprep.subr.bf16.mxu0 0
        %1638 = vmatpush1.bf16.msra.mxu0 0
        %1639 = vmatprep.subr.bf16.mxu0 0
        %1640 = vmatpush1.bf16.msra.mxu0 0
        %1641 = vmatprep.subr.bf16.mxu0 0
        %1642 = vmatpush1.bf16.msra.mxu0 0
        %1643 = vmatprep.subr.bf16.mxu0 0
        %1644 = vmatpush1.bf16.msra.mxu0 0
        %1645 = vmatprep.subr.bf16.mxu0 0
        %1646 = vmatpush1.bf16.msra.mxu0 0
        %1647 = vmatprep.subr.bf16.mxu0 0
        %1648 = vmatpush1.bf16.msra.mxu0 0
        %1649 = vmatprep.subr.bf16.mxu0 0
        %1650 = vmatpush1.bf16.msra.mxu0 0
        %1651 = vmatprep.mubr.bf16.mxu0 0
        %1652 = vmatmul.mubr.bf16.gmra.mrb[0].mxu0 %v1617
        %v1653 = vpop.f32.mrb[0].mxu0
        %v1654 = vadd.f32 0.0, %v1653
        %v1655 = vpop.f32.mrb[0].mxu0
        %v1656 = vpop.f32.mrb[0].mxu0
        %v1657 = vpop.f32.mrb[0].mxu0
        %1658 = vdwg.mxu0
        %v1659 = vadd.f32 %v1569, %v1654
        %v1660 = vld [vmem:[%s222 + $0x18] sm:$0x7]
        %v1661 = vld [vmem:[%s1 + $0x220] sm:$0xf]
        %v1662 = vld [vmem:[%s1 + $0x224] sm:$0xf]
        %v1663 = vld [vmem:[%s1 + $0x228] sm:$0xf]
        %v1664 = vld [vmem:[%s1 + $0x22c] sm:$0xf]
        %v1665 = vld [vmem:[%s1 + $0x230] sm:$0xf]
        %v1666 = vld [vmem:[%s1 + $0x234] sm:$0xf]
        %v1667 = vld [vmem:[%s1 + $0x238] sm:$0xf]
        %v1668 = vld [vmem:[%s1 + $0x23c] sm:$0xf]
        %v1670 = vunpack.c.l.b16 %v1660
        %v1671 = vpack.c.b16 %v1670, %v1581
        %v1672 = vrot.slane %v1671, 3
        %v1681 = vunpack.c.l.b16 %v1661
        %v1682 = vunpack.c.l.b16 %v1662
        %v1683 = vunpack.c.l.b16 %v1663
        %v1684 = vunpack.c.l.b16 %v1664
        %v1685 = vunpack.c.l.b16 %v1665
        %v1686 = vunpack.c.l.b16 %v1666
        %v1687 = vunpack.c.l.b16 %v1667
        %v1688 = vunpack.c.l.b16 %v1668
        %v1689 = vpack.c.b16 %v1682, %v1681
        %v1690 = vpack.c.b16 %v1684, %v1683
        %v1691 = vpack.c.b16 %v1686, %v1685
        %v1692 = vpack.c.b16 %v1688, %v1687
        %v1698 = vsel %vm273, %v1672, 0
        %1700 = vmatprep.subr.bf16.mxu0 0
        %1701 = vmatpush1.bf16.msra.mxu0 %v1689
        %1702 = vmatprep.subr.bf16.mxu0 0
        %1703 = vmatpush1.bf16.msra.mxu0 %v1690
        %1704 = vmatprep.subr.bf16.mxu0 0
        %1705 = vmatpush1.bf16.msra.mxu0 %v1691
        %1706 = vmatprep.subr.bf16.mxu0 0
        %1707 = vmatpush1.bf16.msra.mxu0 %v1692
        %1708 = vmatprep.subr.bf16.mxu0 0
        %1709 = vmatpush1.bf16.msra.mxu0 0
        %1710 = vmatprep.subr.bf16.mxu0 0
        %1711 = vmatpush1.bf16.msra.mxu0 0
        %1712 = vmatprep.subr.bf16.mxu0 0
        %1713 = vmatpush1.bf16.msra.mxu0 0
        %1714 = vmatprep.subr.bf16.mxu0 0
        %1715 = vmatpush1.bf16.msra.mxu0 0
        %1716 = vmatprep.subr.bf16.mxu0 0
        %1717 = vmatpush1.bf16.msra.mxu0 0
        %1718 = vmatprep.subr.bf16.mxu0 0
        %1719 = vmatpush1.bf16.msra.mxu0 0
        %1720 = vmatprep.subr.bf16.mxu0 0
        %1721 = vmatpush1.bf16.msra.mxu0 0
        %1722 = vmatprep.subr.bf16.mxu0 0
        %1723 = vmatpush1.bf16.msra.mxu0 0
        %1724 = vmatprep.subr.bf16.mxu0 0
        %1725 = vmatpush1.bf16.msra.mxu0 0
        %1726 = vmatprep.subr.bf16.mxu0 0
        %1727 = vmatpush1.bf16.msra.mxu0 0
        %1728 = vmatprep.subr.bf16.mxu0 0
        %1729 = vmatpush1.bf16.msra.mxu0 0
        %1730 = vmatprep.subr.bf16.mxu0 0
        %1731 = vmatpush1.bf16.msra.mxu0 0
        %1732 = vmatprep.mubr.bf16.mxu0 0
        %1733 = vmatmul.mubr.bf16.gmra.mrb[0].mxu0 %v1698
        %v1734 = vpop.f32.mrb[0].mxu0
        %v1735 = vadd.f32 0.0, %v1734
        %v1736 = vpop.f32.mrb[0].mxu0
        %v1737 = vpop.f32.mrb[0].mxu0
        %v1738 = vpop.f32.mrb[0].mxu0
        %1739 = vdwg.mxu0
        %v1740 = vadd.f32 %v1659, %v1735
        %v1741 = vld [vmem:[%s222 + $0x14] sm:$0xc]
        %v1742 = vld [vmem:[%s1 + $0x240] sm:$0xf]
        %v1743 = vld [vmem:[%s1 + $0x244] sm:$0xf]
        %v1744 = vld [vmem:[%s1 + $0x248] sm:$0xf]
        %v1745 = vld [vmem:[%s1 + $0x24c] sm:$0xf]
        %v1746 = vld [vmem:[%s1 + $0x250] sm:$0xf]
        %v1747 = vld [vmem:[%s1 + $0x254] sm:$0xf]
        %v1748 = vld [vmem:[%s1 + $0x258] sm:$0xf]
        %v1749 = vld [vmem:[%s1 + $0x25c] sm:$0xf]
        %v1751 = vunpack.c.l.b16 %v1741
        %v1752 = vpack.c.b16 %v1670, %v1751
        %v1754 = vshrl.u32 %v1752, 16
        %v1756 = vrot.slane %v1754, 2
        %v1757 = vshll.u32 %v1752, 16
        %v1759 = vrot.slane %v1757, 3
        %v1760 = vor.u32 %v1756, %v1759
        %v1769 = vunpack.c.l.b16 %v1742
        %v1770 = vunpack.c.l.b16 %v1743
        %v1771 = vunpack.c.l.b16 %v1744
        %v1772 = vunpack.c.l.b16 %v1745
        %v1773 = vunpack.c.l.b16 %v1746
        %v1774 = vunpack.c.l.b16 %v1747
        %v1775 = vunpack.c.l.b16 %v1748
        %v1776 = vunpack.c.l.b16 %v1749
        %v1777 = vpack.c.b16 %v1770, %v1769
        %v1778 = vpack.c.b16 %v1772, %v1771
        %v1779 = vpack.c.b16 %v1774, %v1773
        %v1780 = vpack.c.b16 %v1776, %v1775
        %v1786 = vsel %vm273, %v1760, 0
        %1788 = vmatprep.subr.bf16.mxu0 0
        %1789 = vmatpush1.bf16.msra.mxu0 %v1777
        %1790 = vmatprep.subr.bf16.mxu0 0
        %1791 = vmatpush1.bf16.msra.mxu0 %v1778
        %1792 = vmatprep.subr.bf16.mxu0 0
        %1793 = vmatpush1.bf16.msra.mxu0 %v1779
        %1794 = vmatprep.subr.bf16.mxu0 0
        %1795 = vmatpush1.bf16.msra.mxu0 %v1780
        %1796 = vmatprep.subr.bf16.mxu0 0
        %1797 = vmatpush1.bf16.msra.mxu0 0
        %1798 = vmatprep.subr.bf16.mxu0 0
        %1799 = vmatpush1.bf16.msra.mxu0 0
        %1800 = vmatprep.subr.bf16.mxu0 0
        %1801 = vmatpush1.bf16.msra.mxu0 0
        %1802 = vmatprep.subr.bf16.mxu0 0
        %1803 = vmatpush1.bf16.msra.mxu0 0
        %1804 = vmatprep.subr.bf16.mxu0 0
        %1805 = vmatpush1.bf16.msra.mxu0 0
        %1806 = vmatprep.subr.bf16.mxu0 0
        %1807 = vmatpush1.bf16.msra.mxu0 0
        %1808 = vmatprep.subr.bf16.mxu0 0
        %1809 = vmatpush1.bf16.msra.mxu0 0
        %1810 = vmatprep.subr.bf16.mxu0 0
        %1811 = vmatpush1.bf16.msra.mxu0 0
        %1812 = vmatprep.subr.bf16.mxu0 0
        %1813 = vmatpush1.bf16.msra.mxu0 0
        %1814 = vmatprep.subr.bf16.mxu0 0
        %1815 = vmatpush1.bf16.msra.mxu0 0
        %1816 = vmatprep.subr.bf16.mxu0 0
        %1817 = vmatpush1.bf16.msra.mxu0 0
        %1818 = vmatprep.subr.bf16.mxu0 0
        %1819 = vmatpush1.bf16.msra.mxu0 0
        %1820 = vmatprep.mubr.bf16.mxu0 0
        %1821 = vmatmul.mubr.bf16.gmra.mrb[0].mxu0 %v1786
        %v1822 = vpop.f32.mrb[0].mxu0
        %v1823 = vadd.f32 0.0, %v1822
        %v1824 = vpop.f32.mrb[0].mxu0
        %v1825 = vpop.f32.mrb[0].mxu0
        %v1826 = vpop.f32.mrb[0].mxu0
        %1827 = vdwg.mxu0
        %v1828 = vadd.f32 %v1740, %v1823
        %v1829 = vld [vmem:[%s222 + $0x18] sm:$0x3]
        %v1830 = vld [vmem:[%s1 + $0x260] sm:$0xf]
        %v1831 = vld [vmem:[%s1 + $0x264] sm:$0xf]
        %v1832 = vld [vmem:[%s1 + $0x268] sm:$0xf]
        %v1833 = vld [vmem:[%s1 + $0x26c] sm:$0xf]
        %v1834 = vld [vmem:[%s1 + $0x270] sm:$0xf]
        %v1835 = vld [vmem:[%s1 + $0x274] sm:$0xf]
        %v1836 = vld [vmem:[%s1 + $0x278] sm:$0xf]
        %v1837 = vld [vmem:[%s1 + $0x27c] sm:$0xf]
        %v1839 = vunpack.c.l.b16 %v1829
        %v1840 = vpack.c.b16 %v1839, %v1751
        %v1841 = vrot.slane %v1840, 2
        %v1850 = vunpack.c.l.b16 %v1830
        %v1851 = vunpack.c.l.b16 %v1831
        %v1852 = vunpack.c.l.b16 %v1832
        %v1853 = vunpack.c.l.b16 %v1833
        %v1854 = vunpack.c.l.b16 %v1834
        %v1855 = vunpack.c.l.b16 %v1835
        %v1856 = vunpack.c.l.b16 %v1836
        %v1857 = vunpack.c.l.b16 %v1837
        %v1858 = vpack.c.b16 %v1851, %v1850
        %v1859 = vpack.c.b16 %v1853, %v1852
        %v1860 = vpack.c.b16 %v1855, %v1854
        %v1861 = vpack.c.b16 %v1857, %v1856
        %v1867 = vsel %vm273, %v1841, 0
        %1869 = vmatprep.subr.bf16.mxu0 0
        %1870 = vmatpush1.bf16.msra.mxu0 %v1858
        %1871 = vmatprep.subr.bf16.mxu0 0
        %1872 = vmatpush1.bf16.msra.mxu0 %v1859
        %1873 = vmatprep.subr.bf16.mxu0 0
        %1874 = vmatpush1.bf16.msra.mxu0 %v1860
        %1875 = vmatprep.subr.bf16.mxu0 0
        %1876 = vmatpush1.bf16.msra.mxu0 %v1861
        %1877 = vmatprep.subr.bf16.mxu0 0
        %1878 = vmatpush1.bf16.msra.mxu0 0
        %1879 = vmatprep.subr.bf16.mxu0 0
        %1880 = vmatpush1.bf16.msra.mxu0 0
        %1881 = vmatprep.subr.bf16.mxu0 0
        %1882 = vmatpush1.bf16.msra.mxu0 0
        %1883 = vmatprep.subr.bf16.mxu0 0
        %1884 = vmatpush1.bf16.msra.mxu0 0
        %1885 = vmatprep.subr.bf16.mxu0 0
        %1886 = vmatpush1.bf16.msra.mxu0 0
        %1887 = vmatprep.subr.bf16.mxu0 0
        %1888 = vmatpush1.bf16.msra.mxu0 0
        %1889 = vmatprep.subr.bf16.mxu0 0
        %1890 = vmatpush1.bf16.msra.mxu0 0
        %1891 = vmatprep.subr.bf16.mxu0 0
        %1892 = vmatpush1.bf16.msra.mxu0 0
        %1893 = vmatprep.subr.bf16.mxu0 0
        %1894 = vmatpush1.bf16.msra.mxu0 0
        %1895 = vmatprep.subr.bf16.mxu0 0
        %1896 = vmatpush1.bf16.msra.mxu0 0
        %1897 = vmatprep.subr.bf16.mxu0 0
        %1898 = vmatpush1.bf16.msra.mxu0 0
        %1899 = vmatprep.subr.bf16.mxu0 0
        %1900 = vmatpush1.bf16.msra.mxu0 0
        %1901 = vmatprep.mubr.bf16.mxu0 0
        %1902 = vmatmul.mubr.bf16.gmra.mrb[0].mxu0 %v1867
        %v1903 = vpop.f32.mrb[0].mxu0
        %v1904 = vadd.f32 0.0, %v1903
        %v1905 = vpop.f32.mrb[0].mxu0
        %v1906 = vpop.f32.mrb[0].mxu0
        %v1907 = vpop.f32.mrb[0].mxu0
        %1908 = vdwg.mxu0
        %v1909 = vadd.f32 %v1828, %v1904
        %v1910 = vld [vmem:[%s222 + $0x14] sm:$0xe]
        %v1911 = vld [vmem:[%s1 + $0x280] sm:$0xf]
        %v1912 = vld [vmem:[%s1 + $0x284] sm:$0xf]
        %v1913 = vld [vmem:[%s1 + $0x288] sm:$0xf]
        %v1914 = vld [vmem:[%s1 + $0x28c] sm:$0xf]
        %v1915 = vld [vmem:[%s1 + $0x290] sm:$0xf]
        %v1916 = vld [vmem:[%s1 + $0x294] sm:$0xf]
        %v1917 = vld [vmem:[%s1 + $0x298] sm:$0xf]
        %v1918 = vld [vmem:[%s1 + $0x29c] sm:$0xf]
        %v1920 = vunpack.c.l.b16 %v1910
        %v1921 = vpack.c.b16 %v1839, %v1920
        %v1923 = vshrl.u32 %v1921, 16
        %v1925 = vrot.slane %v1923, 1
        %v1926 = vshll.u32 %v1921, 16
        %v1928 = vrot.slane %v1926, 2
        %v1929 = vor.u32 %v1925, %v1928
        %v1938 = vunpack.c.l.b16 %v1911
        %v1939 = vunpack.c.l.b16 %v1912
        %v1940 = vunpack.c.l.b16 %v1913
        %v1941 = vunpack.c.l.b16 %v1914
        %v1942 = vunpack.c.l.b16 %v1915
        %v1943 = vunpack.c.l.b16 %v1916
        %v1944 = vunpack.c.l.b16 %v1917
        %v1945 = vunpack.c.l.b16 %v1918
        %v1946 = vpack.c.b16 %v1939, %v1938
        %v1947 = vpack.c.b16 %v1941, %v1940
        %v1948 = vpack.c.b16 %v1943, %v1942
        %v1949 = vpack.c.b16 %v1945, %v1944
        %v1955 = vsel %vm273, %v1929, 0
        %1957 = vmatprep.subr.bf16.mxu0 0
        %1958 = vmatpush1.bf16.msra.mxu0 %v1946
        %1959 = vmatprep.subr.bf16.mxu0 0
        %1960 = vmatpush1.bf16.msra.mxu0 %v1947
        %1961 = vmatprep.subr.bf16.mxu0 0
        %1962 = vmatpush1.bf16.msra.mxu0 %v1948
        %1963 = vmatprep.subr.bf16.mxu0 0
        %1964 = vmatpush1.bf16.msra.mxu0 %v1949
        %1965 = vmatprep.subr.bf16.mxu0 0
        %1966 = vmatpush1.bf16.msra.mxu0 0
        %1967 = vmatprep.subr.bf16.mxu0 0
        %1968 = vmatpush1.bf16.msra.mxu0 0
        %1969 = vmatprep.subr.bf16.mxu0 0
        %1970 = vmatpush1.bf16.msra.mxu0 0
        %1971 = vmatprep.subr.bf16.mxu0 0
        %1972 = vmatpush1.bf16.msra.mxu0 0
        %1973 = vmatprep.subr.bf16.mxu0 0
        %1974 = vmatpush1.bf16.msra.mxu0 0
        %1975 = vmatprep.subr.bf16.mxu0 0
        %1976 = vmatpush1.bf16.msra.mxu0 0
        %1977 = vmatprep.subr.bf16.mxu0 0
        %1978 = vmatpush1.bf16.msra.mxu0 0
        %1979 = vmatprep.subr.bf16.mxu0 0
        %1980 = vmatpush1.bf16.msra.mxu0 0
        %1981 = vmatprep.subr.bf16.mxu0 0
        %1982 = vmatpush1.bf16.msra.mxu0 0
        %1983 = vmatprep.subr.bf16.mxu0 0
        %1984 = vmatpush1.bf16.msra.mxu0 0
        %1985 = vmatprep.subr.bf16.mxu0 0
        %1986 = vmatpush1.bf16.msra.mxu0 0
        %1987 = vmatprep.subr.bf16.mxu0 0
        %1988 = vmatpush1.bf16.msra.mxu0 0
        %1989 = vmatprep.mubr.bf16.mxu0 0
        %1990 = vmatmul.mubr.bf16.gmra.mrb[0].mxu0 %v1955
        %v1991 = vpop.f32.mrb[0].mxu0
        %v1992 = vadd.f32 0.0, %v1991
        %v1993 = vpop.f32.mrb[0].mxu0
        %v1994 = vpop.f32.mrb[0].mxu0
        %v1995 = vpop.f32.mrb[0].mxu0
        %1996 = vdwg.mxu0
        %v1997 = vadd.f32 %v1909, %v1992
        %v1998 = vld [vmem:[%s222 + $0x18] sm:$0x1]
        %v1999 = vld [vmem:[%s1 + $0x2a0] sm:$0xf]
        %v2000 = vld [vmem:[%s1 + $0x2a4] sm:$0xf]
        %v2001 = vld [vmem:[%s1 + $0x2a8] sm:$0xf]
        %v2002 = vld [vmem:[%s1 + $0x2ac] sm:$0xf]
        %v2003 = vld [vmem:[%s1 + $0x2b0] sm:$0xf]
        %v2004 = vld [vmem:[%s1 + $0x2b4] sm:$0xf]
        %v2005 = vld [vmem:[%s1 + $0x2b8] sm:$0xf]
        %v2006 = vld [vmem:[%s1 + $0x2bc] sm:$0xf]
        %v2008 = vunpack.c.l.b16 %v1998
        %v2009 = vpack.c.b16 %v2008, %v1920
        %v2010 = vrot.slane %v2009, 1
        %v2019 = vunpack.c.l.b16 %v1999
        %v2020 = vunpack.c.l.b16 %v2000
        %v2021 = vunpack.c.l.b16 %v2001
        %v2022 = vunpack.c.l.b16 %v2002
        %v2023 = vunpack.c.l.b16 %v2003
        %v2024 = vunpack.c.l.b16 %v2004
        %v2025 = vunpack.c.l.b16 %v2005
        %v2026 = vunpack.c.l.b16 %v2006
        %v2027 = vpack.c.b16 %v2020, %v2019
        %v2028 = vpack.c.b16 %v2022, %v2021
        %v2029 = vpack.c.b16 %v2024, %v2023
        %v2030 = vpack.c.b16 %v2026, %v2025
        %v2036 = vsel %vm273, %v2010, 0
        %2038 = vmatprep.subr.bf16.mxu0 0
        %2039 = vmatpush1.bf16.msra.mxu0 %v2027
        %2040 = vmatprep.subr.bf16.mxu0 0
        %2041 = vmatpush1.bf16.msra.mxu0 %v2028
        %2042 = vmatprep.subr.bf16.mxu0 0
        %2043 = vmatpush1.bf16.msra.mxu0 %v2029
        %2044 = vmatprep.subr.bf16.mxu0 0
        %2045 = vmatpush1.bf16.msra.mxu0 %v2030
        %2046 = vmatprep.subr.bf16.mxu0 0
        %2047 = vmatpush1.bf16.msra.mxu0 0
        %2048 = vmatprep.subr.bf16.mxu0 0
        %2049 = vmatpush1.bf16.msra.mxu0 0
        %2050 = vmatprep.subr.bf16.mxu0 0
        %2051 = vmatpush1.bf16.msra.mxu0 0
        %2052 = vmatprep.subr.bf16.mxu0 0
        %2053 = vmatpush1.bf16.msra.mxu0 0
        %2054 = vmatprep.subr.bf16.mxu0 0
        %2055 = vmatpush1.bf16.msra.mxu0 0
        %2056 = vmatprep.subr.bf16.mxu0 0
        %2057 = vmatpush1.bf16.msra.mxu0 0
        %2058 = vmatprep.subr.bf16.mxu0 0
        %2059 = vmatpush1.bf16.msra.mxu0 0
        %2060 = vmatprep.subr.bf16.mxu0 0
        %2061 = vmatpush1.bf16.msra.mxu0 0
        %2062 = vmatprep.subr.bf16.mxu0 0
        %2063 = vmatpush1.bf16.msra.mxu0 0
        %2064 = vmatprep.subr.bf16.mxu0 0
        %2065 = vmatpush1.bf16.msra.mxu0 0
        %2066 = vmatprep.subr.bf16.mxu0 0
        %2067 = vmatpush1.bf16.msra.mxu0 0
        %2068 = vmatprep.subr.bf16.mxu0 0
        %2069 = vmatpush1.bf16.msra.mxu0 0
        %2070 = vmatprep.mubr.bf16.mxu0 0
        %2071 = vmatmul.mubr.bf16.gmra.mrb[0].mxu0 %v2036
        %v2072 = vpop.f32.mrb[0].mxu0
        %v2073 = vadd.f32 0.0, %v2072
        %v2074 = vpop.f32.mrb[0].mxu0
        %v2075 = vpop.f32.mrb[0].mxu0
        %v2076 = vpop.f32.mrb[0].mxu0
        %2077 = vdwg.mxu0
        %v2078 = vadd.f32 %v1997, %v2073
        %v2079 = vld [vmem:[%s222 + $0x14] sm:$0xf]
        %v2080 = vld [vmem:[%s1 + $0x2c0] sm:$0xf]
        %v2081 = vld [vmem:[%s1 + $0x2c4] sm:$0xf]
        %v2082 = vld [vmem:[%s1 + $0x2c8] sm:$0xf]
        %v2083 = vld [vmem:[%s1 + $0x2cc] sm:$0xf]
        %v2084 = vld [vmem:[%s1 + $0x2d0] sm:$0xf]
        %v2085 = vld [vmem:[%s1 + $0x2d4] sm:$0xf]
        %v2086 = vld [vmem:[%s1 + $0x2d8] sm:$0xf]
        %v2087 = vld [vmem:[%s1 + $0x2dc] sm:$0xf]
        %v2089 = vunpack.c.l.b16 %v2079
        %v2090 = vpack.c.b16 %v2008, %v2089
        %v2092 = vshrl.u32 %v2090, 16
        %v2094 = vshll.u32 %v2090, 16
        %v2096 = vrot.slane %v2094, 1
        %v2097 = vor.u32 %v2092, %v2096
        %v2106 = vunpack.c.l.b16 %v2080
        %v2107 = vunpack.c.l.b16 %v2081
        %v2108 = vunpack.c.l.b16 %v2082
        %v2109 = vunpack.c.l.b16 %v2083
        %v2110 = vunpack.c.l.b16 %v2084
        %v2111 = vunpack.c.l.b16 %v2085
        %v2112 = vunpack.c.l.b16 %v2086
        %v2113 = vunpack.c.l.b16 %v2087
        %v2114 = vpack.c.b16 %v2107, %v2106
        %v2115 = vpack.c.b16 %v2109, %v2108
        %v2116 = vpack.c.b16 %v2111, %v2110
        %v2117 = vpack.c.b16 %v2113, %v2112
        %v2123 = vsel %vm273, %v2097, 0
        %2125 = vmatprep.subr.bf16.mxu0 0
        %2126 = vmatpush1.bf16.msra.mxu0 %v2114
        %2127 = vmatprep.subr.bf16.mxu0 0
        %2128 = vmatpush1.bf16.msra.mxu0 %v2115
        %2129 = vmatprep.subr.bf16.mxu0 0
        %2130 = vmatpush1.bf16.msra.mxu0 %v2116
        %2131 = vmatprep.subr.bf16.mxu0 0
        %2132 = vmatpush1.bf16.msra.mxu0 %v2117
        %2133 = vmatprep.subr.bf16.mxu0 0
        %2134 = vmatpush1.bf16.msra.mxu0 0
        %2135 = vmatprep.subr.bf16.mxu0 0
        %2136 = vmatpush1.bf16.msra.mxu0 0
        %2137 = vmatprep.subr.bf16.mxu0 0
        %2138 = vmatpush1.bf16.msra.mxu0 0
        %2139 = vmatprep.subr.bf16.mxu0 0
        %2140 = vmatpush1.bf16.msra.mxu0 0
        %2141 = vmatprep.subr.bf16.mxu0 0
        %2142 = vmatpush1.bf16.msra.mxu0 0
        %2143 = vmatprep.subr.bf16.mxu0 0
        %2144 = vmatpush1.bf16.msra.mxu0 0
        %2145 = vmatprep.subr.bf16.mxu0 0
        %2146 = vmatpush1.bf16.msra.mxu0 0
        %2147 = vmatprep.subr.bf16.mxu0 0
        %2148 = vmatpush1.bf16.msra.mxu0 0
        %2149 = vmatprep.subr.bf16.mxu0 0
        %2150 = vmatpush1.bf16.msra.mxu0 0
        %2151 = vmatprep.subr.bf16.mxu0 0
        %2152 = vmatpush1.bf16.msra.mxu0 0
        %2153 = vmatprep.subr.bf16.mxu0 0
        %2154 = vmatpush1.bf16.msra.mxu0 0
        %2155 = vmatprep.subr.bf16.mxu0 0
        %2156 = vmatpush1.bf16.msra.mxu0 0
        %2157 = vmatprep.mubr.bf16.mxu0 0
        %2158 = vmatmul.mubr.bf16.gmra.mrb[0].mxu0 %v2123
        %v2159 = vpop.f32.mrb[0].mxu0
        %v2160 = vadd.f32 0.0, %v2159
        %v2161 = vpop.f32.mrb[0].mxu0
        %v2162 = vpop.f32.mrb[0].mxu0
        %v2163 = vpop.f32.mrb[0].mxu0
        %2164 = vdwg.mxu0
        %v2165 = vadd.f32 %v2078, %v2160
        %v2166 = vld [vmem:[%s222 + $0x14] sm:$0xf]
        %v2167 = vld [vmem:[%s1 + $0x2e0] sm:$0xf]
        %v2168 = vld [vmem:[%s1 + $0x2e4] sm:$0xf]
        %v2169 = vld [vmem:[%s1 + $0x2e8] sm:$0xf]
        %v2170 = vld [vmem:[%s1 + $0x2ec] sm:$0xf]
        %v2171 = vld [vmem:[%s1 + $0x2f0] sm:$0xf]
        %v2172 = vld [vmem:[%s1 + $0x2f4] sm:$0xf]
        %v2173 = vld [vmem:[%s1 + $0x2f8] sm:$0xf]
        %v2174 = vld [vmem:[%s1 + $0x2fc] sm:$0xf]
        %v2183 = vunpack.c.l.b16 %v2167
        %v2184 = vunpack.c.l.b16 %v2168
        %v2185 = vunpack.c.l.b16 %v2169
        %v2186 = vunpack.c.l.b16 %v2170
        %v2187 = vunpack.c.l.b16 %v2171
        %v2188 = vunpack.c.l.b16 %v2172
        %v2189 = vunpack.c.l.b16 %v2173
        %v2190 = vunpack.c.l.b16 %v2174
        %v2191 = vpack.c.b16 %v2184, %v2183
        %v2192 = vpack.c.b16 %v2186, %v2185
        %v2193 = vpack.c.b16 %v2188, %v2187
        %v2194 = vpack.c.b16 %v2190, %v2189
        %v2200 = vsel %vm273, %v2166, 0
        %2202 = vmatprep.subr.bf16.mxu0 0
        %2203 = vmatpush1.bf16.msra.mxu0 %v2191
        %2204 = vmatprep.subr.bf16.mxu0 0
        %2205 = vmatpush1.bf16.msra.mxu0 %v2192
        %2206 = vmatprep.subr.bf16.mxu0 0
        %2207 = vmatpush1.bf16.msra.mxu0 %v2193
        %2208 = vmatprep.subr.bf16.mxu0 0
        %2209 = vmatpush1.bf16.msra.mxu0 %v2194
        %2210 = vmatprep.subr.bf16.mxu0 0
        %2211 = vmatpush1.bf16.msra.mxu0 0
        %2212 = vmatprep.subr.bf16.mxu0 0
        %2213 = vmatpush1.bf16.msra.mxu0 0
        %2214 = vmatprep.subr.bf16.mxu0 0
        %2215 = vmatpush1.bf16.msra.mxu0 0
        %2216 = vmatprep.subr.bf16.mxu0 0
        %2217 = vmatpush1.bf16.msra.mxu0 0
        %2218 = vmatprep.subr.bf16.mxu0 0
        %2219 = vmatpush1.bf16.msra.mxu0 0
        %2220 = vmatprep.subr.bf16.mxu0 0
        %2221 = vmatpush1.bf16.msra.mxu0 0
        %2222 = vmatprep.subr.bf16.mxu0 0
        %2223 = vmatpush1.bf16.msra.mxu0 0
        %2224 = vmatprep.subr.bf16.mxu0 0
        %2225 = vmatpush1.bf16.msra.mxu0 0
        %2226 = vmatprep.subr.bf16.mxu0 0
        %2227 = vmatpush1.bf16.msra.mxu0 0
        %2228 = vmatprep.subr.bf16.mxu0 0
        %2229 = vmatpush1.bf16.msra.mxu0 0
        %2230 = vmatprep.subr.bf16.mxu0 0
        %2231 = vmatpush1.bf16.msra.mxu0 0
        %2232 = vmatprep.subr.bf16.mxu0 0
        %2233 = vmatpush1.bf16.msra.mxu0 0
        %2234 = vmatprep.mubr.bf16.mxu0 0
        %2235 = vmatmul.mubr.bf16.gmra.mrb[0].mxu0 %v2200
        %v2236 = vpop.f32.mrb[0].mxu0
        %v2237 = vadd.f32 0.0, %v2236
        %v2238 = vpop.f32.mrb[0].mxu0
        %v2239 = vpop.f32.mrb[0].mxu0
        %v2240 = vpop.f32.mrb[0].mxu0
        %2241 = vdwg.mxu0
        %v2242 = vadd.f32 %v2165, %v2237
        %v2243 = vld [vmem:[%s222 + $0x10] sm:$0x8]
        %v2244 = vld [vmem:[%s1 + $0x300] sm:$0xf]
        %v2245 = vld [vmem:[%s1 + $0x304] sm:$0xf]
        %v2246 = vld [vmem:[%s1 + $0x308] sm:$0xf]
        %v2247 = vld [vmem:[%s1 + $0x30c] sm:$0xf]
        %v2248 = vld [vmem:[%s1 + $0x310] sm:$0xf]
        %v2249 = vld [vmem:[%s1 + $0x314] sm:$0xf]
        %v2250 = vld [vmem:[%s1 + $0x318] sm:$0xf]
        %v2251 = vld [vmem:[%s1 + $0x31c] sm:$0xf]
        %v2254 = vunpack.c.l.b16 %v2243
        %v2255 = vunpack.c.l.b16 %v2166
        %v2256 = vpack.c.b16 %v2255, %v2254
        %v2258 = vshrl.u32 %v2256, 16
        %v2260 = vrot.slane %v2258, 3
        %v2261 = vshll.u32 %v2256, 16
        %v2263 = vrot.slane %v2261, 4
        %v2264 = vor.u32 %v2260, %v2263
        %v2273 = vunpack.c.l.b16 %v2244
        %v2274 = vunpack.c.l.b16 %v2245
        %v2275 = vunpack.c.l.b16 %v2246
        %v2276 = vunpack.c.l.b16 %v2247
        %v2277 = vunpack.c.l.b16 %v2248
        %v2278 = vunpack.c.l.b16 %v2249
        %v2279 = vunpack.c.l.b16 %v2250
        %v2280 = vunpack.c.l.b16 %v2251
        %v2281 = vpack.c.b16 %v2274, %v2273
        %v2282 = vpack.c.b16 %v2276, %v2275
        %v2283 = vpack.c.b16 %v2278, %v2277
        %v2284 = vpack.c.b16 %v2280, %v2279
        %v2290 = vsel %vm273, %v2264, 0
        %2292 = vmatprep.subr.bf16.mxu0 0
        %2293 = vmatpush1.bf16.msra.mxu0 %v2281
        %2294 = vmatprep.subr.bf16.mxu0 0
        %2295 = vmatpush1.bf16.msra.mxu0 %v2282
        %2296 = vmatprep.subr.bf16.mxu0 0
        %2297 = vmatpush1.bf16.msra.mxu0 %v2283
        %2298 = vmatprep.subr.bf16.mxu0 0
        %2299 = vmatpush1.bf16.msra.mxu0 %v2284
        %2300 = vmatprep.subr.bf16.mxu0 0
        %2301 = vmatpush1.bf16.msra.mxu0 0
        %2302 = vmatprep.subr.bf16.mxu0 0
        %2303 = vmatpush1.bf16.msra.mxu0 0
        %2304 = vmatprep.subr.bf16.mxu0 0
        %2305 = vmatpush1.bf16.msra.mxu0 0
        %2306 = vmatprep.subr.bf16.mxu0 0
        %2307 = vmatpush1.bf16.msra.mxu0 0
        %2308 = vmatprep.subr.bf16.mxu0 0
        %2309 = vmatpush1.bf16.msra.mxu0 0
        %2310 = vmatprep.subr.bf16.mxu0 0
        %2311 = vmatpush1.bf16.msra.mxu0 0
        %2312 = vmatprep.subr.bf16.mxu0 0
        %2313 = vmatpush1.bf16.msra.mxu0 0
        %2314 = vmatprep.subr.bf16.mxu0 0
        %2315 = vmatpush1.bf16.msra.mxu0 0
        %2316 = vmatprep.subr.bf16.mxu0 0
        %2317 = vmatpush1.bf16.msra.mxu0 0
        %2318 = vmatprep.subr.bf16.mxu0 0
        %2319 = vmatpush1.bf16.msra.mxu0 0
        %2320 = vmatprep.subr.bf16.mxu0 0
        %2321 = vmatpush1.bf16.msra.mxu0 0
        %2322 = vmatprep.subr.bf16.mxu0 0
        %2323 = vmatpush1.bf16.msra.mxu0 0
        %2324 = vmatprep.mubr.bf16.mxu0 0
        %2325 = vmatmul.mubr.bf16.gmra.mrb[0].mxu0 %v2290
        %v2326 = vpop.f32.mrb[0].mxu0
        %v2327 = vadd.f32 0.0, %v2326
        %v2328 = vpop.f32.mrb[0].mxu0
        %v2329 = vpop.f32.mrb[0].mxu0
        %v2330 = vpop.f32.mrb[0].mxu0
        %2331 = vdwg.mxu0
        %v2332 = vadd.f32 %v2242, %v2327
        %v2333 = vld [vmem:[%s222 + $0x14] sm:$0x7]
        %v2334 = vld [vmem:[%s1 + $0x320] sm:$0xf]
        %v2335 = vld [vmem:[%s1 + $0x324] sm:$0xf]
        %v2336 = vld [vmem:[%s1 + $0x328] sm:$0xf]
        %v2337 = vld [vmem:[%s1 + $0x32c] sm:$0xf]
        %v2338 = vld [vmem:[%s1 + $0x330] sm:$0xf]
        %v2339 = vld [vmem:[%s1 + $0x334] sm:$0xf]
        %v2340 = vld [vmem:[%s1 + $0x338] sm:$0xf]
        %v2341 = vld [vmem:[%s1 + $0x33c] sm:$0xf]
        %v2343 = vunpack.c.l.b16 %v2333
        %v2344 = vpack.c.b16 %v2343, %v2254
        %v2345 = vrot.slane %v2344, 3
        %v2354 = vunpack.c.l.b16 %v2334
        %v2355 = vunpack.c.l.b16 %v2335
        %v2356 = vunpack.c.l.b16 %v2336
        %v2357 = vunpack.c.l.b16 %v2337
        %v2358 = vunpack.c.l.b16 %v2338
        %v2359 = vunpack.c.l.b16 %v2339
        %v2360 = vunpack.c.l.b16 %v2340
        %v2361 = vunpack.c.l.b16 %v2341
        %v2362 = vpack.c.b16 %v2355, %v2354
        %v2363 = vpack.c.b16 %v2357, %v2356
        %v2364 = vpack.c.b16 %v2359, %v2358
        %v2365 = vpack.c.b16 %v2361, %v2360
        %v2371 = vsel %vm273, %v2345, 0
        %2373 = vmatprep.subr.bf16.mxu0 0
        %2374 = vmatpush1.bf16.msra.mxu0 %v2362
        %2375 = vmatprep.subr.bf16.mxu0 0
        %2376 = vmatpush1.bf16.msra.mxu0 %v2363
        %2377 = vmatprep.subr.bf16.mxu0 0
        %2378 = vmatpush1.bf16.msra.mxu0 %v2364
        %2379 = vmatprep.subr.bf16.mxu0 0
        %2380 = vmatpush1.bf16.msra.mxu0 %v2365
        %2381 = vmatprep.subr.bf16.mxu0 0
        %2382 = vmatpush1.bf16.msra.mxu0 0
        %2383 = vmatprep.subr.bf16.mxu0 0
        %2384 = vmatpush1.bf16.msra.mxu0 0
        %2385 = vmatprep.subr.bf16.mxu0 0
        %2386 = vmatpush1.bf16.msra.mxu0 0
        %2387 = vmatprep.subr.bf16.mxu0 0
        %2388 = vmatpush1.bf16.msra.mxu0 0
        %2389 = vmatprep.subr.bf16.mxu0 0
        %2390 = vmatpush1.bf16.msra.mxu0 0
        %2391 = vmatprep.subr.bf16.mxu0 0
        %2392 = vmatpush1.bf16.msra.mxu0 0
        %2393 = vmatprep.subr.bf16.mxu0 0
        %2394 = vmatpush1.bf16.msra.mxu0 0
        %2395 = vmatprep.subr.bf16.mxu0 0
        %2396 = vmatpush1.bf16.msra.mxu0 0
        %2397 = vmatprep.subr.bf16.mxu0 0
        %2398 = vmatpush1.bf16.msra.mxu0 0
        %2399 = vmatprep.subr.bf16.mxu0 0
        %2400 = vmatpush1.bf16.msra.mxu0 0
        %2401 = vmatprep.subr.bf16.mxu0 0
        %2402 = vmatpush1.bf16.msra.mxu0 0
        %2403 = vmatprep.subr.bf16.mxu0 0
        %2404 = vmatpush1.bf16.msra.mxu0 0
        %2405 = vmatprep.mubr.bf16.mxu0 0
        %2406 = vmatmul.mubr.bf16.gmra.mrb[0].mxu0 %v2371
        %v2407 = vpop.f32.mrb[0].mxu0
        %v2408 = vadd.f32 0.0, %v2407
        %v2409 = vpop.f32.mrb[0].mxu0
        %v2410 = vpop.f32.mrb[0].mxu0
        %v2411 = vpop.f32.mrb[0].mxu0
        %2412 = vdwg.mxu0
        %v2413 = vadd.f32 %v2332, %v2408
        %v2414 = vld [vmem:[%s222 + $0x10] sm:$0xc]
        %v2415 = vld [vmem:[%s1 + $0x340] sm:$0xf]
        %v2416 = vld [vmem:[%s1 + $0x344] sm:$0xf]
        %v2417 = vld [vmem:[%s1 + $0x348] sm:$0xf]
        %v2418 = vld [vmem:[%s1 + $0x34c] sm:$0xf]
        %v2419 = vld [vmem:[%s1 + $0x350] sm:$0xf]
        %v2420 = vld [vmem:[%s1 + $0x354] sm:$0xf]
        %v2421 = vld [vmem:[%s1 + $0x358] sm:$0xf]
        %v2422 = vld [vmem:[%s1 + $0x35c] sm:$0xf]
        %v2424 = vunpack.c.l.b16 %v2414
        %v2425 = vpack.c.b16 %v2343, %v2424
        %v2427 = vshrl.u32 %v2425, 16
        %v2429 = vrot.slane %v2427, 2
        %v2430 = vshll.u32 %v2425, 16
        %v2432 = vrot.slane %v2430, 3
        %v2433 = vor.u32 %v2429, %v2432
        %v2442 = vunpack.c.l.b16 %v2415
        %v2443 = vunpack.c.l.b16 %v2416
        %v2444 = vunpack.c.l.b16 %v2417
        %v2445 = vunpack.c.l.b16 %v2418
        %v2446 = vunpack.c.l.b16 %v2419
        %v2447 = vunpack.c.l.b16 %v2420
        %v2448 = vunpack.c.l.b16 %v2421
        %v2449 = vunpack.c.l.b16 %v2422
        %v2450 = vpack.c.b16 %v2443, %v2442
        %v2451 = vpack.c.b16 %v2445, %v2444
        %v2452 = vpack.c.b16 %v2447, %v2446
        %v2453 = vpack.c.b16 %v2449, %v2448
        %v2459 = vsel %vm273, %v2433, 0
        %2461 = vmatprep.subr.bf16.mxu0 0
        %2462 = vmatpush1.bf16.msra.mxu0 %v2450
        %2463 = vmatprep.subr.bf16.mxu0 0
        %2464 = vmatpush1.bf16.msra.mxu0 %v2451
        %2465 = vmatprep.subr.bf16.mxu0 0
        %2466 = vmatpush1.bf16.msra.mxu0 %v2452
        %2467 = vmatprep.subr.bf16.mxu0 0
        %2468 = vmatpush1.bf16.msra.mxu0 %v2453
        %2469 = vmatprep.subr.bf16.mxu0 0
        %2470 = vmatpush1.bf16.msra.mxu0 0
        %2471 = vmatprep.subr.bf16.mxu0 0
        %2472 = vmatpush1.bf16.msra.mxu0 0
        %2473 = vmatprep.subr.bf16.mxu0 0
        %2474 = vmatpush1.bf16.msra.mxu0 0
        %2475 = vmatprep.subr.bf16.mxu0 0
        %2476 = vmatpush1.bf16.msra.mxu0 0
        %2477 = vmatprep.subr.bf16.mxu0 0
        %2478 = vmatpush1.bf16.msra.mxu0 0
        %2479 = vmatprep.subr.bf16.mxu0 0
        %2480 = vmatpush1.bf16.msra.mxu0 0
        %2481 = vmatprep.subr.bf16.mxu0 0
        %2482 = vmatpush1.bf16.msra.mxu0 0
        %2483 = vmatprep.subr.bf16.mxu0 0
        %2484 = vmatpush1.bf16.msra.mxu0 0
        %2485 = vmatprep.subr.bf16.mxu0 0
        %2486 = vmatpush1.bf16.msra.mxu0 0
        %2487 = vmatprep.subr.bf16.mxu0 0
        %2488 = vmatpush1.bf16.msra.mxu0 0
        %2489 = vmatprep.subr.bf16.mxu0 0
        %2490 = vmatpush1.bf16.msra.mxu0 0
        %2491 = vmatprep.subr.bf16.mxu0 0
        %2492 = vmatpush1.bf16.msra.mxu0 0
        %2493 = vmatprep.mubr.bf16.mxu0 0
        %2494 = vmatmul.mubr.bf16.gmra.mrb[0].mxu0 %v2459
        %v2495 = vpop.f32.mrb[0].mxu0
        %v2496 = vadd.f32 0.0, %v2495
        %v2497 = vpop.f32.mrb[0].mxu0
        %v2498 = vpop.f32.mrb[0].mxu0
        %v2499 = vpop.f32.mrb[0].mxu0
        %2500 = vdwg.mxu0
        %v2501 = vadd.f32 %v2413, %v2496
        %v2502 = vld [vmem:[%s222 + $0x14] sm:$0x3]
        %v2503 = vld [vmem:[%s1 + $0x360] sm:$0xf]
        %v2504 = vld [vmem:[%s1 + $0x364] sm:$0xf]
        %v2505 = vld [vmem:[%s1 + $0x368] sm:$0xf]
        %v2506 = vld [vmem:[%s1 + $0x36c] sm:$0xf]
        %v2507 = vld [vmem:[%s1 + $0x370] sm:$0xf]
        %v2508 = vld [vmem:[%s1 + $0x374] sm:$0xf]
        %v2509 = vld [vmem:[%s1 + $0x378] sm:$0xf]
        %v2510 = vld [vmem:[%s1 + $0x37c] sm:$0xf]
        %v2512 = vunpack.c.l.b16 %v2502
        %v2513 = vpack.c.b16 %v2512, %v2424
        %v2514 = vrot.slane %v2513, 2
        %v2523 = vunpack.c.l.b16 %v2503
        %v2524 = vunpack.c.l.b16 %v2504
        %v2525 = vunpack.c.l.b16 %v2505
        %v2526 = vunpack.c.l.b16 %v2506
        %v2527 = vunpack.c.l.b16 %v2507
        %v2528 = vunpack.c.l.b16 %v2508
        %v2529 = vunpack.c.l.b16 %v2509
        %v2530 = vunpack.c.l.b16 %v2510
        %v2531 = vpack.c.b16 %v2524, %v2523
        %v2532 = vpack.c.b16 %v2526, %v2525
        %v2533 = vpack.c.b16 %v2528, %v2527
        %v2534 = vpack.c.b16 %v2530, %v2529
        %v2540 = vsel %vm273, %v2514, 0
        %2542 = vmatprep.subr.bf16.mxu0 0
        %2543 = vmatpush1.bf16.msra.mxu0 %v2531
        %2544 = vmatprep.subr.bf16.mxu0 0
        %2545 = vmatpush1.bf16.msra.mxu0 %v2532
        %2546 = vmatprep.subr.bf16.mxu0 0
        %2547 = vmatpush1.bf16.msra.mxu0 %v2533
        %2548 = vmatprep.subr.bf16.mxu0 0
        %2549 = vmatpush1.bf16.msra.mxu0 %v2534
        %2550 = vmatprep.subr.bf16.mxu0 0
        %2551 = vmatpush1.bf16.msra.mxu0 0
        %2552 = vmatprep.subr.bf16.mxu0 0
        %2553 = vmatpush1.bf16.msra.mxu0 0
        %2554 = vmatprep.subr.bf16.mxu0 0
        %2555 = vmatpush1.bf16.msra.mxu0 0
        %2556 = vmatprep.subr.bf16.mxu0 0
        %2557 = vmatpush1.bf16.msra.mxu0 0
        %2558 = vmatprep.subr.bf16.mxu0 0
        %2559 = vmatpush1.bf16.msra.mxu0 0
        %2560 = vmatprep.subr.bf16.mxu0 0
        %2561 = vmatpush1.bf16.msra.mxu0 0
        %2562 = vmatprep.subr.bf16.mxu0 0
        %2563 = vmatpush1.bf16.msra.mxu0 0
        %2564 = vmatprep.subr.bf16.mxu0 0
        %2565 = vmatpush1.bf16.msra.mxu0 0
        %2566 = vmatprep.subr.bf16.mxu0 0
        %2567 = vmatpush1.bf16.msra.mxu0 0
        %2568 = vmatprep.subr.bf16.mxu0 0
        %2569 = vmatpush1.bf16.msra.mxu0 0
        %2570 = vmatprep.subr.bf16.mxu0 0
        %2571 = vmatpush1.bf16.msra.mxu0 0
        %2572 = vmatprep.subr.bf16.mxu0 0
        %2573 = vmatpush1.bf16.msra.mxu0 0
        %2574 = vmatprep.mubr.bf16.mxu0 0
        %2575 = vmatmul.mubr.bf16.gmra.mrb[0].mxu0 %v2540
        %v2576 = vpop.f32.mrb[0].mxu0
        %v2577 = vadd.f32 0.0, %v2576
        %v2578 = vpop.f32.mrb[0].mxu0
        %v2579 = vpop.f32.mrb[0].mxu0
        %v2580 = vpop.f32.mrb[0].mxu0
        %2581 = vdwg.mxu0
        %v2582 = vadd.f32 %v2501, %v2577
        %v2583 = vld [vmem:[%s222 + $0x10] sm:$0xe]
        %v2584 = vld [vmem:[%s1 + $0x380] sm:$0xf]
        %v2585 = vld [vmem:[%s1 + $0x384] sm:$0xf]
        %v2586 = vld [vmem:[%s1 + $0x388] sm:$0xf]
        %v2587 = vld [vmem:[%s1 + $0x38c] sm:$0xf]
        %v2588 = vld [vmem:[%s1 + $0x390] sm:$0xf]
        %v2589 = vld [vmem:[%s1 + $0x394] sm:$0xf]
        %v2590 = vld [vmem:[%s1 + $0x398] sm:$0xf]
        %v2591 = vld [vmem:[%s1 + $0x39c] sm:$0xf]
        %v2593 = vunpack.c.l.b16 %v2583
        %v2594 = vpack.c.b16 %v2512, %v2593
        %v2596 = vshrl.u32 %v2594, 16
        %v2598 = vrot.slane %v2596, 1
        %v2599 = vshll.u32 %v2594, 16
        %v2601 = vrot.slane %v2599, 2
        %v2602 = vor.u32 %v2598, %v2601
        %v2611 = vunpack.c.l.b16 %v2584
        %v2612 = vunpack.c.l.b16 %v2585
        %v2613 = vunpack.c.l.b16 %v2586
        %v2614 = vunpack.c.l.b16 %v2587
        %v2615 = vunpack.c.l.b16 %v2588
        %v2616 = vunpack.c.l.b16 %v2589
        %v2617 = vunpack.c.l.b16 %v2590
        %v2618 = vunpack.c.l.b16 %v2591
        %v2619 = vpack.c.b16 %v2612, %v2611
        %v2620 = vpack.c.b16 %v2614, %v2613
        %v2621 = vpack.c.b16 %v2616, %v2615
        %v2622 = vpack.c.b16 %v2618, %v2617
        %v2628 = vsel %vm273, %v2602, 0
        %2630 = vmatprep.subr.bf16.mxu0 0
        %2631 = vmatpush1.bf16.msra.mxu0 %v2619
        %2632 = vmatprep.subr.bf16.mxu0 0
        %2633 = vmatpush1.bf16.msra.mxu0 %v2620
        %2634 = vmatprep.subr.bf16.mxu0 0
        %2635 = vmatpush1.bf16.msra.mxu0 %v2621
        %2636 = vmatprep.subr.bf16.mxu0 0
        %2637 = vmatpush1.bf16.msra.mxu0 %v2622
        %2638 = vmatprep.subr.bf16.mxu0 0
        %2639 = vmatpush1.bf16.msra.mxu0 0
        %2640 = vmatprep.subr.bf16.mxu0 0
        %2641 = vmatpush1.bf16.msra.mxu0 0
        %2642 = vmatprep.subr.bf16.mxu0 0
        %2643 = vmatpush1.bf16.msra.mxu0 0
        %2644 = vmatprep.subr.bf16.mxu0 0
        %2645 = vmatpush1.bf16.msra.mxu0 0
        %2646 = vmatprep.subr.bf16.mxu0 0
        %2647 = vmatpush1.bf16.msra.mxu0 0
        %2648 = vmatprep.subr.bf16.mxu0 0
        %2649 = vmatpush1.bf16.msra.mxu0 0
        %2650 = vmatprep.subr.bf16.mxu0 0
        %2651 = vmatpush1.bf16.msra.mxu0 0
        %2652 = vmatprep.subr.bf16.mxu0 0
        %2653 = vmatpush1.bf16.msra.mxu0 0
        %2654 = vmatprep.subr.bf16.mxu0 0
        %2655 = vmatpush1.bf16.msra.mxu0 0
        %2656 = vmatprep.subr.bf16.mxu0 0
        %2657 = vmatpush1.bf16.msra.mxu0 0
        %2658 = vmatprep.subr.bf16.mxu0 0
        %2659 = vmatpush1.bf16.msra.mxu0 0
        %2660 = vmatprep.subr.bf16.mxu0 0
        %2661 = vmatpush1.bf16.msra.mxu0 0
        %2662 = vmatprep.mubr.bf16.mxu0 0
        %2663 = vmatmul.mubr.bf16.gmra.mrb[0].mxu0 %v2628
        %v2664 = vpop.f32.mrb[0].mxu0
        %v2665 = vadd.f32 0.0, %v2664
        %v2666 = vpop.f32.mrb[0].mxu0
        %v2667 = vpop.f32.mrb[0].mxu0
        %v2668 = vpop.f32.mrb[0].mxu0
        %2669 = vdwg.mxu0
        %v2670 = vadd.f32 %v2582, %v2665
        %v2671 = vld [vmem:[%s222 + $0x14] sm:$0x1]
        %v2672 = vld [vmem:[%s1 + $0x3a0] sm:$0xf]
        %v2673 = vld [vmem:[%s1 + $0x3a4] sm:$0xf]
        %v2674 = vld [vmem:[%s1 + $0x3a8] sm:$0xf]
        %v2675 = vld [vmem:[%s1 + $0x3ac] sm:$0xf]
        %v2676 = vld [vmem:[%s1 + $0x3b0] sm:$0xf]
        %v2677 = vld [vmem:[%s1 + $0x3b4] sm:$0xf]
        %v2678 = vld [vmem:[%s1 + $0x3b8] sm:$0xf]
        %v2679 = vld [vmem:[%s1 + $0x3bc] sm:$0xf]
        %v2681 = vunpack.c.l.b16 %v2671
        %v2682 = vpack.c.b16 %v2681, %v2593
        %v2683 = vrot.slane %v2682, 1
        %v2692 = vunpack.c.l.b16 %v2672
        %v2693 = vunpack.c.l.b16 %v2673
        %v2694 = vunpack.c.l.b16 %v2674
        %v2695 = vunpack.c.l.b16 %v2675
        %v2696 = vunpack.c.l.b16 %v2676
        %v2697 = vunpack.c.l.b16 %v2677
        %v2698 = vunpack.c.l.b16 %v2678
        %v2699 = vunpack.c.l.b16 %v2679
        %v2700 = vpack.c.b16 %v2693, %v2692
        %v2701 = vpack.c.b16 %v2695, %v2694
        %v2702 = vpack.c.b16 %v2697, %v2696
        %v2703 = vpack.c.b16 %v2699, %v2698
        %v2709 = vsel %vm273, %v2683, 0
        %2711 = vmatprep.subr.bf16.mxu0 0
        %2712 = vmatpush1.bf16.msra.mxu0 %v2700
        %2713 = vmatprep.subr.bf16.mxu0 0
        %2714 = vmatpush1.bf16.msra.mxu0 %v2701
        %2715 = vmatprep.subr.bf16.mxu0 0
        %2716 = vmatpush1.bf16.msra.mxu0 %v2702
        %2717 = vmatprep.subr.bf16.mxu0 0
        %2718 = vmatpush1.bf16.msra.mxu0 %v2703
        %2719 = vmatprep.subr.bf16.mxu0 0
        %2720 = vmatpush1.bf16.msra.mxu0 0
        %2721 = vmatprep.subr.bf16.mxu0 0
        %2722 = vmatpush1.bf16.msra.mxu0 0
        %2723 = vmatprep.subr.bf16.mxu0 0
        %2724 = vmatpush1.bf16.msra.mxu0 0
        %2725 = vmatprep.subr.bf16.mxu0 0
        %2726 = vmatpush1.bf16.msra.mxu0 0
        %2727 = vmatprep.subr.bf16.mxu0 0
        %2728 = vmatpush1.bf16.msra.mxu0 0
        %2729 = vmatprep.subr.bf16.mxu0 0
        %2730 = vmatpush1.bf16.msra.mxu0 0
        %2731 = vmatprep.subr.bf16.mxu0 0
        %2732 = vmatpush1.bf16.msra.mxu0 0
        %2733 = vmatprep.subr.bf16.mxu0 0
        %2734 = vmatpush1.bf16.msra.mxu0 0
        %2735 = vmatprep.subr.bf16.mxu0 0
        %2736 = vmatpush1.bf16.msra.mxu0 0
        %2737 = vmatprep.subr.bf16.mxu0 0
        %2738 = vmatpush1.bf16.msra.mxu0 0
        %2739 = vmatprep.subr.bf16.mxu0 0
        %2740 = vmatpush1.bf16.msra.mxu0 0
        %2741 = vmatprep.subr.bf16.mxu0 0
        %2742 = vmatpush1.bf16.msra.mxu0 0
        %2743 = vmatprep.mubr.bf16.mxu0 0
        %2744 = vmatmul.mubr.bf16.gmra.mrb[0].mxu0 %v2709
        %v2745 = vpop.f32.mrb[0].mxu0
        %v2746 = vadd.f32 0.0, %v2745
        %v2747 = vpop.f32.mrb[0].mxu0
        %v2748 = vpop.f32.mrb[0].mxu0
        %v2749 = vpop.f32.mrb[0].mxu0
        %2750 = vdwg.mxu0
        %v2751 = vadd.f32 %v2670, %v2746
        %v2752 = vld [vmem:[%s222 + $0x10] sm:$0xf]
        %v2753 = vld [vmem:[%s1 + $0x3c0] sm:$0xf]
        %v2754 = vld [vmem:[%s1 + $0x3c4] sm:$0xf]
        %v2755 = vld [vmem:[%s1 + $0x3c8] sm:$0xf]
        %v2756 = vld [vmem:[%s1 + $0x3cc] sm:$0xf]
        %v2757 = vld [vmem:[%s1 + $0x3d0] sm:$0xf]
        %v2758 = vld [vmem:[%s1 + $0x3d4] sm:$0xf]
        %v2759 = vld [vmem:[%s1 + $0x3d8] sm:$0xf]
        %v2760 = vld [vmem:[%s1 + $0x3dc] sm:$0xf]
        %v2762 = vunpack.c.l.b16 %v2752
        %v2763 = vpack.c.b16 %v2681, %v2762
        %v2765 = vshrl.u32 %v2763, 16
        %v2767 = vshll.u32 %v2763, 16
        %v2769 = vrot.slane %v2767, 1
        %v2770 = vor.u32 %v2765, %v2769
        %v2779 = vunpack.c.l.b16 %v2753
        %v2780 = vunpack.c.l.b16 %v2754
        %v2781 = vunpack.c.l.b16 %v2755
        %v2782 = vunpack.c.l.b16 %v2756
        %v2783 = vunpack.c.l.b16 %v2757
        %v2784 = vunpack.c.l.b16 %v2758
        %v2785 = vunpack.c.l.b16 %v2759
        %v2786 = vunpack.c.l.b16 %v2760
        %v2787 = vpack.c.b16 %v2780, %v2779
        %v2788 = vpack.c.b16 %v2782, %v2781
        %v2789 = vpack.c.b16 %v2784, %v2783
        %v2790 = vpack.c.b16 %v2786, %v2785
        %v2796 = vsel %vm273, %v2770, 0
        %2798 = vmatprep.subr.bf16.mxu0 0
        %2799 = vmatpush1.bf16.msra.mxu0 %v2787
        %2800 = vmatprep.subr.bf16.mxu0 0
        %2801 = vmatpush1.bf16.msra.mxu0 %v2788
        %2802 = vmatprep.subr.bf16.mxu0 0
        %2803 = vmatpush1.bf16.msra.mxu0 %v2789
        %2804 = vmatprep.subr.bf16.mxu0 0
        %2805 = vmatpush1.bf16.msra.mxu0 %v2790
        %2806 = vmatprep.subr.bf16.mxu0 0
        %2807 = vmatpush1.bf16.msra.mxu0 0
        %2808 = vmatprep.subr.bf16.mxu0 0
        %2809 = vmatpush1.bf16.msra.mxu0 0
        %2810 = vmatprep.subr.bf16.mxu0 0
        %2811 = vmatpush1.bf16.msra.mxu0 0
        %2812 = vmatprep.subr.bf16.mxu0 0
        %2813 = vmatpush1.bf16.msra.mxu0 0
        %2814 = vmatprep.subr.bf16.mxu0 0
        %2815 = vmatpush1.bf16.msra.mxu0 0
        %2816 = vmatprep.subr.bf16.mxu0 0
        %2817 = vmatpush1.bf16.msra.mxu0 0
        %2818 = vmatprep.subr.bf16.mxu0 0
        %2819 = vmatpush1.bf16.msra.mxu0 0
        %2820 = vmatprep.subr.bf16.mxu0 0
        %2821 = vmatpush1.bf16.msra.mxu0 0
        %2822 = vmatprep.subr.bf16.mxu0 0
        %2823 = vmatpush1.bf16.msra.mxu0 0
        %2824 = vmatprep.subr.bf16.mxu0 0
        %2825 = vmatpush1.bf16.msra.mxu0 0
        %2826 = vmatprep.subr.bf16.mxu0 0
        %2827 = vmatpush1.bf16.msra.mxu0 0
        %2828 = vmatprep.subr.bf16.mxu0 0
        %2829 = vmatpush1.bf16.msra.mxu0 0
        %2830 = vmatprep.mubr.bf16.mxu0 0
        %2831 = vmatmul.mubr.bf16.gmra.mrb[0].mxu0 %v2796
        %v2832 = vpop.f32.mrb[0].mxu0
        %v2833 = vadd.f32 0.0, %v2832
        %v2834 = vpop.f32.mrb[0].mxu0
        %v2835 = vpop.f32.mrb[0].mxu0
        %v2836 = vpop.f32.mrb[0].mxu0
        %2837 = vdwg.mxu0
        %v2838 = vadd.f32 %v2751, %v2833
        %v2839 = vld [vmem:[%s222 + $0x10] sm:$0xf]
        %v2840 = vld [vmem:[%s1 + $0x3e0] sm:$0xf]
        %v2841 = vld [vmem:[%s1 + $0x3e4] sm:$0xf]
        %v2842 = vld [vmem:[%s1 + $0x3e8] sm:$0xf]
        %v2843 = vld [vmem:[%s1 + $0x3ec] sm:$0xf]
        %v2844 = vld [vmem:[%s1 + $0x3f0] sm:$0xf]
        %v2845 = vld [vmem:[%s1 + $0x3f4] sm:$0xf]
        %v2846 = vld [vmem:[%s1 + $0x3f8] sm:$0xf]
        %v2847 = vld [vmem:[%s1 + $0x3fc] sm:$0xf]
        %v2856 = vunpack.c.l.b16 %v2840
        %v2857 = vunpack.c.l.b16 %v2841
        %v2858 = vunpack.c.l.b16 %v2842
        %v2859 = vunpack.c.l.b16 %v2843
        %v2860 = vunpack.c.l.b16 %v2844
        %v2861 = vunpack.c.l.b16 %v2845
        %v2862 = vunpack.c.l.b16 %v2846
        %v2863 = vunpack.c.l.b16 %v2847
        %v2864 = vpack.c.b16 %v2857, %v2856
        %v2865 = vpack.c.b16 %v2859, %v2858
        %v2866 = vpack.c.b16 %v2861, %v2860
        %v2867 = vpack.c.b16 %v2863, %v2862
        %v2873 = vsel %vm273, %v2839, 0
        %2875 = vmatprep.subr.bf16.mxu0 0
        %2876 = vmatpush1.bf16.msra.mxu0 %v2864
        %2877 = vmatprep.subr.bf16.mxu0 0
        %2878 = vmatpush1.bf16.msra.mxu0 %v2865
        %2879 = vmatprep.subr.bf16.mxu0 0
        %2880 = vmatpush1.bf16.msra.mxu0 %v2866
        %2881 = vmatprep.subr.bf16.mxu0 0
        %2882 = vmatpush1.bf16.msra.mxu0 %v2867
        %2883 = vmatprep.subr.bf16.mxu0 0
        %2884 = vmatpush1.bf16.msra.mxu0 0
        %2885 = vmatprep.subr.bf16.mxu0 0
        %2886 = vmatpush1.bf16.msra.mxu0 0
        %2887 = vmatprep.subr.bf16.mxu0 0
        %2888 = vmatpush1.bf16.msra.mxu0 0
        %2889 = vmatprep.subr.bf16.mxu0 0
        %2890 = vmatpush1.bf16.msra.mxu0 0
        %2891 = vmatprep.subr.bf16.mxu0 0
        %2892 = vmatpush1.bf16.msra.mxu0 0
        %2893 = vmatprep.subr.bf16.mxu0 0
        %2894 = vmatpush1.bf16.msra.mxu0 0
        %2895 = vmatprep.subr.bf16.mxu0 0
        %2896 = vmatpush1.bf16.msra.mxu0 0
        %2897 = vmatprep.subr.bf16.mxu0 0
        %2898 = vmatpush1.bf16.msra.mxu0 0
        %2899 = vmatprep.subr.bf16.mxu0 0
        %2900 = vmatpush1.bf16.msra.mxu0 0
        %2901 = vmatprep.subr.bf16.mxu0 0
        %2902 = vmatpush1.bf16.msra.mxu0 0
        %2903 = vmatprep.subr.bf16.mxu0 0
        %2904 = vmatpush1.bf16.msra.mxu0 0
        %2905 = vmatprep.subr.bf16.mxu0 0
        %2906 = vmatpush1.bf16.msra.mxu0 0
        %2907 = vmatprep.mubr.bf16.mxu0 0
        %2908 = vmatmul.mubr.bf16.gmra.mrb[0].mxu0 %v2873
        %v2909 = vpop.f32.mrb[0].mxu0
        %v2910 = vadd.f32 0.0, %v2909
        %v2911 = vpop.f32.mrb[0].mxu0
        %v2912 = vpop.f32.mrb[0].mxu0
        %v2913 = vpop.f32.mrb[0].mxu0
        %2914 = vdwg.mxu0
        %v2915 = vadd.f32 %v2838, %v2910
        %v2916 = vld [vmem:[%s222 + $0xc] sm:$0x8]
        %v2917 = vld [vmem:[%s1 + $0x400] sm:$0xf]
        %v2918 = vld [vmem:[%s1 + $0x404] sm:$0xf]
        %v2919 = vld [vmem:[%s1 + $0x408] sm:$0xf]
        %v2920 = vld [vmem:[%s1 + $0x40c] sm:$0xf]
        %v2921 = vld [vmem:[%s1 + $0x410] sm:$0xf]
        %v2922 = vld [vmem:[%s1 + $0x414] sm:$0xf]
        %v2923 = vld [vmem:[%s1 + $0x418] sm:$0xf]
        %v2924 = vld [vmem:[%s1 + $0x41c] sm:$0xf]
        %v2927 = vunpack.c.l.b16 %v2916
        %v2928 = vunpack.c.l.b16 %v2839
        %v2929 = vpack.c.b16 %v2928, %v2927
        %v2931 = vshrl.u32 %v2929, 16
        %v2933 = vrot.slane %v2931, 3
        %v2934 = vshll.u32 %v2929, 16
        %v2936 = vrot.slane %v2934, 4
        %v2937 = vor.u32 %v2933, %v2936
        %v2946 = vunpack.c.l.b16 %v2917
        %v2947 = vunpack.c.l.b16 %v2918
        %v2948 = vunpack.c.l.b16 %v2919
        %v2949 = vunpack.c.l.b16 %v2920
        %v2950 = vunpack.c.l.b16 %v2921
        %v2951 = vunpack.c.l.b16 %v2922
        %v2952 = vunpack.c.l.b16 %v2923
        %v2953 = vunpack.c.l.b16 %v2924
        %v2954 = vpack.c.b16 %v2947, %v2946
        %v2955 = vpack.c.b16 %v2949, %v2948
        %v2956 = vpack.c.b16 %v2951, %v2950
        %v2957 = vpack.c.b16 %v2953, %v2952
        %v2963 = vsel %vm273, %v2937, 0
        %2965 = vmatprep.subr.bf16.mxu0 0
        %2966 = vmatpush1.bf16.msra.mxu0 %v2954
        %2967 = vmatprep.subr.bf16.mxu0 0
        %2968 = vmatpush1.bf16.msra.mxu0 %v2955
        %2969 = vmatprep.subr.bf16.mxu0 0
        %2970 = vmatpush1.bf16.msra.mxu0 %v2956
        %2971 = vmatprep.subr.bf16.mxu0 0
        %2972 = vmatpush1.bf16.msra.mxu0 %v2957
        %2973 = vmatprep.subr.bf16.mxu0 0
        %2974 = vmatpush1.bf16.msra.mxu0 0
        %2975 = vmatprep.subr.bf16.mxu0 0
        %2976 = vmatpush1.bf16.msra.mxu0 0
        %2977 = vmatprep.subr.bf16.mxu0 0
        %2978 = vmatpush1.bf16.msra.mxu0 0
        %2979 = vmatprep.subr.bf16.mxu0 0
        %2980 = vmatpush1.bf16.msra.mxu0 0
        %2981 = vmatprep.subr.bf16.mxu0 0
        %2982 = vmatpush1.bf16.msra.mxu0 0
        %2983 = vmatprep.subr.bf16.mxu0 0
        %2984 = vmatpush1.bf16.msra.mxu0 0
        %2985 = vmatprep.subr.bf16.mxu0 0
        %2986 = vmatpush1.bf16.msra.mxu0 0
        %2987 = vmatprep.subr.bf16.mxu0 0
        %2988 = vmatpush1.bf16.msra.mxu0 0
        %2989 = vmatprep.subr.bf16.mxu0 0
        %2990 = vmatpush1.bf16.msra.mxu0 0
        %2991 = vmatprep.subr.bf16.mxu0 0
        %2992 = vmatpush1.bf16.msra.mxu0 0
        %2993 = vmatprep.subr.bf16.mxu0 0
        %2994 = vmatpush1.bf16.msra.mxu0 0
        %2995 = vmatprep.subr.bf16.mxu0 0
        %2996 = vmatpush1.bf16.msra.mxu0 0
        %2997 = vmatprep.mubr.bf16.mxu0 0
        %2998 = vmatmul.mubr.bf16.gmra.mrb[0].mxu0 %v2963
        %v2999 = vpop.f32.mrb[0].mxu0
        %v3000 = vadd.f32 0.0, %v2999
        %v3001 = vpop.f32.mrb[0].mxu0
        %v3002 = vpop.f32.mrb[0].mxu0
        %v3003 = vpop.f32.mrb[0].mxu0
        %3004 = vdwg.mxu0
        %v3005 = vadd.f32 %v2915, %v3000
        %v3006 = vld [vmem:[%s222 + $0x10] sm:$0x7]
        %v3007 = vld [vmem:[%s1 + $0x420] sm:$0xf]
        %v3008 = vld [vmem:[%s1 + $0x424] sm:$0xf]
        %v3009 = vld [vmem:[%s1 + $0x428] sm:$0xf]
        %v3010 = vld [vmem:[%s1 + $0x42c] sm:$0xf]
        %v3011 = vld [vmem:[%s1 + $0x430] sm:$0xf]
        %v3012 = vld [vmem:[%s1 + $0x434] sm:$0xf]
        %v3013 = vld [vmem:[%s1 + $0x438] sm:$0xf]
        %v3014 = vld [vmem:[%s1 + $0x43c] sm:$0xf]
        %v3016 = vunpack.c.l.b16 %v3006
        %v3017 = vpack.c.b16 %v3016, %v2927
        %v3018 = vrot.slane %v3017, 3
        %v3027 = vunpack.c.l.b16 %v3007
        %v3028 = vunpack.c.l.b16 %v3008
        %v3029 = vunpack.c.l.b16 %v3009
        %v3030 = vunpack.c.l.b16 %v3010
        %v3031 = vunpack.c.l.b16 %v3011
        %v3032 = vunpack.c.l.b16 %v3012
        %v3033 = vunpack.c.l.b16 %v3013
        %v3034 = vunpack.c.l.b16 %v3014
        %v3035 = vpack.c.b16 %v3028, %v3027
        %v3036 = vpack.c.b16 %v3030, %v3029
        %v3037 = vpack.c.b16 %v3032, %v3031
        %v3038 = vpack.c.b16 %v3034, %v3033
        %v3044 = vsel %vm273, %v3018, 0
        %3046 = vmatprep.subr.bf16.mxu0 0
        %3047 = vmatpush1.bf16.msra.mxu0 %v3035
        %3048 = vmatprep.subr.bf16.mxu0 0
        %3049 = vmatpush1.bf16.msra.mxu0 %v3036
        %3050 = vmatprep.subr.bf16.mxu0 0
        %3051 = vmatpush1.bf16.msra.mxu0 %v3037
        %3052 = vmatprep.subr.bf16.mxu0 0
        %3053 = vmatpush1.bf16.msra.mxu0 %v3038
        %3054 = vmatprep.subr.bf16.mxu0 0
        %3055 = vmatpush1.bf16.msra.mxu0 0
        %3056 = vmatprep.subr.bf16.mxu0 0
        %3057 = vmatpush1.bf16.msra.mxu0 0
        %3058 = vmatprep.subr.bf16.mxu0 0
        %3059 = vmatpush1.bf16.msra.mxu0 0
        %3060 = vmatprep.subr.bf16.mxu0 0
        %3061 = vmatpush1.bf16.msra.mxu0 0
        %3062 = vmatprep.subr.bf16.mxu0 0
        %3063 = vmatpush1.bf16.msra.mxu0 0
        %3064 = vmatprep.subr.bf16.mxu0 0
        %3065 = vmatpush1.bf16.msra.mxu0 0
        %3066 = vmatprep.subr.bf16.mxu0 0
        %3067 = vmatpush1.bf16.msra.mxu0 0
        %3068 = vmatprep.subr.bf16.mxu0 0
        %3069 = vmatpush1.bf16.msra.mxu0 0
        %3070 = vmatprep.subr.bf16.mxu0 0
        %3071 = vmatpush1.bf16.msra.mxu0 0
        %3072 = vmatprep.subr.bf16.mxu0 0
        %3073 = vmatpush1.bf16.msra.mxu0 0
        %3074 = vmatprep.subr.bf16.mxu0 0
        %3075 = vmatpush1.bf16.msra.mxu0 0
        %3076 = vmatprep.subr.bf16.mxu0 0
        %3077 = vmatpush1.bf16.msra.mxu0 0
        %3078 = vmatprep.mubr.bf16.mxu0 0
        %3079 = vmatmul.mubr.bf16.gmra.mrb[0].mxu0 %v3044
        %v3080 = vpop.f32.mrb[0].mxu0
        %v3081 = vadd.f32 0.0, %v3080
        %v3082 = vpop.f32.mrb[0].mxu0
        %v3083 = vpop.f32.mrb[0].mxu0
        %v3084 = vpop.f32.mrb[0].mxu0
        %3085 = vdwg.mxu0
        %v3086 = vadd.f32 %v3005, %v3081
        %v3087 = vld [vmem:[%s222 + $0xc] sm:$0xc]
        %v3088 = vld [vmem:[%s1 + $0x440] sm:$0xf]
        %v3089 = vld [vmem:[%s1 + $0x444] sm:$0xf]
        %v3090 = vld [vmem:[%s1 + $0x448] sm:$0xf]
        %v3091 = vld [vmem:[%s1 + $0x44c] sm:$0xf]
        %v3092 = vld [vmem:[%s1 + $0x450] sm:$0xf]
        %v3093 = vld [vmem:[%s1 + $0x454] sm:$0xf]
        %v3094 = vld [vmem:[%s1 + $0x458] sm:$0xf]
        %v3095 = vld [vmem:[%s1 + $0x45c] sm:$0xf]
        %v3097 = vunpack.c.l.b16 %v3087
        %v3098 = vpack.c.b16 %v3016, %v3097
        %v3100 = vshrl.u32 %v3098, 16
        %v3102 = vrot.slane %v3100, 2
        %v3103 = vshll.u32 %v3098, 16
        %v3105 = vrot.slane %v3103, 3
        %v3106 = vor.u32 %v3102, %v3105
        %v3115 = vunpack.c.l.b16 %v3088
        %v3116 = vunpack.c.l.b16 %v3089
        %v3117 = vunpack.c.l.b16 %v3090
        %v3118 = vunpack.c.l.b16 %v3091
        %v3119 = vunpack.c.l.b16 %v3092
        %v3120 = vunpack.c.l.b16 %v3093
        %v3121 = vunpack.c.l.b16 %v3094
        %v3122 = vunpack.c.l.b16 %v3095
        %v3123 = vpack.c.b16 %v3116, %v3115
        %v3124 = vpack.c.b16 %v3118, %v3117
        %v3125 = vpack.c.b16 %v3120, %v3119
        %v3126 = vpack.c.b16 %v3122, %v3121
        %v3132 = vsel %vm273, %v3106, 0
        %3134 = vmatprep.subr.bf16.mxu0 0
        %3135 = vmatpush1.bf16.msra.mxu0 %v3123
        %3136 = vmatprep.subr.bf16.mxu0 0
        %3137 = vmatpush1.bf16.msra.mxu0 %v3124
        %3138 = vmatprep.subr.bf16.mxu0 0
        %3139 = vmatpush1.bf16.msra.mxu0 %v3125
        %3140 = vmatprep.subr.bf16.mxu0 0
        %3141 = vmatpush1.bf16.msra.mxu0 %v3126
        %3142 = vmatprep.subr.bf16.mxu0 0
        %3143 = vmatpush1.bf16.msra.mxu0 0
        %3144 = vmatprep.subr.bf16.mxu0 0
        %3145 = vmatpush1.bf16.msra.mxu0 0
        %3146 = vmatprep.subr.bf16.mxu0 0
        %3147 = vmatpush1.bf16.msra.mxu0 0
        %3148 = vmatprep.subr.bf16.mxu0 0
        %3149 = vmatpush1.bf16.msra.mxu0 0
        %3150 = vmatprep.subr.bf16.mxu0 0
        %3151 = vmatpush1.bf16.msra.mxu0 0
        %3152 = vmatprep.subr.bf16.mxu0 0
        %3153 = vmatpush1.bf16.msra.mxu0 0
        %3154 = vmatprep.subr.bf16.mxu0 0
        %3155 = vmatpush1.bf16.msra.mxu0 0
        %3156 = vmatprep.subr.bf16.mxu0 0
        %3157 = vmatpush1.bf16.msra.mxu0 0
        %3158 = vmatprep.subr.bf16.mxu0 0
        %3159 = vmatpush1.bf16.msra.mxu0 0
        %3160 = vmatprep.subr.bf16.mxu0 0
        %3161 = vmatpush1.bf16.msra.mxu0 0
        %3162 = vmatprep.subr.bf16.mxu0 0
        %3163 = vmatpush1.bf16.msra.mxu0 0
        %3164 = vmatprep.subr.bf16.mxu0 0
        %3165 = vmatpush1.bf16.msra.mxu0 0
        %3166 = vmatprep.mubr.bf16.mxu0 0
        %3167 = vmatmul.mubr.bf16.gmra.mrb[0].mxu0 %v3132
        %v3168 = vpop.f32.mrb[0].mxu0
        %v3169 = vadd.f32 0.0, %v3168
        %v3170 = vpop.f32.mrb[0].mxu0
        %v3171 = vpop.f32.mrb[0].mxu0
        %v3172 = vpop.f32.mrb[0].mxu0
        %3173 = vdwg.mxu0
        %v3174 = vadd.f32 %v3086, %v3169
        %v3175 = vld [vmem:[%s222 + $0x10] sm:$0x3]
        %v3176 = vld [vmem:[%s1 + $0x460] sm:$0xf]
        %v3177 = vld [vmem:[%s1 + $0x464] sm:$0xf]
        %v3178 = vld [vmem:[%s1 + $0x468] sm:$0xf]
        %v3179 = vld [vmem:[%s1 + $0x46c] sm:$0xf]
        %v3180 = vld [vmem:[%s1 + $0x470] sm:$0xf]
        %v3181 = vld [vmem:[%s1 + $0x474] sm:$0xf]
        %v3182 = vld [vmem:[%s1 + $0x478] sm:$0xf]
        %v3183 = vld [vmem:[%s1 + $0x47c] sm:$0xf]
        %v3185 = vunpack.c.l.b16 %v3175
        %v3186 = vpack.c.b16 %v3185, %v3097
        %v3187 = vrot.slane %v3186, 2
        %v3196 = vunpack.c.l.b16 %v3176
        %v3197 = vunpack.c.l.b16 %v3177
        %v3198 = vunpack.c.l.b16 %v3178
        %v3199 = vunpack.c.l.b16 %v3179
        %v3200 = vunpack.c.l.b16 %v3180
        %v3201 = vunpack.c.l.b16 %v3181
        %v3202 = vunpack.c.l.b16 %v3182
        %v3203 = vunpack.c.l.b16 %v3183
        %v3204 = vpack.c.b16 %v3197, %v3196
        %v3205 = vpack.c.b16 %v3199, %v3198
        %v3206 = vpack.c.b16 %v3201, %v3200
        %v3207 = vpack.c.b16 %v3203, %v3202
        %v3213 = vsel %vm273, %v3187, 0
        %3215 = vmatprep.subr.bf16.mxu0 0
        %3216 = vmatpush1.bf16.msra.mxu0 %v3204
        %3217 = vmatprep.subr.bf16.mxu0 0
        %3218 = vmatpush1.bf16.msra.mxu0 %v3205
        %3219 = vmatprep.subr.bf16.mxu0 0
        %3220 = vmatpush1.bf16.msra.mxu0 %v3206
        %3221 = vmatprep.subr.bf16.mxu0 0
        %3222 = vmatpush1.bf16.msra.mxu0 %v3207
        %3223 = vmatprep.subr.bf16.mxu0 0
        %3224 = vmatpush1.bf16.msra.mxu0 0
        %3225 = vmatprep.subr.bf16.mxu0 0
        %3226 = vmatpush1.bf16.msra.mxu0 0
        %3227 = vmatprep.subr.bf16.mxu0 0
        %3228 = vmatpush1.bf16.msra.mxu0 0
        %3229 = vmatprep.subr.bf16.mxu0 0
        %3230 = vmatpush1.bf16.msra.mxu0 0
        %3231 = vmatprep.subr.bf16.mxu0 0
        %3232 = vmatpush1.bf16.msra.mxu0 0
        %3233 = vmatprep.subr.bf16.mxu0 0
        %3234 = vmatpush1.bf16.msra.mxu0 0
        %3235 = vmatprep.subr.bf16.mxu0 0
        %3236 = vmatpush1.bf16.msra.mxu0 0
        %3237 = vmatprep.subr.bf16.mxu0 0
        %3238 = vmatpush1.bf16.msra.mxu0 0
        %3239 = vmatprep.subr.bf16.mxu0 0
        %3240 = vmatpush1.bf16.msra.mxu0 0
        %3241 = vmatprep.subr.bf16.mxu0 0
        %3242 = vmatpush1.bf16.msra.mxu0 0
        %3243 = vmatprep.subr.bf16.mxu0 0
        %3244 = vmatpush1.bf16.msra.mxu0 0
        %3245 = vmatprep.subr.bf16.mxu0 0
        %3246 = vmatpush1.bf16.msra.mxu0 0
        %3247 = vmatprep.mubr.bf16.mxu0 0
        %3248 = vmatmul.mubr.bf16.gmra.mrb[0].mxu0 %v3213
        %v3249 = vpop.f32.mrb[0].mxu0
        %v3250 = vadd.f32 0.0, %v3249
        %v3251 = vpop.f32.mrb[0].mxu0
        %v3252 = vpop.f32.mrb[0].mxu0
        %v3253 = vpop.f32.mrb[0].mxu0
        %3254 = vdwg.mxu0
        %v3255 = vadd.f32 %v3174, %v3250
        %v3256 = vld [vmem:[%s222 + $0xc] sm:$0xe]
        %v3257 = vld [vmem:[%s1 + $0x480] sm:$0xf]
        %v3258 = vld [vmem:[%s1 + $0x484] sm:$0xf]
        %v3259 = vld [vmem:[%s1 + $0x488] sm:$0xf]
        %v3260 = vld [vmem:[%s1 + $0x48c] sm:$0xf]
        %v3261 = vld [vmem:[%s1 + $0x490] sm:$0xf]
        %v3262 = vld [vmem:[%s1 + $0x494] sm:$0xf]
        %v3263 = vld [vmem:[%s1 + $0x498] sm:$0xf]
        %v3264 = vld [vmem:[%s1 + $0x49c] sm:$0xf]
        %v3266 = vunpack.c.l.b16 %v3256
        %v3267 = vpack.c.b16 %v3185, %v3266
        %v3269 = vshrl.u32 %v3267, 16
        %v3271 = vrot.slane %v3269, 1
        %v3272 = vshll.u32 %v3267, 16
        %v3274 = vrot.slane %v3272, 2
        %v3275 = vor.u32 %v3271, %v3274
        %v3284 = vunpack.c.l.b16 %v3257
        %v3285 = vunpack.c.l.b16 %v3258
        %v3286 = vunpack.c.l.b16 %v3259
        %v3287 = vunpack.c.l.b16 %v3260
        %v3288 = vunpack.c.l.b16 %v3261
        %v3289 = vunpack.c.l.b16 %v3262
        %v3290 = vunpack.c.l.b16 %v3263
        %v3291 = vunpack.c.l.b16 %v3264
        %v3292 = vpack.c.b16 %v3285, %v3284
        %v3293 = vpack.c.b16 %v3287, %v3286
        %v3294 = vpack.c.b16 %v3289, %v3288
        %v3295 = vpack.c.b16 %v3291, %v3290
        %v3301 = vsel %vm273, %v3275, 0
        %3303 = vmatprep.subr.bf16.mxu0 0
        %3304 = vmatpush1.bf16.msra.mxu0 %v3292
        %3305 = vmatprep.subr.bf16.mxu0 0
        %3306 = vmatpush1.bf16.msra.mxu0 %v3293
        %3307 = vmatprep.subr.bf16.mxu0 0
        %3308 = vmatpush1.bf16.msra.mxu0 %v3294
        %3309 = vmatprep.subr.bf16.mxu0 0
        %3310 = vmatpush1.bf16.msra.mxu0 %v3295
        %3311 = vmatprep.subr.bf16.mxu0 0
        %3312 = vmatpush1.bf16.msra.mxu0 0
        %3313 = vmatprep.subr.bf16.mxu0 0
        %3314 = vmatpush1.bf16.msra.mxu0 0
        %3315 = vmatprep.subr.bf16.mxu0 0
        %3316 = vmatpush1.bf16.msra.mxu0 0
        %3317 = vmatprep.subr.bf16.mxu0 0
        %3318 = vmatpush1.bf16.msra.mxu0 0
        %3319 = vmatprep.subr.bf16.mxu0 0
        %3320 = vmatpush1.bf16.msra.mxu0 0
        %3321 = vmatprep.subr.bf16.mxu0 0
        %3322 = vmatpush1.bf16.msra.mxu0 0
        %3323 = vmatprep.subr.bf16.mxu0 0
        %3324 = vmatpush1.bf16.msra.mxu0 0
        %3325 = vmatprep.subr.bf16.mxu0 0
        %3326 = vmatpush1.bf16.msra.mxu0 0
        %3327 = vmatprep.subr.bf16.mxu0 0
        %3328 = vmatpush1.bf16.msra.mxu0 0
        %3329 = vmatprep.subr.bf16.mxu0 0
        %3330 = vmatpush1.bf16.msra.mxu0 0
        %3331 = vmatprep.subr.bf16.mxu0 0
        %3332 = vmatpush1.bf16.msra.mxu0 0
        %3333 = vmatprep.subr.bf16.mxu0 0
        %3334 = vmatpush1.bf16.msra.mxu0 0
        %3335 = vmatprep.mubr.bf16.mxu0 0
        %3336 = vmatmul.mubr.bf16.gmra.mrb[0].mxu0 %v3301
        %v3337 = vpop.f32.mrb[0].mxu0
        %v3338 = vadd.f32 0.0, %v3337
        %v3339 = vpop.f32.mrb[0].mxu0
        %v3340 = vpop.f32.mrb[0].mxu0
        %v3341 = vpop.f32.mrb[0].mxu0
        %3342 = vdwg.mxu0
        %v3343 = vadd.f32 %v3255, %v3338
        %v3344 = vld [vmem:[%s222 + $0x10] sm:$0x1]
        %v3345 = vld [vmem:[%s1 + $0x4a0] sm:$0xf]
        %v3346 = vld [vmem:[%s1 + $0x4a4] sm:$0xf]
        %v3347 = vld [vmem:[%s1 + $0x4a8] sm:$0xf]
        %v3348 = vld [vmem:[%s1 + $0x4ac] sm:$0xf]
        %v3349 = vld [vmem:[%s1 + $0x4b0] sm:$0xf]
        %v3350 = vld [vmem:[%s1 + $0x4b4] sm:$0xf]
        %v3351 = vld [vmem:[%s1 + $0x4b8] sm:$0xf]
        %v3352 = vld [vmem:[%s1 + $0x4bc] sm:$0xf]
        %v3354 = vunpack.c.l.b16 %v3344
        %v3355 = vpack.c.b16 %v3354, %v3266
        %v3356 = vrot.slane %v3355, 1
        %v3365 = vunpack.c.l.b16 %v3345
        %v3366 = vunpack.c.l.b16 %v3346
        %v3367 = vunpack.c.l.b16 %v3347
        %v3368 = vunpack.c.l.b16 %v3348
        %v3369 = vunpack.c.l.b16 %v3349
        %v3370 = vunpack.c.l.b16 %v3350
        %v3371 = vunpack.c.l.b16 %v3351
        %v3372 = vunpack.c.l.b16 %v3352
        %v3373 = vpack.c.b16 %v3366, %v3365
        %v3374 = vpack.c.b16 %v3368, %v3367
        %v3375 = vpack.c.b16 %v3370, %v3369
        %v3376 = vpack.c.b16 %v3372, %v3371
        %v3382 = vsel %vm273, %v3356, 0
        %3384 = vmatprep.subr.bf16.mxu0 0
        %3385 = vmatpush1.bf16.msra.mxu0 %v3373
        %3386 = vmatprep.subr.bf16.mxu0 0
        %3387 = vmatpush1.bf16.msra.mxu0 %v3374
        %3388 = vmatprep.subr.bf16.mxu0 0
        %3389 = vmatpush1.bf16.msra.mxu0 %v3375
        %3390 = vmatprep.subr.bf16.mxu0 0
        %3391 = vmatpush1.bf16.msra.mxu0 %v3376
        %3392 = vmatprep.subr.bf16.mxu0 0
        %3393 = vmatpush1.bf16.msra.mxu0 0
        %3394 = vmatprep.subr.bf16.mxu0 0
        %3395 = vmatpush1.bf16.msra.mxu0 0
        %3396 = vmatprep.subr.bf16.mxu0 0
        %3397 = vmatpush1.bf16.msra.mxu0 0
        %3398 = vmatprep.subr.bf16.mxu0 0
        %3399 = vmatpush1.bf16.msra.mxu0 0
        %3400 = vmatprep.subr.bf16.mxu0 0
        %3401 = vmatpush1.bf16.msra.mxu0 0
        %3402 = vmatprep.subr.bf16.mxu0 0
        %3403 = vmatpush1.bf16.msra.mxu0 0
        %3404 = vmatprep.subr.bf16.mxu0 0
        %3405 = vmatpush1.bf16.msra.mxu0 0
        %3406 = vmatprep.subr.bf16.mxu0 0
        %3407 = vmatpush1.bf16.msra.mxu0 0
        %3408 = vmatprep.subr.bf16.mxu0 0
        %3409 = vmatpush1.bf16.msra.mxu0 0
        %3410 = vmatprep.subr.bf16.mxu0 0
        %3411 = vmatpush1.bf16.msra.mxu0 0
        %3412 = vmatprep.subr.bf16.mxu0 0
        %3413 = vmatpush1.bf16.msra.mxu0 0
        %3414 = vmatprep.subr.bf16.mxu0 0
        %3415 = vmatpush1.bf16.msra.mxu0 0
        %3416 = vmatprep.mubr.bf16.mxu0 0
        %3417 = vmatmul.mubr.bf16.gmra.mrb[0].mxu0 %v3382
        %v3418 = vpop.f32.mrb[0].mxu0
        %v3419 = vadd.f32 0.0, %v3418
        %v3420 = vpop.f32.mrb[0].mxu0
        %v3421 = vpop.f32.mrb[0].mxu0
        %v3422 = vpop.f32.mrb[0].mxu0
        %3423 = vdwg.mxu0
        %v3424 = vadd.f32 %v3343, %v3419
        %v3425 = vld [vmem:[%s222 + $0xc] sm:$0xf]
        %v3426 = vld [vmem:[%s1 + $0x4c0] sm:$0xf]
        %v3427 = vld [vmem:[%s1 + $0x4c4] sm:$0xf]
        %v3428 = vld [vmem:[%s1 + $0x4c8] sm:$0xf]
        %v3429 = vld [vmem:[%s1 + $0x4cc] sm:$0xf]
        %v3430 = vld [vmem:[%s1 + $0x4d0] sm:$0xf]
        %v3431 = vld [vmem:[%s1 + $0x4d4] sm:$0xf]
        %v3432 = vld [vmem:[%s1 + $0x4d8] sm:$0xf]
        %v3433 = vld [vmem:[%s1 + $0x4dc] sm:$0xf]
        %v3435 = vunpack.c.l.b16 %v3425
        %v3436 = vpack.c.b16 %v3354, %v3435
        %v3438 = vshrl.u32 %v3436, 16
        %v3440 = vshll.u32 %v3436, 16
        %v3442 = vrot.slane %v3440, 1
        %v3443 = vor.u32 %v3438, %v3442
        %v3452 = vunpack.c.l.b16 %v3426
        %v3453 = vunpack.c.l.b16 %v3427
        %v3454 = vunpack.c.l.b16 %v3428
        %v3455 = vunpack.c.l.b16 %v3429
        %v3456 = vunpack.c.l.b16 %v3430
        %v3457 = vunpack.c.l.b16 %v3431
        %v3458 = vunpack.c.l.b16 %v3432
        %v3459 = vunpack.c.l.b16 %v3433
        %v3460 = vpack.c.b16 %v3453, %v3452
        %v3461 = vpack.c.b16 %v3455, %v3454
        %v3462 = vpack.c.b16 %v3457, %v3456
        %v3463 = vpack.c.b16 %v3459, %v3458
        %v3469 = vsel %vm273, %v3443, 0
        %3471 = vmatprep.subr.bf16.mxu0 0
        %3472 = vmatpush1.bf16.msra.mxu0 %v3460
        %3473 = vmatprep.subr.bf16.mxu0 0
        %3474 = vmatpush1.bf16.msra.mxu0 %v3461
        %3475 = vmatprep.subr.bf16.mxu0 0
        %3476 = vmatpush1.bf16.msra.mxu0 %v3462
        %3477 = vmatprep.subr.bf16.mxu0 0
        %3478 = vmatpush1.bf16.msra.mxu0 %v3463
        %3479 = vmatprep.subr.bf16.mxu0 0
        %3480 = vmatpush1.bf16.msra.mxu0 0
        %3481 = vmatprep.subr.bf16.mxu0 0
        %3482 = vmatpush1.bf16.msra.mxu0 0
        %3483 = vmatprep.subr.bf16.mxu0 0
        %3484 = vmatpush1.bf16.msra.mxu0 0
        %3485 = vmatprep.subr.bf16.mxu0 0
        %3486 = vmatpush1.bf16.msra.mxu0 0
        %3487 = vmatprep.subr.bf16.mxu0 0
        %3488 = vmatpush1.bf16.msra.mxu0 0
        %3489 = vmatprep.subr.bf16.mxu0 0
        %3490 = vmatpush1.bf16.msra.mxu0 0
        %3491 = vmatprep.subr.bf16.mxu0 0
        %3492 = vmatpush1.bf16.msra.mxu0 0
        %3493 = vmatprep.subr.bf16.mxu0 0
        %3494 = vmatpush1.bf16.msra.mxu0 0
        %3495 = vmatprep.subr.bf16.mxu0 0
        %3496 = vmatpush1.bf16.msra.mxu0 0
        %3497 = vmatprep.subr.bf16.mxu0 0
        %3498 = vmatpush1.bf16.msra.mxu0 0
        %3499 = vmatprep.subr.bf16.mxu0 0
        %3500 = vmatpush1.bf16.msra.mxu0 0
        %3501 = vmatprep.subr.bf16.mxu0 0
        %3502 = vmatpush1.bf16.msra.mxu0 0
        %3503 = vmatprep.mubr.bf16.mxu0 0
        %3504 = vmatmul.mubr.bf16.gmra.mrb[0].mxu0 %v3469
        %v3505 = vpop.f32.mrb[0].mxu0
        %v3506 = vadd.f32 0.0, %v3505
        %v3507 = vpop.f32.mrb[0].mxu0
        %v3508 = vpop.f32.mrb[0].mxu0
        %v3509 = vpop.f32.mrb[0].mxu0
        %3510 = vdwg.mxu0
        %v3511 = vadd.f32 %v3424, %v3506
        %v3512 = vld [vmem:[%s222 + $0xc] sm:$0xf]
        %v3513 = vld [vmem:[%s1 + $0x4e0] sm:$0xf]
        %v3514 = vld [vmem:[%s1 + $0x4e4] sm:$0xf]
        %v3515 = vld [vmem:[%s1 + $0x4e8] sm:$0xf]
        %v3516 = vld [vmem:[%s1 + $0x4ec] sm:$0xf]
        %v3517 = vld [vmem:[%s1 + $0x4f0] sm:$0xf]
        %v3518 = vld [vmem:[%s1 + $0x4f4] sm:$0xf]
        %v3519 = vld [vmem:[%s1 + $0x4f8] sm:$0xf]
        %v3520 = vld [vmem:[%s1 + $0x4fc] sm:$0xf]
        %v3529 = vunpack.c.l.b16 %v3513
        %v3530 = vunpack.c.l.b16 %v3514
        %v3531 = vunpack.c.l.b16 %v3515
        %v3532 = vunpack.c.l.b16 %v3516
        %v3533 = vunpack.c.l.b16 %v3517
        %v3534 = vunpack.c.l.b16 %v3518
        %v3535 = vunpack.c.l.b16 %v3519
        %v3536 = vunpack.c.l.b16 %v3520
        %v3537 = vpack.c.b16 %v3530, %v3529
        %v3538 = vpack.c.b16 %v3532, %v3531
        %v3539 = vpack.c.b16 %v3534, %v3533
        %v3540 = vpack.c.b16 %v3536, %v3535
        %v3546 = vsel %vm273, %v3512, 0
        %3548 = vmatprep.subr.bf16.mxu0 0
        %3549 = vmatpush1.bf16.msra.mxu0 %v3537
        %3550 = vmatprep.subr.bf16.mxu0 0
        %3551 = vmatpush1.bf16.msra.mxu0 %v3538
        %3552 = vmatprep.subr.bf16.mxu0 0
        %3553 = vmatpush1.bf16.msra.mxu0 %v3539
        %3554 = vmatprep.subr.bf16.mxu0 0
        %3555 = vmatpush1.bf16.msra.mxu0 %v3540
        %3556 = vmatprep.subr.bf16.mxu0 0
        %3557 = vmatpush1.bf16.msra.mxu0 0
        %3558 = vmatprep.subr.bf16.mxu0 0
        %3559 = vmatpush1.bf16.msra.mxu0 0
        %3560 = vmatprep.subr.bf16.mxu0 0
        %3561 = vmatpush1.bf16.msra.mxu0 0
        %3562 = vmatprep.subr.bf16.mxu0 0
        %3563 = vmatpush1.bf16.msra.mxu0 0
        %3564 = vmatprep.subr.bf16.mxu0 0
        %3565 = vmatpush1.bf16.msra.mxu0 0
        %3566 = vmatprep.subr.bf16.mxu0 0
        %3567 = vmatpush1.bf16.msra.mxu0 0
        %3568 = vmatprep.subr.bf16.mxu0 0
        %3569 = vmatpush1.bf16.msra.mxu0 0
        %3570 = vmatprep.subr.bf16.mxu0 0
        %3571 = vmatpush1.bf16.msra.mxu0 0
        %3572 = vmatprep.subr.bf16.mxu0 0
        %3573 = vmatpush1.bf16.msra.mxu0 0
        %3574 = vmatprep.subr.bf16.mxu0 0
        %3575 = vmatpush1.bf16.msra.mxu0 0
        %3576 = vmatprep.subr.bf16.mxu0 0
        %3577 = vmatpush1.bf16.msra.mxu0 0
        %3578 = vmatprep.subr.bf16.mxu0 0
        %3579 = vmatpush1.bf16.msra.mxu0 0
        %3580 = vmatprep.mubr.bf16.mxu0 0
        %3581 = vmatmul.mubr.bf16.gmra.mrb[0].mxu0 %v3546
        %v3582 = vpop.f32.mrb[0].mxu0
        %v3583 = vadd.f32 0.0, %v3582
        %v3584 = vpop.f32.mrb[0].mxu0
        %v3585 = vpop.f32.mrb[0].mxu0
        %v3586 = vpop.f32.mrb[0].mxu0
        %3587 = vdwg.mxu0
        %v3588 = vadd.f32 %v3511, %v3583
        %v3589 = vld [vmem:[%s222 + $0x8] sm:$0x8]
        %v3590 = vld [vmem:[%s1 + $0x500] sm:$0xf]
        %v3591 = vld [vmem:[%s1 + $0x504] sm:$0xf]
        %v3592 = vld [vmem:[%s1 + $0x508] sm:$0xf]
        %v3593 = vld [vmem:[%s1 + $0x50c] sm:$0xf]
        %v3594 = vld [vmem:[%s1 + $0x510] sm:$0xf]
        %v3595 = vld [vmem:[%s1 + $0x514] sm:$0xf]
        %v3596 = vld [vmem:[%s1 + $0x518] sm:$0xf]
        %v3597 = vld [vmem:[%s1 + $0x51c] sm:$0xf]
        %v3600 = vunpack.c.l.b16 %v3589
        %v3601 = vunpack.c.l.b16 %v3512
        %v3602 = vpack.c.b16 %v3601, %v3600
        %v3604 = vshrl.u32 %v3602, 16
        %v3606 = vrot.slane %v3604, 3
        %v3607 = vshll.u32 %v3602, 16
        %v3609 = vrot.slane %v3607, 4
        %v3610 = vor.u32 %v3606, %v3609
        %v3619 = vunpack.c.l.b16 %v3590
        %v3620 = vunpack.c.l.b16 %v3591
        %v3621 = vunpack.c.l.b16 %v3592
        %v3622 = vunpack.c.l.b16 %v3593
        %v3623 = vunpack.c.l.b16 %v3594
        %v3624 = vunpack.c.l.b16 %v3595
        %v3625 = vunpack.c.l.b16 %v3596
        %v3626 = vunpack.c.l.b16 %v3597
        %v3627 = vpack.c.b16 %v3620, %v3619
        %v3628 = vpack.c.b16 %v3622, %v3621
        %v3629 = vpack.c.b16 %v3624, %v3623
        %v3630 = vpack.c.b16 %v3626, %v3625
        %v3636 = vsel %vm273, %v3610, 0
        %3638 = vmatprep.subr.bf16.mxu0 0
        %3639 = vmatpush1.bf16.msra.mxu0 %v3627
        %3640 = vmatprep.subr.bf16.mxu0 0
        %3641 = vmatpush1.bf16.msra.mxu0 %v3628
        %3642 = vmatprep.subr.bf16.mxu0 0
        %3643 = vmatpush1.bf16.msra.mxu0 %v3629
        %3644 = vmatprep.subr.bf16.mxu0 0
        %3645 = vmatpush1.bf16.msra.mxu0 %v3630
        %3646 = vmatprep.subr.bf16.mxu0 0
        %3647 = vmatpush1.bf16.msra.mxu0 0
        %3648 = vmatprep.subr.bf16.mxu0 0
        %3649 = vmatpush1.bf16.msra.mxu0 0
        %3650 = vmatprep.subr.bf16.mxu0 0
        %3651 = vmatpush1.bf16.msra.mxu0 0
        %3652 = vmatprep.subr.bf16.mxu0 0
        %3653 = vmatpush1.bf16.msra.mxu0 0
        %3654 = vmatprep.subr.bf16.mxu0 0
        %3655 = vmatpush1.bf16.msra.mxu0 0
        %3656 = vmatprep.subr.bf16.mxu0 0
        %3657 = vmatpush1.bf16.msra.mxu0 0
        %3658 = vmatprep.subr.bf16.mxu0 0
        %3659 = vmatpush1.bf16.msra.mxu0 0
        %3660 = vmatprep.subr.bf16.mxu0 0
        %3661 = vmatpush1.bf16.msra.mxu0 0
        %3662 = vmatprep.subr.bf16.mxu0 0
        %3663 = vmatpush1.bf16.msra.mxu0 0
        %3664 = vmatprep.subr.bf16.mxu0 0
        %3665 = vmatpush1.bf16.msra.mxu0 0
        %3666 = vmatprep.subr.bf16.mxu0 0
        %3667 = vmatpush1.bf16.msra.mxu0 0
        %3668 = vmatprep.subr.bf16.mxu0 0
        %3669 = vmatpush1.bf16.msra.mxu0 0
        %3670 = vmatprep.mubr.bf16.mxu0 0
        %3671 = vmatmul.mubr.bf16.gmra.mrb[0].mxu0 %v3636
        %v3672 = vpop.f32.mrb[0].mxu0
        %v3673 = vadd.f32 0.0, %v3672
        %v3674 = vpop.f32.mrb[0].mxu0
        %v3675 = vpop.f32.mrb[0].mxu0
        %v3676 = vpop.f32.mrb[0].mxu0
        %3677 = vdwg.mxu0
        %v3678 = vadd.f32 %v3588, %v3673
        %v3679 = vld [vmem:[%s222 + $0xc] sm:$0x7]
        %v3680 = vld [vmem:[%s1 + $0x520] sm:$0xf]
        %v3681 = vld [vmem:[%s1 + $0x524] sm:$0xf]
        %v3682 = vld [vmem:[%s1 + $0x528] sm:$0xf]
        %v3683 = vld [vmem:[%s1 + $0x52c] sm:$0xf]
        %v3684 = vld [vmem:[%s1 + $0x530] sm:$0xf]
        %v3685 = vld [vmem:[%s1 + $0x534] sm:$0xf]
        %v3686 = vld [vmem:[%s1 + $0x538] sm:$0xf]
        %v3687 = vld [vmem:[%s1 + $0x53c] sm:$0xf]
        %v3689 = vunpack.c.l.b16 %v3679
        %v3690 = vpack.c.b16 %v3689, %v3600
        %v3691 = vrot.slane %v3690, 3
        %v3700 = vunpack.c.l.b16 %v3680
        %v3701 = vunpack.c.l.b16 %v3681
        %v3702 = vunpack.c.l.b16 %v3682
        %v3703 = vunpack.c.l.b16 %v3683
        %v3704 = vunpack.c.l.b16 %v3684
        %v3705 = vunpack.c.l.b16 %v3685
        %v3706 = vunpack.c.l.b16 %v3686
        %v3707 = vunpack.c.l.b16 %v3687
        %v3708 = vpack.c.b16 %v3701, %v3700
        %v3709 = vpack.c.b16 %v3703, %v3702
        %v3710 = vpack.c.b16 %v3705, %v3704
        %v3711 = vpack.c.b16 %v3707, %v3706
        %v3717 = vsel %vm273, %v3691, 0
        %3719 = vmatprep.subr.bf16.mxu0 0
        %3720 = vmatpush1.bf16.msra.mxu0 %v3708
        %3721 = vmatprep.subr.bf16.mxu0 0
        %3722 = vmatpush1.bf16.msra.mxu0 %v3709
        %3723 = vmatprep.subr.bf16.mxu0 0
        %3724 = vmatpush1.bf16.msra.mxu0 %v3710
        %3725 = vmatprep.subr.bf16.mxu0 0
        %3726 = vmatpush1.bf16.msra.mxu0 %v3711
        %3727 = vmatprep.subr.bf16.mxu0 0
        %3728 = vmatpush1.bf16.msra.mxu0 0
        %3729 = vmatprep.subr.bf16.mxu0 0
        %3730 = vmatpush1.bf16.msra.mxu0 0
        %3731 = vmatprep.subr.bf16.mxu0 0
        %3732 = vmatpush1.bf16.msra.mxu0 0
        %3733 = vmatprep.subr.bf16.mxu0 0
        %3734 = vmatpush1.bf16.msra.mxu0 0
        %3735 = vmatprep.subr.bf16.mxu0 0
        %3736 = vmatpush1.bf16.msra.mxu0 0
        %3737 = vmatprep.subr.bf16.mxu0 0
        %3738 = vmatpush1.bf16.msra.mxu0 0
        %3739 = vmatprep.subr.bf16.mxu0 0
        %3740 = vmatpush1.bf16.msra.mxu0 0
        %3741 = vmatprep.subr.bf16.mxu0 0
        %3742 = vmatpush1.bf16.msra.mxu0 0
        %3743 = vmatprep.subr.bf16.mxu0 0
        %3744 = vmatpush1.bf16.msra.mxu0 0
        %3745 = vmatprep.subr.bf16.mxu0 0
        %3746 = vmatpush1.bf16.msra.mxu0 0
        %3747 = vmatprep.subr.bf16.mxu0 0
        %3748 = vmatpush1.bf16.msra.mxu0 0
        %3749 = vmatprep.subr.bf16.mxu0 0
        %3750 = vmatpush1.bf16.msra.mxu0 0
        %3751 = vmatprep.mubr.bf16.mxu0 0
        %3752 = vmatmul.mubr.bf16.gmra.mrb[0].mxu0 %v3717
        %v3753 = vpop.f32.mrb[0].mxu0
        %v3754 = vadd.f32 0.0, %v3753
        %v3755 = vpop.f32.mrb[0].mxu0
        %v3756 = vpop.f32.mrb[0].mxu0
        %v3757 = vpop.f32.mrb[0].mxu0
        %3758 = vdwg.mxu0
        %v3759 = vadd.f32 %v3678, %v3754
        %v3760 = vld [vmem:[%s222 + $0x8] sm:$0xc]
        %v3761 = vld [vmem:[%s1 + $0x540] sm:$0xf]
        %v3762 = vld [vmem:[%s1 + $0x544] sm:$0xf]
        %v3763 = vld [vmem:[%s1 + $0x548] sm:$0xf]
        %v3764 = vld [vmem:[%s1 + $0x54c] sm:$0xf]
        %v3765 = vld [vmem:[%s1 + $0x550] sm:$0xf]
        %v3766 = vld [vmem:[%s1 + $0x554] sm:$0xf]
        %v3767 = vld [vmem:[%s1 + $0x558] sm:$0xf]
        %v3768 = vld [vmem:[%s1 + $0x55c] sm:$0xf]
        %v3770 = vunpack.c.l.b16 %v3760
        %v3771 = vpack.c.b16 %v3689, %v3770
        %v3773 = vshrl.u32 %v3771, 16
        %v3775 = vrot.slane %v3773, 2
        %v3776 = vshll.u32 %v3771, 16
        %v3778 = vrot.slane %v3776, 3
        %v3779 = vor.u32 %v3775, %v3778
        %v3788 = vunpack.c.l.b16 %v3761
        %v3789 = vunpack.c.l.b16 %v3762
        %v3790 = vunpack.c.l.b16 %v3763
        %v3791 = vunpack.c.l.b16 %v3764
        %v3792 = vunpack.c.l.b16 %v3765
        %v3793 = vunpack.c.l.b16 %v3766
        %v3794 = vunpack.c.l.b16 %v3767
        %v3795 = vunpack.c.l.b16 %v3768
        %v3796 = vpack.c.b16 %v3789, %v3788
        %v3797 = vpack.c.b16 %v3791, %v3790
        %v3798 = vpack.c.b16 %v3793, %v3792
        %v3799 = vpack.c.b16 %v3795, %v3794
        %v3805 = vsel %vm273, %v3779, 0
        %3807 = vmatprep.subr.bf16.mxu0 0
        %3808 = vmatpush1.bf16.msra.mxu0 %v3796
        %3809 = vmatprep.subr.bf16.mxu0 0
        %3810 = vmatpush1.bf16.msra.mxu0 %v3797
        %3811 = vmatprep.subr.bf16.mxu0 0
        %3812 = vmatpush1.bf16.msra.mxu0 %v3798
        %3813 = vmatprep.subr.bf16.mxu0 0
        %3814 = vmatpush1.bf16.msra.mxu0 %v3799
        %3815 = vmatprep.subr.bf16.mxu0 0
        %3816 = vmatpush1.bf16.msra.mxu0 0
        %3817 = vmatprep.subr.bf16.mxu0 0
        %3818 = vmatpush1.bf16.msra.mxu0 0
        %3819 = vmatprep.subr.bf16.mxu0 0
        %3820 = vmatpush1.bf16.msra.mxu0 0
        %3821 = vmatprep.subr.bf16.mxu0 0
        %3822 = vmatpush1.bf16.msra.mxu0 0
        %3823 = vmatprep.subr.bf16.mxu0 0
        %3824 = vmatpush1.bf16.msra.mxu0 0
        %3825 = vmatprep.subr.bf16.mxu0 0
        %3826 = vmatpush1.bf16.msra.mxu0 0
        %3827 = vmatprep.subr.bf16.mxu0 0
        %3828 = vmatpush1.bf16.msra.mxu0 0
        %3829 = vmatprep.subr.bf16.mxu0 0
        %3830 = vmatpush1.bf16.msra.mxu0 0
        %3831 = vmatprep.subr.bf16.mxu0 0
        %3832 = vmatpush1.bf16.msra.mxu0 0
        %3833 = vmatprep.subr.bf16.mxu0 0
        %3834 = vmatpush1.bf16.msra.mxu0 0
        %3835 = vmatprep.subr.bf16.mxu0 0
        %3836 = vmatpush1.bf16.msra.mxu0 0
        %3837 = vmatprep.subr.bf16.mxu0 0
        %3838 = vmatpush1.bf16.msra.mxu0 0
        %3839 = vmatprep.mubr.bf16.mxu0 0
        %3840 = vmatmul.mubr.bf16.gmra.mrb[0].mxu0 %v3805
        %v3841 = vpop.f32.mrb[0].mxu0
        %v3842 = vadd.f32 0.0, %v3841
        %v3843 = vpop.f32.mrb[0].mxu0
        %v3844 = vpop.f32.mrb[0].mxu0
        %v3845 = vpop.f32.mrb[0].mxu0
        %3846 = vdwg.mxu0
        %v3847 = vadd.f32 %v3759, %v3842
        %v3848 = vld [vmem:[%s222 + $0xc] sm:$0x3]
        %v3849 = vld [vmem:[%s1 + $0x560] sm:$0xf]
        %v3850 = vld [vmem:[%s1 + $0x564] sm:$0xf]
        %v3851 = vld [vmem:[%s1 + $0x568] sm:$0xf]
        %v3852 = vld [vmem:[%s1 + $0x56c] sm:$0xf]
        %v3853 = vld [vmem:[%s1 + $0x570] sm:$0xf]
        %v3854 = vld [vmem:[%s1 + $0x574] sm:$0xf]
        %v3855 = vld [vmem:[%s1 + $0x578] sm:$0xf]
        %v3856 = vld [vmem:[%s1 + $0x57c] sm:$0xf]
        %v3858 = vunpack.c.l.b16 %v3848
        %v3859 = vpack.c.b16 %v3858, %v3770
        %v3860 = vrot.slane %v3859, 2
        %v3869 = vunpack.c.l.b16 %v3849
        %v3870 = vunpack.c.l.b16 %v3850
        %v3871 = vunpack.c.l.b16 %v3851
        %v3872 = vunpack.c.l.b16 %v3852
        %v3873 = vunpack.c.l.b16 %v3853
        %v3874 = vunpack.c.l.b16 %v3854
        %v3875 = vunpack.c.l.b16 %v3855
        %v3876 = vunpack.c.l.b16 %v3856
        %v3877 = vpack.c.b16 %v3870, %v3869
        %v3878 = vpack.c.b16 %v3872, %v3871
        %v3879 = vpack.c.b16 %v3874, %v3873
        %v3880 = vpack.c.b16 %v3876, %v3875
        %v3886 = vsel %vm273, %v3860, 0
        %3888 = vmatprep.subr.bf16.mxu0 0
        %3889 = vmatpush1.bf16.msra.mxu0 %v3877
        %3890 = vmatprep.subr.bf16.mxu0 0
        %3891 = vmatpush1.bf16.msra.mxu0 %v3878
        %3892 = vmatprep.subr.bf16.mxu0 0
        %3893 = vmatpush1.bf16.msra.mxu0 %v3879
        %3894 = vmatprep.subr.bf16.mxu0 0
        %3895 = vmatpush1.bf16.msra.mxu0 %v3880
        %3896 = vmatprep.subr.bf16.mxu0 0
        %3897 = vmatpush1.bf16.msra.mxu0 0
        %3898 = vmatprep.subr.bf16.mxu0 0
        %3899 = vmatpush1.bf16.msra.mxu0 0
        %3900 = vmatprep.subr.bf16.mxu0 0
        %3901 = vmatpush1.bf16.msra.mxu0 0
        %3902 = vmatprep.subr.bf16.mxu0 0
        %3903 = vmatpush1.bf16.msra.mxu0 0
        %3904 = vmatprep.subr.bf16.mxu0 0
        %3905 = vmatpush1.bf16.msra.mxu0 0
        %3906 = vmatprep.subr.bf16.mxu0 0
        %3907 = vmatpush1.bf16.msra.mxu0 0
        %3908 = vmatprep.subr.bf16.mxu0 0
        %3909 = vmatpush1.bf16.msra.mxu0 0
        %3910 = vmatprep.subr.bf16.mxu0 0
        %3911 = vmatpush1.bf16.msra.mxu0 0
        %3912 = vmatprep.subr.bf16.mxu0 0
        %3913 = vmatpush1.bf16.msra.mxu0 0
        %3914 = vmatprep.subr.bf16.mxu0 0
        %3915 = vmatpush1.bf16.msra.mxu0 0
        %3916 = vmatprep.subr.bf16.mxu0 0
        %3917 = vmatpush1.bf16.msra.mxu0 0
        %3918 = vmatprep.subr.bf16.mxu0 0
        %3919 = vmatpush1.bf16.msra.mxu0 0
        %3920 = vmatprep.mubr.bf16.mxu0 0
        %3921 = vmatmul.mubr.bf16.gmra.mrb[0].mxu0 %v3886
        %v3922 = vpop.f32.mrb[0].mxu0
        %v3923 = vadd.f32 0.0, %v3922
        %v3924 = vpop.f32.mrb[0].mxu0
        %v3925 = vpop.f32.mrb[0].mxu0
        %v3926 = vpop.f32.mrb[0].mxu0
        %3927 = vdwg.mxu0
        %v3928 = vadd.f32 %v3847, %v3923
        %v3929 = vld [vmem:[%s222 + $0x8] sm:$0xe]
        %v3930 = vld [vmem:[%s1 + $0x580] sm:$0xf]
        %v3931 = vld [vmem:[%s1 + $0x584] sm:$0xf]
        %v3932 = vld [vmem:[%s1 + $0x588] sm:$0xf]
        %v3933 = vld [vmem:[%s1 + $0x58c] sm:$0xf]
        %v3934 = vld [vmem:[%s1 + $0x590] sm:$0xf]
        %v3935 = vld [vmem:[%s1 + $0x594] sm:$0xf]
        %v3936 = vld [vmem:[%s1 + $0x598] sm:$0xf]
        %v3937 = vld [vmem:[%s1 + $0x59c] sm:$0xf]
        %v3939 = vunpack.c.l.b16 %v3929
        %v3940 = vpack.c.b16 %v3858, %v3939
        %v3942 = vshrl.u32 %v3940, 16
        %v3944 = vrot.slane %v3942, 1
        %v3945 = vshll.u32 %v3940, 16
        %v3947 = vrot.slane %v3945, 2
        %v3948 = vor.u32 %v3944, %v3947
        %v3957 = vunpack.c.l.b16 %v3930
        %v3958 = vunpack.c.l.b16 %v3931
        %v3959 = vunpack.c.l.b16 %v3932
        %v3960 = vunpack.c.l.b16 %v3933
        %v3961 = vunpack.c.l.b16 %v3934
        %v3962 = vunpack.c.l.b16 %v3935
        %v3963 = vunpack.c.l.b16 %v3936
        %v3964 = vunpack.c.l.b16 %v3937
        %v3965 = vpack.c.b16 %v3958, %v3957
        %v3966 = vpack.c.b16 %v3960, %v3959
        %v3967 = vpack.c.b16 %v3962, %v3961
        %v3968 = vpack.c.b16 %v3964, %v3963
        %v3974 = vsel %vm273, %v3948, 0
        %3976 = vmatprep.subr.bf16.mxu0 0
        %3977 = vmatpush1.bf16.msra.mxu0 %v3965
        %3978 = vmatprep.subr.bf16.mxu0 0
        %3979 = vmatpush1.bf16.msra.mxu0 %v3966
        %3980 = vmatprep.subr.bf16.mxu0 0
        %3981 = vmatpush1.bf16.msra.mxu0 %v3967
        %3982 = vmatprep.subr.bf16.mxu0 0
        %3983 = vmatpush1.bf16.msra.mxu0 %v3968
        %3984 = vmatprep.subr.bf16.mxu0 0
        %3985 = vmatpush1.bf16.msra.mxu0 0
        %3986 = vmatprep.subr.bf16.mxu0 0
        %3987 = vmatpush1.bf16.msra.mxu0 0
        %3988 = vmatprep.subr.bf16.mxu0 0
        %3989 = vmatpush1.bf16.msra.mxu0 0
        %3990 = vmatprep.subr.bf16.mxu0 0
        %3991 = vmatpush1.bf16.msra.mxu0 0
        %3992 = vmatprep.subr.bf16.mxu0 0
        %3993 = vmatpush1.bf16.msra.mxu0 0
        %3994 = vmatprep.subr.bf16.mxu0 0
        %3995 = vmatpush1.bf16.msra.mxu0 0
        %3996 = vmatprep.subr.bf16.mxu0 0
        %3997 = vmatpush1.bf16.msra.mxu0 0
        %3998 = vmatprep.subr.bf16.mxu0 0
        %3999 = vmatpush1.bf16.msra.mxu0 0
        %4000 = vmatprep.subr.bf16.mxu0 0
        %4001 = vmatpush1.bf16.msra.mxu0 0
        %4002 = vmatprep.subr.bf16.mxu0 0
        %4003 = vmatpush1.bf16.msra.mxu0 0
        %4004 = vmatprep.subr.bf16.mxu0 0
        %4005 = vmatpush1.bf16.msra.mxu0 0
        %4006 = vmatprep.subr.bf16.mxu0 0
        %4007 = vmatpush1.bf16.msra.mxu0 0
        %4008 = vmatprep.mubr.bf16.mxu0 0
        %4009 = vmatmul.mubr.bf16.gmra.mrb[0].mxu0 %v3974
        %v4010 = vpop.f32.mrb[0].mxu0
        %v4011 = vadd.f32 0.0, %v4010
        %v4012 = vpop.f32.mrb[0].mxu0
        %v4013 = vpop.f32.mrb[0].mxu0
        %v4014 = vpop.f32.mrb[0].mxu0
        %4015 = vdwg.mxu0
        %v4016 = vadd.f32 %v3928, %v4011
        %v4017 = vld [vmem:[%s222 + $0xc] sm:$0x1]
        %v4018 = vld [vmem:[%s1 + $0x5a0] sm:$0xf]
        %v4019 = vld [vmem:[%s1 + $0x5a4] sm:$0xf]
        %v4020 = vld [vmem:[%s1 + $0x5a8] sm:$0xf]
        %v4021 = vld [vmem:[%s1 + $0x5ac] sm:$0xf]
        %v4022 = vld [vmem:[%s1 + $0x5b0] sm:$0xf]
        %v4023 = vld [vmem:[%s1 + $0x5b4] sm:$0xf]
        %v4024 = vld [vmem:[%s1 + $0x5b8] sm:$0xf]
        %v4025 = vld [vmem:[%s1 + $0x5bc] sm:$0xf]
        %v4027 = vunpack.c.l.b16 %v4017
        %v4028 = vpack.c.b16 %v4027, %v3939
        %v4029 = vrot.slane %v4028, 1
        %v4038 = vunpack.c.l.b16 %v4018
        %v4039 = vunpack.c.l.b16 %v4019
        %v4040 = vunpack.c.l.b16 %v4020
        %v4041 = vunpack.c.l.b16 %v4021
        %v4042 = vunpack.c.l.b16 %v4022
        %v4043 = vunpack.c.l.b16 %v4023
        %v4044 = vunpack.c.l.b16 %v4024
        %v4045 = vunpack.c.l.b16 %v4025
        %v4046 = vpack.c.b16 %v4039, %v4038
        %v4047 = vpack.c.b16 %v4041, %v4040
        %v4048 = vpack.c.b16 %v4043, %v4042
        %v4049 = vpack.c.b16 %v4045, %v4044
        %v4055 = vsel %vm273, %v4029, 0
        %4057 = vmatprep.subr.bf16.mxu0 0
        %4058 = vmatpush1.bf16.msra.mxu0 %v4046
        %4059 = vmatprep.subr.bf16.mxu0 0
        %4060 = vmatpush1.bf16.msra.mxu0 %v4047
        %4061 = vmatprep.subr.bf16.mxu0 0
        %4062 = vmatpush1.bf16.msra.mxu0 %v4048
        %4063 = vmatprep.subr.bf16.mxu0 0
        %4064 = vmatpush1.bf16.msra.mxu0 %v4049
        %4065 = vmatprep.subr.bf16.mxu0 0
        %4066 = vmatpush1.bf16.msra.mxu0 0
        %4067 = vmatprep.subr.bf16.mxu0 0
        %4068 = vmatpush1.bf16.msra.mxu0 0
        %4069 = vmatprep.subr.bf16.mxu0 0
        %4070 = vmatpush1.bf16.msra.mxu0 0
        %4071 = vmatprep.subr.bf16.mxu0 0
        %4072 = vmatpush1.bf16.msra.mxu0 0
        %4073 = vmatprep.subr.bf16.mxu0 0
        %4074 = vmatpush1.bf16.msra.mxu0 0
        %4075 = vmatprep.subr.bf16.mxu0 0
        %4076 = vmatpush1.bf16.msra.mxu0 0
        %4077 = vmatprep.subr.bf16.mxu0 0
        %4078 = vmatpush1.bf16.msra.mxu0 0
        %4079 = vmatprep.subr.bf16.mxu0 0
        %4080 = vmatpush1.bf16.msra.mxu0 0
        %4081 = vmatprep.subr.bf16.mxu0 0
        %4082 = vmatpush1.bf16.msra.mxu0 0
        %4083 = vmatprep.subr.bf16.mxu0 0
        %4084 = vmatpush1.bf16.msra.mxu0 0
        %4085 = vmatprep.subr.bf16.mxu0 0
        %4086 = vmatpush1.bf16.msra.mxu0 0
        %4087 = vmatprep.subr.bf16.mxu0 0
        %4088 = vmatpush1.bf16.msra.mxu0 0
        %4089 = vmatprep.mubr.bf16.mxu0 0
        %4090 = vmatmul.mubr.bf16.gmra.mrb[0].mxu0 %v4055
        %v4091 = vpop.f32.mrb[0].mxu0
        %v4092 = vadd.f32 0.0, %v4091
        %v4093 = vpop.f32.mrb[0].mxu0
        %v4094 = vpop.f32.mrb[0].mxu0
        %v4095 = vpop.f32.mrb[0].mxu0
        %4096 = vdwg.mxu0
        %v4097 = vadd.f32 %v4016, %v4092
        %v4098 = vld [vmem:[%s222 + $0x8] sm:$0xf]
        %v4099 = vld [vmem:[%s1 + $0x5c0] sm:$0xf]
        %v4100 = vld [vmem:[%s1 + $0x5c4] sm:$0xf]
        %v4101 = vld [vmem:[%s1 + $0x5c8] sm:$0xf]
        %v4102 = vld [vmem:[%s1 + $0x5cc] sm:$0xf]
        %v4103 = vld [vmem:[%s1 + $0x5d0] sm:$0xf]
        %v4104 = vld [vmem:[%s1 + $0x5d4] sm:$0xf]
        %v4105 = vld [vmem:[%s1 + $0x5d8] sm:$0xf]
        %v4106 = vld [vmem:[%s1 + $0x5dc] sm:$0xf]
        %v4108 = vunpack.c.l.b16 %v4098
        %v4109 = vpack.c.b16 %v4027, %v4108
        %v4111 = vshrl.u32 %v4109, 16
        %v4113 = vshll.u32 %v4109, 16
        %v4115 = vrot.slane %v4113, 1
        %v4116 = vor.u32 %v4111, %v4115
        %v4125 = vunpack.c.l.b16 %v4099
        %v4126 = vunpack.c.l.b16 %v4100
        %v4127 = vunpack.c.l.b16 %v4101
        %v4128 = vunpack.c.l.b16 %v4102
        %v4129 = vunpack.c.l.b16 %v4103
        %v4130 = vunpack.c.l.b16 %v4104
        %v4131 = vunpack.c.l.b16 %v4105
        %v4132 = vunpack.c.l.b16 %v4106
        %v4133 = vpack.c.b16 %v4126, %v4125
        %v4134 = vpack.c.b16 %v4128, %v4127
        %v4135 = vpack.c.b16 %v4130, %v4129
        %v4136 = vpack.c.b16 %v4132, %v4131
        %v4142 = vsel %vm273, %v4116, 0
        %4144 = vmatprep.subr.bf16.mxu0 0
        %4145 = vmatpush1.bf16.msra.mxu0 %v4133
        %4146 = vmatprep.subr.bf16.mxu0 0
        %4147 = vmatpush1.bf16.msra.mxu0 %v4134
        %4148 = vmatprep.subr.bf16.mxu0 0
        %4149 = vmatpush1.bf16.msra.mxu0 %v4135
        %4150 = vmatprep.subr.bf16.mxu0 0
        %4151 = vmatpush1.bf16.msra.mxu0 %v4136
        %4152 = vmatprep.subr.bf16.mxu0 0
        %4153 = vmatpush1.bf16.msra.mxu0 0
        %4154 = vmatprep.subr.bf16.mxu0 0
        %4155 = vmatpush1.bf16.msra.mxu0 0
        %4156 = vmatprep.subr.bf16.mxu0 0
        %4157 = vmatpush1.bf16.msra.mxu0 0
        %4158 = vmatprep.subr.bf16.mxu0 0
        %4159 = vmatpush1.bf16.msra.mxu0 0
        %4160 = vmatprep.subr.bf16.mxu0 0
        %4161 = vmatpush1.bf16.msra.mxu0 0
        %4162 = vmatprep.subr.bf16.mxu0 0
        %4163 = vmatpush1.bf16.msra.mxu0 0
        %4164 = vmatprep.subr.bf16.mxu0 0
        %4165 = vmatpush1.bf16.msra.mxu0 0
        %4166 = vmatprep.subr.bf16.mxu0 0
        %4167 = vmatpush1.bf16.msra.mxu0 0
        %4168 = vmatprep.subr.bf16.mxu0 0
        %4169 = vmatpush1.bf16.msra.mxu0 0
        %4170 = vmatprep.subr.bf16.mxu0 0
        %4171 = vmatpush1.bf16.msra.mxu0 0
        %4172 = vmatprep.subr.bf16.mxu0 0
        %4173 = vmatpush1.bf16.msra.mxu0 0
        %4174 = vmatprep.subr.bf16.mxu0 0
        %4175 = vmatpush1.bf16.msra.mxu0 0
        %4176 = vmatprep.mubr.bf16.mxu0 0
        %4177 = vmatmul.mubr.bf16.gmra.mrb[0].mxu0 %v4142
        %v4178 = vpop.f32.mrb[0].mxu0
        %v4179 = vadd.f32 0.0, %v4178
        %v4180 = vpop.f32.mrb[0].mxu0
        %v4181 = vpop.f32.mrb[0].mxu0
        %v4182 = vpop.f32.mrb[0].mxu0
        %4183 = vdwg.mxu0
        %v4184 = vadd.f32 %v4097, %v4179
        %v4185 = vld [vmem:[%s222 + $0x8] sm:$0xf]
        %v4186 = vld [vmem:[%s1 + $0x5e0] sm:$0xf]
        %v4187 = vld [vmem:[%s1 + $0x5e4] sm:$0xf]
        %v4188 = vld [vmem:[%s1 + $0x5e8] sm:$0xf]
        %v4189 = vld [vmem:[%s1 + $0x5ec] sm:$0xf]
        %v4190 = vld [vmem:[%s1 + $0x5f0] sm:$0xf]
        %v4191 = vld [vmem:[%s1 + $0x5f4] sm:$0xf]
        %v4192 = vld [vmem:[%s1 + $0x5f8] sm:$0xf]
        %v4193 = vld [vmem:[%s1 + $0x5fc] sm:$0xf]
        %v4202 = vunpack.c.l.b16 %v4186
        %v4203 = vunpack.c.l.b16 %v4187
        %v4204 = vunpack.c.l.b16 %v4188
        %v4205 = vunpack.c.l.b16 %v4189
        %v4206 = vunpack.c.l.b16 %v4190
        %v4207 = vunpack.c.l.b16 %v4191
        %v4208 = vunpack.c.l.b16 %v4192
        %v4209 = vunpack.c.l.b16 %v4193
        %v4210 = vpack.c.b16 %v4203, %v4202
        %v4211 = vpack.c.b16 %v4205, %v4204
        %v4212 = vpack.c.b16 %v4207, %v4206
        %v4213 = vpack.c.b16 %v4209, %v4208
        %v4219 = vsel %vm273, %v4185, 0
        %4221 = vmatprep.subr.bf16.mxu0 0
        %4222 = vmatpush1.bf16.msra.mxu0 %v4210
        %4223 = vmatprep.subr.bf16.mxu0 0
        %4224 = vmatpush1.bf16.msra.mxu0 %v4211
        %4225 = vmatprep.subr.bf16.mxu0 0
        %4226 = vmatpush1.bf16.msra.mxu0 %v4212
        %4227 = vmatprep.subr.bf16.mxu0 0
        %4228 = vmatpush1.bf16.msra.mxu0 %v4213
        %4229 = vmatprep.subr.bf16.mxu0 0
        %4230 = vmatpush1.bf16.msra.mxu0 0
        %4231 = vmatprep.subr.bf16.mxu0 0
        %4232 = vmatpush1.bf16.msra.mxu0 0
        %4233 = vmatprep.subr.bf16.mxu0 0
        %4234 = vmatpush1.bf16.msra.mxu0 0
        %4235 = vmatprep.subr.bf16.mxu0 0
        %4236 = vmatpush1.bf16.msra.mxu0 0
        %4237 = vmatprep.subr.bf16.mxu0 0
        %4238 = vmatpush1.bf16.msra.mxu0 0
        %4239 = vmatprep.subr.bf16.mxu0 0
        %4240 = vmatpush1.bf16.msra.mxu0 0
        %4241 = vmatprep.subr.bf16.mxu0 0
        %4242 = vmatpush1.bf16.msra.mxu0 0
        %4243 = vmatprep.subr.bf16.mxu0 0
        %4244 = vmatpush1.bf16.msra.mxu0 0
        %4245 = vmatprep.subr.bf16.mxu0 0
        %4246 = vmatpush1.bf16.msra.mxu0 0
        %4247 = vmatprep.subr.bf16.mxu0 0
        %4248 = vmatpush1.bf16.msra.mxu0 0
        %4249 = vmatprep.subr.bf16.mxu0 0
        %4250 = vmatpush1.bf16.msra.mxu0 0
        %4251 = vmatprep.subr.bf16.mxu0 0
        %4252 = vmatpush1.bf16.msra.mxu0 0
        %4253 = vmatprep.mubr.bf16.mxu0 0
        %4254 = vmatmul.mubr.bf16.gmra.mrb[0].mxu0 %v4219
        %v4255 = vpop.f32.mrb[0].mxu0
        %v4256 = vadd.f32 0.0, %v4255
        %v4257 = vpop.f32.mrb[0].mxu0
        %v4258 = vpop.f32.mrb[0].mxu0
        %v4259 = vpop.f32.mrb[0].mxu0
        %4260 = vdwg.mxu0
        %v4261 = vadd.f32 %v4184, %v4256
        %v4262 = vld [vmem:[%s222 + $0x4] sm:$0x8]
        %v4263 = vld [vmem:[%s1 + $0x600] sm:$0xf]
        %v4264 = vld [vmem:[%s1 + $0x604] sm:$0xf]
        %v4265 = vld [vmem:[%s1 + $0x608] sm:$0xf]
        %v4266 = vld [vmem:[%s1 + $0x60c] sm:$0xf]
        %v4267 = vld [vmem:[%s1 + $0x610] sm:$0xf]
        %v4268 = vld [vmem:[%s1 + $0x614] sm:$0xf]
        %v4269 = vld [vmem:[%s1 + $0x618] sm:$0xf]
        %v4270 = vld [vmem:[%s1 + $0x61c] sm:$0xf]
        %v4273 = vunpack.c.l.b16 %v4262
        %v4274 = vunpack.c.l.b16 %v4185
        %v4275 = vpack.c.b16 %v4274, %v4273
        %v4277 = vshrl.u32 %v4275, 16
        %v4279 = vrot.slane %v4277, 3
        %v4280 = vshll.u32 %v4275, 16
        %v4282 = vrot.slane %v4280, 4
        %v4283 = vor.u32 %v4279, %v4282
        %v4292 = vunpack.c.l.b16 %v4263
        %v4293 = vunpack.c.l.b16 %v4264
        %v4294 = vunpack.c.l.b16 %v4265
        %v4295 = vunpack.c.l.b16 %v4266
        %v4296 = vunpack.c.l.b16 %v4267
        %v4297 = vunpack.c.l.b16 %v4268
        %v4298 = vunpack.c.l.b16 %v4269
        %v4299 = vunpack.c.l.b16 %v4270
        %v4300 = vpack.c.b16 %v4293, %v4292
        %v4301 = vpack.c.b16 %v4295, %v4294
        %v4302 = vpack.c.b16 %v4297, %v4296
        %v4303 = vpack.c.b16 %v4299, %v4298
        %v4309 = vsel %vm273, %v4283, 0
        %4311 = vmatprep.subr.bf16.mxu0 0
        %4312 = vmatpush1.bf16.msra.mxu0 %v4300
        %4313 = vmatprep.subr.bf16.mxu0 0
        %4314 = vmatpush1.bf16.msra.mxu0 %v4301
        %4315 = vmatprep.subr.bf16.mxu0 0
        %4316 = vmatpush1.bf16.msra.mxu0 %v4302
        %4317 = vmatprep.subr.bf16.mxu0 0
        %4318 = vmatpush1.bf16.msra.mxu0 %v4303
        %4319 = vmatprep.subr.bf16.mxu0 0
        %4320 = vmatpush1.bf16.msra.mxu0 0
        %4321 = vmatprep.subr.bf16.mxu0 0
        %4322 = vmatpush1.bf16.msra.mxu0 0
        %4323 = vmatprep.subr.bf16.mxu0 0
        %4324 = vmatpush1.bf16.msra.mxu0 0
        %4325 = vmatprep.subr.bf16.mxu0 0
        %4326 = vmatpush1.bf16.msra.mxu0 0
        %4327 = vmatprep.subr.bf16.mxu0 0
        %4328 = vmatpush1.bf16.msra.mxu0 0
        %4329 = vmatprep.subr.bf16.mxu0 0
        %4330 = vmatpush1.bf16.msra.mxu0 0
        %4331 = vmatprep.subr.bf16.mxu0 0
        %4332 = vmatpush1.bf16.msra.mxu0 0
        %4333 = vmatprep.subr.bf16.mxu0 0
        %4334 = vmatpush1.bf16.msra.mxu0 0
        %4335 = vmatprep.subr.bf16.mxu0 0
        %4336 = vmatpush1.bf16.msra.mxu0 0
        %4337 = vmatprep.subr.bf16.mxu0 0
        %4338 = vmatpush1.bf16.msra.mxu0 0
        %4339 = vmatprep.subr.bf16.mxu0 0
        %4340 = vmatpush1.bf16.msra.mxu0 0
        %4341 = vmatprep.subr.bf16.mxu0 0
        %4342 = vmatpush1.bf16.msra.mxu0 0
        %4343 = vmatprep.mubr.bf16.mxu0 0
        %4344 = vmatmul.mubr.bf16.gmra.mrb[0].mxu0 %v4309
        %v4345 = vpop.f32.mrb[0].mxu0
        %v4346 = vadd.f32 0.0, %v4345
        %v4347 = vpop.f32.mrb[0].mxu0
        %v4348 = vpop.f32.mrb[0].mxu0
        %v4349 = vpop.f32.mrb[0].mxu0
        %4350 = vdwg.mxu0
        %v4351 = vadd.f32 %v4261, %v4346
        %v4352 = vld [vmem:[%s222 + $0x8] sm:$0x7]
        %v4353 = vld [vmem:[%s1 + $0x620] sm:$0xf]
        %v4354 = vld [vmem:[%s1 + $0x624] sm:$0xf]
        %v4355 = vld [vmem:[%s1 + $0x628] sm:$0xf]
        %v4356 = vld [vmem:[%s1 + $0x62c] sm:$0xf]
        %v4357 = vld [vmem:[%s1 + $0x630] sm:$0xf]
        %v4358 = vld [vmem:[%s1 + $0x634] sm:$0xf]
        %v4359 = vld [vmem:[%s1 + $0x638] sm:$0xf]
        %v4360 = vld [vmem:[%s1 + $0x63c] sm:$0xf]
        %v4362 = vunpack.c.l.b16 %v4352
        %v4363 = vpack.c.b16 %v4362, %v4273
        %v4364 = vrot.slane %v4363, 3
        %v4373 = vunpack.c.l.b16 %v4353
        %v4374 = vunpack.c.l.b16 %v4354
        %v4375 = vunpack.c.l.b16 %v4355
        %v4376 = vunpack.c.l.b16 %v4356
        %v4377 = vunpack.c.l.b16 %v4357
        %v4378 = vunpack.c.l.b16 %v4358
        %v4379 = vunpack.c.l.b16 %v4359
        %v4380 = vunpack.c.l.b16 %v4360
        %v4381 = vpack.c.b16 %v4374, %v4373
        %v4382 = vpack.c.b16 %v4376, %v4375
        %v4383 = vpack.c.b16 %v4378, %v4377
        %v4384 = vpack.c.b16 %v4380, %v4379
        %v4390 = vsel %vm273, %v4364, 0
        %4392 = vmatprep.subr.bf16.mxu0 0
        %4393 = vmatpush1.bf16.msra.mxu0 %v4381
        %4394 = vmatprep.subr.bf16.mxu0 0
        %4395 = vmatpush1.bf16.msra.mxu0 %v4382
        %4396 = vmatprep.subr.bf16.mxu0 0
        %4397 = vmatpush1.bf16.msra.mxu0 %v4383
        %4398 = vmatprep.subr.bf16.mxu0 0
        %4399 = vmatpush1.bf16.msra.mxu0 %v4384
        %4400 = vmatprep.subr.bf16.mxu0 0
        %4401 = vmatpush1.bf16.msra.mxu0 0
        %4402 = vmatprep.subr.bf16.mxu0 0
        %4403 = vmatpush1.bf16.msra.mxu0 0
        %4404 = vmatprep.subr.bf16.mxu0 0
        %4405 = vmatpush1.bf16.msra.mxu0 0
        %4406 = vmatprep.subr.bf16.mxu0 0
        %4407 = vmatpush1.bf16.msra.mxu0 0
        %4408 = vmatprep.subr.bf16.mxu0 0
        %4409 = vmatpush1.bf16.msra.mxu0 0
        %4410 = vmatprep.subr.bf16.mxu0 0
        %4411 = vmatpush1.bf16.msra.mxu0 0
        %4412 = vmatprep.subr.bf16.mxu0 0
        %4413 = vmatpush1.bf16.msra.mxu0 0
        %4414 = vmatprep.subr.bf16.mxu0 0
        %4415 = vmatpush1.bf16.msra.mxu0 0
        %4416 = vmatprep.subr.bf16.mxu0 0
        %4417 = vmatpush1.bf16.msra.mxu0 0
        %4418 = vmatprep.subr.bf16.mxu0 0
        %4419 = vmatpush1.bf16.msra.mxu0 0
        %4420 = vmatprep.subr.bf16.mxu0 0
        %4421 = vmatpush1.bf16.msra.mxu0 0
        %4422 = vmatprep.subr.bf16.mxu0 0
        %4423 = vmatpush1.bf16.msra.mxu0 0
        %4424 = vmatprep.mubr.bf16.mxu0 0
        %4425 = vmatmul.mubr.bf16.gmra.mrb[0].mxu0 %v4390
        %v4426 = vpop.f32.mrb[0].mxu0
        %v4427 = vadd.f32 0.0, %v4426
        %v4428 = vpop.f32.mrb[0].mxu0
        %v4429 = vpop.f32.mrb[0].mxu0
        %v4430 = vpop.f32.mrb[0].mxu0
        %4431 = vdwg.mxu0
        %v4432 = vadd.f32 %v4351, %v4427
        %v4433 = vld [vmem:[%s222 + $0x4] sm:$0xc]
        %v4434 = vld [vmem:[%s1 + $0x640] sm:$0xf]
        %v4435 = vld [vmem:[%s1 + $0x644] sm:$0xf]
        %v4436 = vld [vmem:[%s1 + $0x648] sm:$0xf]
        %v4437 = vld [vmem:[%s1 + $0x64c] sm:$0xf]
        %v4438 = vld [vmem:[%s1 + $0x650] sm:$0xf]
        %v4439 = vld [vmem:[%s1 + $0x654] sm:$0xf]
        %v4440 = vld [vmem:[%s1 + $0x658] sm:$0xf]
        %v4441 = vld [vmem:[%s1 + $0x65c] sm:$0xf]
        %v4443 = vunpack.c.l.b16 %v4433
        %v4444 = vpack.c.b16 %v4362, %v4443
        %v4446 = vshrl.u32 %v4444, 16
        %v4448 = vrot.slane %v4446, 2
        %v4449 = vshll.u32 %v4444, 16
        %v4451 = vrot.slane %v4449, 3
        %v4452 = vor.u32 %v4448, %v4451
        %v4461 = vunpack.c.l.b16 %v4434
        %v4462 = vunpack.c.l.b16 %v4435
        %v4463 = vunpack.c.l.b16 %v4436
        %v4464 = vunpack.c.l.b16 %v4437
        %v4465 = vunpack.c.l.b16 %v4438
        %v4466 = vunpack.c.l.b16 %v4439
        %v4467 = vunpack.c.l.b16 %v4440
        %v4468 = vunpack.c.l.b16 %v4441
        %v4469 = vpack.c.b16 %v4462, %v4461
        %v4470 = vpack.c.b16 %v4464, %v4463
        %v4471 = vpack.c.b16 %v4466, %v4465
        %v4472 = vpack.c.b16 %v4468, %v4467
        %v4478 = vsel %vm273, %v4452, 0
        %4480 = vmatprep.subr.bf16.mxu0 0
        %4481 = vmatpush1.bf16.msra.mxu0 %v4469
        %4482 = vmatprep.subr.bf16.mxu0 0
        %4483 = vmatpush1.bf16.msra.mxu0 %v4470
        %4484 = vmatprep.subr.bf16.mxu0 0
        %4485 = vmatpush1.bf16.msra.mxu0 %v4471
        %4486 = vmatprep.subr.bf16.mxu0 0
        %4487 = vmatpush1.bf16.msra.mxu0 %v4472
        %4488 = vmatprep.subr.bf16.mxu0 0
        %4489 = vmatpush1.bf16.msra.mxu0 0
        %4490 = vmatprep.subr.bf16.mxu0 0
        %4491 = vmatpush1.bf16.msra.mxu0 0
        %4492 = vmatprep.subr.bf16.mxu0 0
        %4493 = vmatpush1.bf16.msra.mxu0 0
        %4494 = vmatprep.subr.bf16.mxu0 0
        %4495 = vmatpush1.bf16.msra.mxu0 0
        %4496 = vmatprep.subr.bf16.mxu0 0
        %4497 = vmatpush1.bf16.msra.mxu0 0
        %4498 = vmatprep.subr.bf16.mxu0 0
        %4499 = vmatpush1.bf16.msra.mxu0 0
        %4500 = vmatprep.subr.bf16.mxu0 0
        %4501 = vmatpush1.bf16.msra.mxu0 0
        %4502 = vmatprep.subr.bf16.mxu0 0
        %4503 = vmatpush1.bf16.msra.mxu0 0
        %4504 = vmatprep.subr.bf16.mxu0 0
        %4505 = vmatpush1.bf16.msra.mxu0 0
        %4506 = vmatprep.subr.bf16.mxu0 0
        %4507 = vmatpush1.bf16.msra.mxu0 0
        %4508 = vmatprep.subr.bf16.mxu0 0
        %4509 = vmatpush1.bf16.msra.mxu0 0
        %4510 = vmatprep.subr.bf16.mxu0 0
        %4511 = vmatpush1.bf16.msra.mxu0 0
        %4512 = vmatprep.mubr.bf16.mxu0 0
        %4513 = vmatmul.mubr.bf16.gmra.mrb[0].mxu0 %v4478
        %v4514 = vpop.f32.mrb[0].mxu0
        %v4515 = vadd.f32 0.0, %v4514
        %v4516 = vpop.f32.mrb[0].mxu0
        %v4517 = vpop.f32.mrb[0].mxu0
        %v4518 = vpop.f32.mrb[0].mxu0
        %4519 = vdwg.mxu0
        %v4520 = vadd.f32 %v4432, %v4515
        %v4521 = vld [vmem:[%s222 + $0x8] sm:$0x3]
        %v4522 = vld [vmem:[%s1 + $0x660] sm:$0xf]
        %v4523 = vld [vmem:[%s1 + $0x664] sm:$0xf]
        %v4524 = vld [vmem:[%s1 + $0x668] sm:$0xf]
        %v4525 = vld [vmem:[%s1 + $0x66c] sm:$0xf]
        %v4526 = vld [vmem:[%s1 + $0x670] sm:$0xf]
        %v4527 = vld [vmem:[%s1 + $0x674] sm:$0xf]
        %v4528 = vld [vmem:[%s1 + $0x678] sm:$0xf]
        %v4529 = vld [vmem:[%s1 + $0x67c] sm:$0xf]
        %v4531 = vunpack.c.l.b16 %v4521
        %v4532 = vpack.c.b16 %v4531, %v4443
        %v4533 = vrot.slane %v4532, 2
        %v4542 = vunpack.c.l.b16 %v4522
        %v4543 = vunpack.c.l.b16 %v4523
        %v4544 = vunpack.c.l.b16 %v4524
        %v4545 = vunpack.c.l.b16 %v4525
        %v4546 = vunpack.c.l.b16 %v4526
        %v4547 = vunpack.c.l.b16 %v4527
        %v4548 = vunpack.c.l.b16 %v4528
        %v4549 = vunpack.c.l.b16 %v4529
        %v4550 = vpack.c.b16 %v4543, %v4542
        %v4551 = vpack.c.b16 %v4545, %v4544
        %v4552 = vpack.c.b16 %v4547, %v4546
        %v4553 = vpack.c.b16 %v4549, %v4548
        %v4559 = vsel %vm273, %v4533, 0
        %4561 = vmatprep.subr.bf16.mxu0 0
        %4562 = vmatpush1.bf16.msra.mxu0 %v4550
        %4563 = vmatprep.subr.bf16.mxu0 0
        %4564 = vmatpush1.bf16.msra.mxu0 %v4551
        %4565 = vmatprep.subr.bf16.mxu0 0
        %4566 = vmatpush1.bf16.msra.mxu0 %v4552
        %4567 = vmatprep.subr.bf16.mxu0 0
        %4568 = vmatpush1.bf16.msra.mxu0 %v4553
        %4569 = vmatprep.subr.bf16.mxu0 0
        %4570 = vmatpush1.bf16.msra.mxu0 0
        %4571 = vmatprep.subr.bf16.mxu0 0
        %4572 = vmatpush1.bf16.msra.mxu0 0
        %4573 = vmatprep.subr.bf16.mxu0 0
        %4574 = vmatpush1.bf16.msra.mxu0 0
        %4575 = vmatprep.subr.bf16.mxu0 0
        %4576 = vmatpush1.bf16.msra.mxu0 0
        %4577 = vmatprep.subr.bf16.mxu0 0
        %4578 = vmatpush1.bf16.msra.mxu0 0
        %4579 = vmatprep.subr.bf16.mxu0 0
        %4580 = vmatpush1.bf16.msra.mxu0 0
        %4581 = vmatprep.subr.bf16.mxu0 0
        %4582 = vmatpush1.bf16.msra.mxu0 0
        %4583 = vmatprep.subr.bf16.mxu0 0
        %4584 = vmatpush1.bf16.msra.mxu0 0
        %4585 = vmatprep.subr.bf16.mxu0 0
        %4586 = vmatpush1.bf16.msra.mxu0 0
        %4587 = vmatprep.subr.bf16.mxu0 0
        %4588 = vmatpush1.bf16.msra.mxu0 0
        %4589 = vmatprep.subr.bf16.mxu0 0
        %4590 = vmatpush1.bf16.msra.mxu0 0
        %4591 = vmatprep.subr.bf16.mxu0 0
        %4592 = vmatpush1.bf16.msra.mxu0 0
        %4593 = vmatprep.mubr.bf16.mxu0 0
        %4594 = vmatmul.mubr.bf16.gmra.mrb[0].mxu0 %v4559
        %v4595 = vpop.f32.mrb[0].mxu0
        %v4596 = vadd.f32 0.0, %v4595
        %v4597 = vpop.f32.mrb[0].mxu0
        %v4598 = vpop.f32.mrb[0].mxu0
        %v4599 = vpop.f32.mrb[0].mxu0
        %4600 = vdwg.mxu0
        %v4601 = vadd.f32 %v4520, %v4596
        %v4602 = vld [vmem:[%s222 + $0x4] sm:$0xe]
        %v4603 = vld [vmem:[%s1 + $0x680] sm:$0xf]
        %v4604 = vld [vmem:[%s1 + $0x684] sm:$0xf]
        %v4605 = vld [vmem:[%s1 + $0x688] sm:$0xf]
        %v4606 = vld [vmem:[%s1 + $0x68c] sm:$0xf]
        %v4607 = vld [vmem:[%s1 + $0x690] sm:$0xf]
        %v4608 = vld [vmem:[%s1 + $0x694] sm:$0xf]
        %v4609 = vld [vmem:[%s1 + $0x698] sm:$0xf]
        %v4610 = vld [vmem:[%s1 + $0x69c] sm:$0xf]
        %v4612 = vunpack.c.l.b16 %v4602
        %v4613 = vpack.c.b16 %v4531, %v4612
        %v4615 = vshrl.u32 %v4613, 16
        %v4617 = vrot.slane %v4615, 1
        %v4618 = vshll.u32 %v4613, 16
        %v4620 = vrot.slane %v4618, 2
        %v4621 = vor.u32 %v4617, %v4620
        %v4630 = vunpack.c.l.b16 %v4603
        %v4631 = vunpack.c.l.b16 %v4604
        %v4632 = vunpack.c.l.b16 %v4605
        %v4633 = vunpack.c.l.b16 %v4606
        %v4634 = vunpack.c.l.b16 %v4607
        %v4635 = vunpack.c.l.b16 %v4608
        %v4636 = vunpack.c.l.b16 %v4609
        %v4637 = vunpack.c.l.b16 %v4610
        %v4638 = vpack.c.b16 %v4631, %v4630
        %v4639 = vpack.c.b16 %v4633, %v4632
        %v4640 = vpack.c.b16 %v4635, %v4634
        %v4641 = vpack.c.b16 %v4637, %v4636
        %v4647 = vsel %vm273, %v4621, 0
        %4649 = vmatprep.subr.bf16.mxu0 0
        %4650 = vmatpush1.bf16.msra.mxu0 %v4638
        %4651 = vmatprep.subr.bf16.mxu0 0
        %4652 = vmatpush1.bf16.msra.mxu0 %v4639
        %4653 = vmatprep.subr.bf16.mxu0 0
        %4654 = vmatpush1.bf16.msra.mxu0 %v4640
        %4655 = vmatprep.subr.bf16.mxu0 0
        %4656 = vmatpush1.bf16.msra.mxu0 %v4641
        %4657 = vmatprep.subr.bf16.mxu0 0
        %4658 = vmatpush1.bf16.msra.mxu0 0
        %4659 = vmatprep.subr.bf16.mxu0 0
        %4660 = vmatpush1.bf16.msra.mxu0 0
        %4661 = vmatprep.subr.bf16.mxu0 0
        %4662 = vmatpush1.bf16.msra.mxu0 0
        %4663 = vmatprep.subr.bf16.mxu0 0
        %4664 = vmatpush1.bf16.msra.mxu0 0
        %4665 = vmatprep.subr.bf16.mxu0 0
        %4666 = vmatpush1.bf16.msra.mxu0 0
        %4667 = vmatprep.subr.bf16.mxu0 0
        %4668 = vmatpush1.bf16.msra.mxu0 0
        %4669 = vmatprep.subr.bf16.mxu0 0
        %4670 = vmatpush1.bf16.msra.mxu0 0
        %4671 = vmatprep.subr.bf16.mxu0 0
        %4672 = vmatpush1.bf16.msra.mxu0 0
        %4673 = vmatprep.subr.bf16.mxu0 0
        %4674 = vmatpush1.bf16.msra.mxu0 0
        %4675 = vmatprep.subr.bf16.mxu0 0
        %4676 = vmatpush1.bf16.msra.mxu0 0
        %4677 = vmatprep.subr.bf16.mxu0 0
        %4678 = vmatpush1.bf16.msra.mxu0 0
        %4679 = vmatprep.subr.bf16.mxu0 0
        %4680 = vmatpush1.bf16.msra.mxu0 0
        %4681 = vmatprep.mubr.bf16.mxu0 0
        %4682 = vmatmul.mubr.bf16.gmra.mrb[0].mxu0 %v4647
        %v4683 = vpop.f32.mrb[0].mxu0
        %v4684 = vadd.f32 0.0, %v4683
        %v4685 = vpop.f32.mrb[0].mxu0
        %v4686 = vpop.f32.mrb[0].mxu0
        %v4687 = vpop.f32.mrb[0].mxu0
        %4688 = vdwg.mxu0
        %v4689 = vadd.f32 %v4601, %v4684
        %v4690 = vld [vmem:[%s222 + $0x8] sm:$0x1]
        %v4691 = vld [vmem:[%s1 + $0x6a0] sm:$0xf]
        %v4692 = vld [vmem:[%s1 + $0x6a4] sm:$0xf]
        %v4693 = vld [vmem:[%s1 + $0x6a8] sm:$0xf]
        %v4694 = vld [vmem:[%s1 + $0x6ac] sm:$0xf]
        %v4695 = vld [vmem:[%s1 + $0x6b0] sm:$0xf]
        %v4696 = vld [vmem:[%s1 + $0x6b4] sm:$0xf]
        %v4697 = vld [vmem:[%s1 + $0x6b8] sm:$0xf]
        %v4698 = vld [vmem:[%s1 + $0x6bc] sm:$0xf]
        %v4700 = vunpack.c.l.b16 %v4690
        %v4701 = vpack.c.b16 %v4700, %v4612
        %v4702 = vrot.slane %v4701, 1
        %v4711 = vunpack.c.l.b16 %v4691
        %v4712 = vunpack.c.l.b16 %v4692
        %v4713 = vunpack.c.l.b16 %v4693
        %v4714 = vunpack.c.l.b16 %v4694
        %v4715 = vunpack.c.l.b16 %v4695
        %v4716 = vunpack.c.l.b16 %v4696
        %v4717 = vunpack.c.l.b16 %v4697
        %v4718 = vunpack.c.l.b16 %v4698
        %v4719 = vpack.c.b16 %v4712, %v4711
        %v4720 = vpack.c.b16 %v4714, %v4713
        %v4721 = vpack.c.b16 %v4716, %v4715
        %v4722 = vpack.c.b16 %v4718, %v4717
        %v4728 = vsel %vm273, %v4702, 0
        %4730 = vmatprep.subr.bf16.mxu0 0
        %4731 = vmatpush1.bf16.msra.mxu0 %v4719
        %4732 = vmatprep.subr.bf16.mxu0 0
        %4733 = vmatpush1.bf16.msra.mxu0 %v4720
        %4734 = vmatprep.subr.bf16.mxu0 0
        %4735 = vmatpush1.bf16.msra.mxu0 %v4721
        %4736 = vmatprep.subr.bf16.mxu0 0
        %4737 = vmatpush1.bf16.msra.mxu0 %v4722
        %4738 = vmatprep.subr.bf16.mxu0 0
        %4739 = vmatpush1.bf16.msra.mxu0 0
        %4740 = vmatprep.subr.bf16.mxu0 0
        %4741 = vmatpush1.bf16.msra.mxu0 0
        %4742 = vmatprep.subr.bf16.mxu0 0
        %4743 = vmatpush1.bf16.msra.mxu0 0
        %4744 = vmatprep.subr.bf16.mxu0 0
        %4745 = vmatpush1.bf16.msra.mxu0 0
        %4746 = vmatprep.subr.bf16.mxu0 0
        %4747 = vmatpush1.bf16.msra.mxu0 0
        %4748 = vmatprep.subr.bf16.mxu0 0
        %4749 = vmatpush1.bf16.msra.mxu0 0
        %4750 = vmatprep.subr.bf16.mxu0 0
        %4751 = vmatpush1.bf16.msra.mxu0 0
        %4752 = vmatprep.subr.bf16.mxu0 0
        %4753 = vmatpush1.bf16.msra.mxu0 0
        %4754 = vmatprep.subr.bf16.mxu0 0
        %4755 = vmatpush1.bf16.msra.mxu0 0
        %4756 = vmatprep.subr.bf16.mxu0 0
        %4757 = vmatpush1.bf16.msra.mxu0 0
        %4758 = vmatprep.subr.bf16.mxu0 0
        %4759 = vmatpush1.bf16.msra.mxu0 0
        %4760 = vmatprep.subr.bf16.mxu0 0
        %4761 = vmatpush1.bf16.msra.mxu0 0
        %4762 = vmatprep.mubr.bf16.mxu0 0
        %4763 = vmatmul.mubr.bf16.gmra.mrb[0].mxu0 %v4728
        %v4764 = vpop.f32.mrb[0].mxu0
        %v4765 = vadd.f32 0.0, %v4764
        %v4766 = vpop.f32.mrb[0].mxu0
        %v4767 = vpop.f32.mrb[0].mxu0
        %v4768 = vpop.f32.mrb[0].mxu0
        %4769 = vdwg.mxu0
        %v4770 = vadd.f32 %v4689, %v4765
        %v4771 = vld [vmem:[%s222 + $0x4] sm:$0xf]
        %v4772 = vld [vmem:[%s1 + $0x6c0] sm:$0xf]
        %v4773 = vld [vmem:[%s1 + $0x6c4] sm:$0xf]
        %v4774 = vld [vmem:[%s1 + $0x6c8] sm:$0xf]
        %v4775 = vld [vmem:[%s1 + $0x6cc] sm:$0xf]
        %v4776 = vld [vmem:[%s1 + $0x6d0] sm:$0xf]
        %v4777 = vld [vmem:[%s1 + $0x6d4] sm:$0xf]
        %v4778 = vld [vmem:[%s1 + $0x6d8] sm:$0xf]
        %v4779 = vld [vmem:[%s1 + $0x6dc] sm:$0xf]
        %v4781 = vunpack.c.l.b16 %v4771
        %v4782 = vpack.c.b16 %v4700, %v4781
        %v4784 = vshrl.u32 %v4782, 16
        %v4786 = vshll.u32 %v4782, 16
        %v4788 = vrot.slane %v4786, 1
        %v4789 = vor.u32 %v4784, %v4788
        %v4798 = vunpack.c.l.b16 %v4772
        %v4799 = vunpack.c.l.b16 %v4773
        %v4800 = vunpack.c.l.b16 %v4774
        %v4801 = vunpack.c.l.b16 %v4775
        %v4802 = vunpack.c.l.b16 %v4776
        %v4803 = vunpack.c.l.b16 %v4777
        %v4804 = vunpack.c.l.b16 %v4778
        %v4805 = vunpack.c.l.b16 %v4779
        %v4806 = vpack.c.b16 %v4799, %v4798
        %v4807 = vpack.c.b16 %v4801, %v4800
        %v4808 = vpack.c.b16 %v4803, %v4802
        %v4809 = vpack.c.b16 %v4805, %v4804
        %v4815 = vsel %vm273, %v4789, 0
        %4817 = vmatprep.subr.bf16.mxu0 0
        %4818 = vmatpush1.bf16.msra.mxu0 %v4806
        %4819 = vmatprep.subr.bf16.mxu0 0
        %4820 = vmatpush1.bf16.msra.mxu0 %v4807
        %4821 = vmatprep.subr.bf16.mxu0 0
        %4822 = vmatpush1.bf16.msra.mxu0 %v4808
        %4823 = vmatprep.subr.bf16.mxu0 0
        %4824 = vmatpush1.bf16.msra.mxu0 %v4809
        %4825 = vmatprep.subr.bf16.mxu0 0
        %4826 = vmatpush1.bf16.msra.mxu0 0
        %4827 = vmatprep.subr.bf16.mxu0 0
        %4828 = vmatpush1.bf16.msra.mxu0 0
        %4829 = vmatprep.subr.bf16.mxu0 0
        %4830 = vmatpush1.bf16.msra.mxu0 0
        %4831 = vmatprep.subr.bf16.mxu0 0
        %4832 = vmatpush1.bf16.msra.mxu0 0
        %4833 = vmatprep.subr.bf16.mxu0 0
        %4834 = vmatpush1.bf16.msra.mxu0 0
        %4835 = vmatprep.subr.bf16.mxu0 0
        %4836 = vmatpush1.bf16.msra.mxu0 0
        %4837 = vmatprep.subr.bf16.mxu0 0
        %4838 = vmatpush1.bf16.msra.mxu0 0
        %4839 = vmatprep.subr.bf16.mxu0 0
        %4840 = vmatpush1.bf16.msra.mxu0 0
        %4841 = vmatprep.subr.bf16.mxu0 0
        %4842 = vmatpush1.bf16.msra.mxu0 0
        %4843 = vmatprep.subr.bf16.mxu0 0
        %4844 = vmatpush1.bf16.msra.mxu0 0
        %4845 = vmatprep.subr.bf16.mxu0 0
        %4846 = vmatpush1.bf16.msra.mxu0 0
        %4847 = vmatprep.subr.bf16.mxu0 0
        %4848 = vmatpush1.bf16.msra.mxu0 0
        %4849 = vmatprep.mubr.bf16.mxu0 0
        %4850 = vmatmul.mubr.bf16.gmra.mrb[0].mxu0 %v4815
        %v4851 = vpop.f32.mrb[0].mxu0
        %v4852 = vadd.f32 0.0, %v4851
        %v4853 = vpop.f32.mrb[0].mxu0
        %v4854 = vpop.f32.mrb[0].mxu0
        %v4855 = vpop.f32.mrb[0].mxu0
        %4856 = vdwg.mxu0
        %v4857 = vadd.f32 %v4770, %v4852
        %v4858 = vld [vmem:[%s222 + $0x4] sm:$0xf]
        %v4859 = vld [vmem:[%s1 + $0x6e0] sm:$0xf]
        %v4860 = vld [vmem:[%s1 + $0x6e4] sm:$0xf]
        %v4861 = vld [vmem:[%s1 + $0x6e8] sm:$0xf]
        %v4862 = vld [vmem:[%s1 + $0x6ec] sm:$0xf]
        %v4863 = vld [vmem:[%s1 + $0x6f0] sm:$0xf]
        %v4864 = vld [vmem:[%s1 + $0x6f4] sm:$0xf]
        %v4865 = vld [vmem:[%s1 + $0x6f8] sm:$0xf]
        %v4866 = vld [vmem:[%s1 + $0x6fc] sm:$0xf]
        %v4875 = vunpack.c.l.b16 %v4859
        %v4876 = vunpack.c.l.b16 %v4860
        %v4877 = vunpack.c.l.b16 %v4861
        %v4878 = vunpack.c.l.b16 %v4862
        %v4879 = vunpack.c.l.b16 %v4863
        %v4880 = vunpack.c.l.b16 %v4864
        %v4881 = vunpack.c.l.b16 %v4865
        %v4882 = vunpack.c.l.b16 %v4866
        %v4883 = vpack.c.b16 %v4876, %v4875
        %v4884 = vpack.c.b16 %v4878, %v4877
        %v4885 = vpack.c.b16 %v4880, %v4879
        %v4886 = vpack.c.b16 %v4882, %v4881
        %v4892 = vsel %vm273, %v4858, 0
        %4894 = vmatprep.subr.bf16.mxu0 0
        %4895 = vmatpush1.bf16.msra.mxu0 %v4883
        %4896 = vmatprep.subr.bf16.mxu0 0
        %4897 = vmatpush1.bf16.msra.mxu0 %v4884
        %4898 = vmatprep.subr.bf16.mxu0 0
        %4899 = vmatpush1.bf16.msra.mxu0 %v4885
        %4900 = vmatprep.subr.bf16.mxu0 0
        %4901 = vmatpush1.bf16.msra.mxu0 %v4886
        %4902 = vmatprep.subr.bf16.mxu0 0
        %4903 = vmatpush1.bf16.msra.mxu0 0
        %4904 = vmatprep.subr.bf16.mxu0 0
        %4905 = vmatpush1.bf16.msra.mxu0 0
        %4906 = vmatprep.subr.bf16.mxu0 0
        %4907 = vmatpush1.bf16.msra.mxu0 0
        %4908 = vmatprep.subr.bf16.mxu0 0
        %4909 = vmatpush1.bf16.msra.mxu0 0
        %4910 = vmatprep.subr.bf16.mxu0 0
        %4911 = vmatpush1.bf16.msra.mxu0 0
        %4912 = vmatprep.subr.bf16.mxu0 0
        %4913 = vmatpush1.bf16.msra.mxu0 0
        %4914 = vmatprep.subr.bf16.mxu0 0
        %4915 = vmatpush1.bf16.msra.mxu0 0
        %4916 = vmatprep.subr.bf16.mxu0 0
        %4917 = vmatpush1.bf16.msra.mxu0 0
        %4918 = vmatprep.subr.bf16.mxu0 0
        %4919 = vmatpush1.bf16.msra.mxu0 0
        %4920 = vmatprep.subr.bf16.mxu0 0
        %4921 = vmatpush1.bf16.msra.mxu0 0
        %4922 = vmatprep.subr.bf16.mxu0 0
        %4923 = vmatpush1.bf16.msra.mxu0 0
        %4924 = vmatprep.subr.bf16.mxu0 0
        %4925 = vmatpush1.bf16.msra.mxu0 0
        %4926 = vmatprep.mubr.bf16.mxu0 0
        %4927 = vmatmul.mubr.bf16.gmra.mrb[0].mxu0 %v4892
        %v4928 = vpop.f32.mrb[0].mxu0
        %v4929 = vadd.f32 0.0, %v4928
        %v4930 = vpop.f32.mrb[0].mxu0
        %v4931 = vpop.f32.mrb[0].mxu0
        %v4932 = vpop.f32.mrb[0].mxu0
        %4933 = vdwg.mxu0
        %v4934 = vadd.f32 %v4857, %v4929
        %v4935 = vld [vmem:[%s222] sm:$0x8]
        %v4936 = vld [vmem:[%s1 + $0x700] sm:$0xf]
        %v4937 = vld [vmem:[%s1 + $0x704] sm:$0xf]
        %v4938 = vld [vmem:[%s1 + $0x708] sm:$0xf]
        %v4939 = vld [vmem:[%s1 + $0x70c] sm:$0xf]
        %v4940 = vld [vmem:[%s1 + $0x710] sm:$0xf]
        %v4941 = vld [vmem:[%s1 + $0x714] sm:$0xf]
        %v4942 = vld [vmem:[%s1 + $0x718] sm:$0xf]
        %v4943 = vld [vmem:[%s1 + $0x71c] sm:$0xf]
        %v4946 = vunpack.c.l.b16 %v4935
        %v4947 = vunpack.c.l.b16 %v4858
        %v4948 = vpack.c.b16 %v4947, %v4946
        %v4950 = vshrl.u32 %v4948, 16
        %v4952 = vrot.slane %v4950, 3
        %v4953 = vshll.u32 %v4948, 16
        %v4955 = vrot.slane %v4953, 4
        %v4956 = vor.u32 %v4952, %v4955
        %v4965 = vunpack.c.l.b16 %v4936
        %v4966 = vunpack.c.l.b16 %v4937
        %v4967 = vunpack.c.l.b16 %v4938
        %v4968 = vunpack.c.l.b16 %v4939
        %v4969 = vunpack.c.l.b16 %v4940
        %v4970 = vunpack.c.l.b16 %v4941
        %v4971 = vunpack.c.l.b16 %v4942
        %v4972 = vunpack.c.l.b16 %v4943
        %v4973 = vpack.c.b16 %v4966, %v4965
        %v4974 = vpack.c.b16 %v4968, %v4967
        %v4975 = vpack.c.b16 %v4970, %v4969
        %v4976 = vpack.c.b16 %v4972, %v4971
        %v4982 = vsel %vm273, %v4956, 0
        %4984 = vmatprep.subr.bf16.mxu0 0
        %4985 = vmatpush1.bf16.msra.mxu0 %v4973
        %4986 = vmatprep.subr.bf16.mxu0 0
        %4987 = vmatpush1.bf16.msra.mxu0 %v4974
        %4988 = vmatprep.subr.bf16.mxu0 0
        %4989 = vmatpush1.bf16.msra.mxu0 %v4975
        %4990 = vmatprep.subr.bf16.mxu0 0
        %4991 = vmatpush1.bf16.msra.mxu0 %v4976
        %4992 = vmatprep.subr.bf16.mxu0 0
        %4993 = vmatpush1.bf16.msra.mxu0 0
        %4994 = vmatprep.subr.bf16.mxu0 0
        %4995 = vmatpush1.bf16.msra.mxu0 0
        %4996 = vmatprep.subr.bf16.mxu0 0
        %4997 = vmatpush1.bf16.msra.mxu0 0
        %4998 = vmatprep.subr.bf16.mxu0 0
        %4999 = vmatpush1.bf16.msra.mxu0 0
        %5000 = vmatprep.subr.bf16.mxu0 0
        %5001 = vmatpush1.bf16.msra.mxu0 0
        %5002 = vmatprep.subr.bf16.mxu0 0
        %5003 = vmatpush1.bf16.msra.mxu0 0
        %5004 = vmatprep.subr.bf16.mxu0 0
        %5005 = vmatpush1.bf16.msra.mxu0 0
        %5006 = vmatprep.subr.bf16.mxu0 0
        %5007 = vmatpush1.bf16.msra.mxu0 0
        %5008 = vmatprep.subr.bf16.mxu0 0
        %5009 = vmatpush1.bf16.msra.mxu0 0
        %5010 = vmatprep.subr.bf16.mxu0 0
        %5011 = vmatpush1.bf16.msra.mxu0 0
        %5012 = vmatprep.subr.bf16.mxu0 0
        %5013 = vmatpush1.bf16.msra.mxu0 0
        %5014 = vmatprep.subr.bf16.mxu0 0
        %5015 = vmatpush1.bf16.msra.mxu0 0
        %5016 = vmatprep.mubr.bf16.mxu0 0
        %5017 = vmatmul.mubr.bf16.gmra.mrb[0].mxu0 %v4982
        %v5018 = vpop.f32.mrb[0].mxu0
        %v5019 = vadd.f32 0.0, %v5018
        %v5020 = vpop.f32.mrb[0].mxu0
        %v5021 = vpop.f32.mrb[0].mxu0
        %v5022 = vpop.f32.mrb[0].mxu0
        %5023 = vdwg.mxu0
        %v5024 = vadd.f32 %v4934, %v5019
        %v5025 = vld [vmem:[%s222 + $0x4] sm:$0x7]
        %v5026 = vld [vmem:[%s1 + $0x720] sm:$0xf]
        %v5027 = vld [vmem:[%s1 + $0x724] sm:$0xf]
        %v5028 = vld [vmem:[%s1 + $0x728] sm:$0xf]
        %v5029 = vld [vmem:[%s1 + $0x72c] sm:$0xf]
        %v5030 = vld [vmem:[%s1 + $0x730] sm:$0xf]
        %v5031 = vld [vmem:[%s1 + $0x734] sm:$0xf]
        %v5032 = vld [vmem:[%s1 + $0x738] sm:$0xf]
        %v5033 = vld [vmem:[%s1 + $0x73c] sm:$0xf]
        %v5035 = vunpack.c.l.b16 %v5025
        %v5036 = vpack.c.b16 %v5035, %v4946
        %v5037 = vrot.slane %v5036, 3
        %v5046 = vunpack.c.l.b16 %v5026
        %v5047 = vunpack.c.l.b16 %v5027
        %v5048 = vunpack.c.l.b16 %v5028
        %v5049 = vunpack.c.l.b16 %v5029
        %v5050 = vunpack.c.l.b16 %v5030
        %v5051 = vunpack.c.l.b16 %v5031
        %v5052 = vunpack.c.l.b16 %v5032
        %v5053 = vunpack.c.l.b16 %v5033
        %v5054 = vpack.c.b16 %v5047, %v5046
        %v5055 = vpack.c.b16 %v5049, %v5048
        %v5056 = vpack.c.b16 %v5051, %v5050
        %v5057 = vpack.c.b16 %v5053, %v5052
        %v5063 = vsel %vm273, %v5037, 0
        %5065 = vmatprep.subr.bf16.mxu0 0
        %5066 = vmatpush1.bf16.msra.mxu0 %v5054
        %5067 = vmatprep.subr.bf16.mxu0 0
        %5068 = vmatpush1.bf16.msra.mxu0 %v5055
        %5069 = vmatprep.subr.bf16.mxu0 0
        %5070 = vmatpush1.bf16.msra.mxu0 %v5056
        %5071 = vmatprep.subr.bf16.mxu0 0
        %5072 = vmatpush1.bf16.msra.mxu0 %v5057
        %5073 = vmatprep.subr.bf16.mxu0 0
        %5074 = vmatpush1.bf16.msra.mxu0 0
        %5075 = vmatprep.subr.bf16.mxu0 0
        %5076 = vmatpush1.bf16.msra.mxu0 0
        %5077 = vmatprep.subr.bf16.mxu0 0
        %5078 = vmatpush1.bf16.msra.mxu0 0
        %5079 = vmatprep.subr.bf16.mxu0 0
        %5080 = vmatpush1.bf16.msra.mxu0 0
        %5081 = vmatprep.subr.bf16.mxu0 0
        %5082 = vmatpush1.bf16.msra.mxu0 0
        %5083 = vmatprep.subr.bf16.mxu0 0
        %5084 = vmatpush1.bf16.msra.mxu0 0
        %5085 = vmatprep.subr.bf16.mxu0 0
        %5086 = vmatpush1.bf16.msra.mxu0 0
        %5087 = vmatprep.subr.bf16.mxu0 0
        %5088 = vmatpush1.bf16.msra.mxu0 0
        %5089 = vmatprep.subr.bf16.mxu0 0
        %5090 = vmatpush1.bf16.msra.mxu0 0
        %5091 = vmatprep.subr.bf16.mxu0 0
        %5092 = vmatpush1.bf16.msra.mxu0 0
        %5093 = vmatprep.subr.bf16.mxu0 0
        %5094 = vmatpush1.bf16.msra.mxu0 0
        %5095 = vmatprep.subr.bf16.mxu0 0
        %5096 = vmatpush1.bf16.msra.mxu0 0
        %5097 = vmatprep.mubr.bf16.mxu0 0
        %5098 = vmatmul.mubr.bf16.gmra.mrb[0].mxu0 %v5063
        %v5099 = vpop.f32.mrb[0].mxu0
        %v5100 = vadd.f32 0.0, %v5099
        %v5101 = vpop.f32.mrb[0].mxu0
        %v5102 = vpop.f32.mrb[0].mxu0
        %v5103 = vpop.f32.mrb[0].mxu0
        %5104 = vdwg.mxu0
        %v5105 = vadd.f32 %v5024, %v5100
        %v5106 = vld [vmem:[%s222] sm:$0xc]
        %v5107 = vld [vmem:[%s1 + $0x740] sm:$0xf]
        %v5108 = vld [vmem:[%s1 + $0x744] sm:$0xf]
        %v5109 = vld [vmem:[%s1 + $0x748] sm:$0xf]
        %v5110 = vld [vmem:[%s1 + $0x74c] sm:$0xf]
        %v5111 = vld [vmem:[%s1 + $0x750] sm:$0xf]
        %v5112 = vld [vmem:[%s1 + $0x754] sm:$0xf]
        %v5113 = vld [vmem:[%s1 + $0x758] sm:$0xf]
        %v5114 = vld [vmem:[%s1 + $0x75c] sm:$0xf]
        %v5116 = vunpack.c.l.b16 %v5106
        %v5117 = vpack.c.b16 %v5035, %v5116
        %v5119 = vshrl.u32 %v5117, 16
        %v5121 = vrot.slane %v5119, 2
        %v5122 = vshll.u32 %v5117, 16
        %v5124 = vrot.slane %v5122, 3
        %v5125 = vor.u32 %v5121, %v5124
        %v5134 = vunpack.c.l.b16 %v5107
        %v5135 = vunpack.c.l.b16 %v5108
        %v5136 = vunpack.c.l.b16 %v5109
        %v5137 = vunpack.c.l.b16 %v5110
        %v5138 = vunpack.c.l.b16 %v5111
        %v5139 = vunpack.c.l.b16 %v5112
        %v5140 = vunpack.c.l.b16 %v5113
        %v5141 = vunpack.c.l.b16 %v5114
        %v5142 = vpack.c.b16 %v5135, %v5134
        %v5143 = vpack.c.b16 %v5137, %v5136
        %v5144 = vpack.c.b16 %v5139, %v5138
        %v5145 = vpack.c.b16 %v5141, %v5140
        %v5151 = vsel %vm273, %v5125, 0
        %5153 = vmatprep.subr.bf16.mxu0 0
        %5154 = vmatpush1.bf16.msra.mxu0 %v5142
        %5155 = vmatprep.subr.bf16.mxu0 0
        %5156 = vmatpush1.bf16.msra.mxu0 %v5143
        %5157 = vmatprep.subr.bf16.mxu0 0
        %5158 = vmatpush1.bf16.msra.mxu0 %v5144
        %5159 = vmatprep.subr.bf16.mxu0 0
        %5160 = vmatpush1.bf16.msra.mxu0 %v5145
        %5161 = vmatprep.subr.bf16.mxu0 0
        %5162 = vmatpush1.bf16.msra.mxu0 0
        %5163 = vmatprep.subr.bf16.mxu0 0
        %5164 = vmatpush1.bf16.msra.mxu0 0
        %5165 = vmatprep.subr.bf16.mxu0 0
        %5166 = vmatpush1.bf16.msra.mxu0 0
        %5167 = vmatprep.subr.bf16.mxu0 0
        %5168 = vmatpush1.bf16.msra.mxu0 0
        %5169 = vmatprep.subr.bf16.mxu0 0
        %5170 = vmatpush1.bf16.msra.mxu0 0
        %5171 = vmatprep.subr.bf16.mxu0 0
        %5172 = vmatpush1.bf16.msra.mxu0 0
        %5173 = vmatprep.subr.bf16.mxu0 0
        %5174 = vmatpush1.bf16.msra.mxu0 0
        %5175 = vmatprep.subr.bf16.mxu0 0
        %5176 = vmatpush1.bf16.msra.mxu0 0
        %5177 = vmatprep.subr.bf16.mxu0 0
        %5178 = vmatpush1.bf16.msra.mxu0 0
        %5179 = vmatprep.subr.bf16.mxu0 0
        %5180 = vmatpush1.bf16.msra.mxu0 0
        %5181 = vmatprep.subr.bf16.mxu0 0
        %5182 = vmatpush1.bf16.msra.mxu0 0
        %5183 = vmatprep.subr.bf16.mxu0 0
        %5184 = vmatpush1.bf16.msra.mxu0 0
        %5185 = vmatprep.mubr.bf16.mxu0 0
        %5186 = vmatmul.mubr.bf16.gmra.mrb[0].mxu0 %v5151
        %v5187 = vpop.f32.mrb[0].mxu0
        %v5188 = vadd.f32 0.0, %v5187
        %v5189 = vpop.f32.mrb[0].mxu0
        %v5190 = vpop.f32.mrb[0].mxu0
        %v5191 = vpop.f32.mrb[0].mxu0
        %5192 = vdwg.mxu0
        %v5193 = vadd.f32 %v5105, %v5188
        %v5194 = vld [vmem:[%s222 + $0x4] sm:$0x3]
        %v5195 = vld [vmem:[%s1 + $0x760] sm:$0xf]
        %v5196 = vld [vmem:[%s1 + $0x764] sm:$0xf]
        %v5197 = vld [vmem:[%s1 + $0x768] sm:$0xf]
        %v5198 = vld [vmem:[%s1 + $0x76c] sm:$0xf]
        %v5199 = vld [vmem:[%s1 + $0x770] sm:$0xf]
        %v5200 = vld [vmem:[%s1 + $0x774] sm:$0xf]
        %v5201 = vld [vmem:[%s1 + $0x778] sm:$0xf]
        %v5202 = vld [vmem:[%s1 + $0x77c] sm:$0xf]
        %v5204 = vunpack.c.l.b16 %v5194
        %v5205 = vpack.c.b16 %v5204, %v5116
        %v5206 = vrot.slane %v5205, 2
        %v5215 = vunpack.c.l.b16 %v5195
        %v5216 = vunpack.c.l.b16 %v5196
        %v5217 = vunpack.c.l.b16 %v5197
        %v5218 = vunpack.c.l.b16 %v5198
        %v5219 = vunpack.c.l.b16 %v5199
        %v5220 = vunpack.c.l.b16 %v5200
        %v5221 = vunpack.c.l.b16 %v5201
        %v5222 = vunpack.c.l.b16 %v5202
        %v5223 = vpack.c.b16 %v5216, %v5215
        %v5224 = vpack.c.b16 %v5218, %v5217
        %v5225 = vpack.c.b16 %v5220, %v5219
        %v5226 = vpack.c.b16 %v5222, %v5221
        %v5232 = vsel %vm273, %v5206, 0
        %5234 = vmatprep.subr.bf16.mxu0 0
        %5235 = vmatpush1.bf16.msra.mxu0 %v5223
        %5236 = vmatprep.subr.bf16.mxu0 0
        %5237 = vmatpush1.bf16.msra.mxu0 %v5224
        %5238 = vmatprep.subr.bf16.mxu0 0
        %5239 = vmatpush1.bf16.msra.mxu0 %v5225
        %5240 = vmatprep.subr.bf16.mxu0 0
        %5241 = vmatpush1.bf16.msra.mxu0 %v5226
        %5242 = vmatprep.subr.bf16.mxu0 0
        %5243 = vmatpush1.bf16.msra.mxu0 0
        %5244 = vmatprep.subr.bf16.mxu0 0
        %5245 = vmatpush1.bf16.msra.mxu0 0
        %5246 = vmatprep.subr.bf16.mxu0 0
        %5247 = vmatpush1.bf16.msra.mxu0 0
        %5248 = vmatprep.subr.bf16.mxu0 0
        %5249 = vmatpush1.bf16.msra.mxu0 0
        %5250 = vmatprep.subr.bf16.mxu0 0
        %5251 = vmatpush1.bf16.msra.mxu0 0
        %5252 = vmatprep.subr.bf16.mxu0 0
        %5253 = vmatpush1.bf16.msra.mxu0 0
        %5254 = vmatprep.subr.bf16.mxu0 0
        %5255 = vmatpush1.bf16.msra.mxu0 0
        %5256 = vmatprep.subr.bf16.mxu0 0
        %5257 = vmatpush1.bf16.msra.mxu0 0
        %5258 = vmatprep.subr.bf16.mxu0 0
        %5259 = vmatpush1.bf16.msra.mxu0 0
        %5260 = vmatprep.subr.bf16.mxu0 0
        %5261 = vmatpush1.bf16.msra.mxu0 0
        %5262 = vmatprep.subr.bf16.mxu0 0
        %5263 = vmatpush1.bf16.msra.mxu0 0
        %5264 = vmatprep.subr.bf16.mxu0 0
        %5265 = vmatpush1.bf16.msra.mxu0 0
        %5266 = vmatprep.mubr.bf16.mxu0 0
        %5267 = vmatmul.mubr.bf16.gmra.mrb[0].mxu0 %v5232
        %v5268 = vpop.f32.mrb[0].mxu0
        %v5269 = vadd.f32 0.0, %v5268
        %v5270 = vpop.f32.mrb[0].mxu0
        %v5271 = vpop.f32.mrb[0].mxu0
        %v5272 = vpop.f32.mrb[0].mxu0
        %5273 = vdwg.mxu0
        %v5274 = vadd.f32 %v5193, %v5269
        %v5275 = vld [vmem:[%s222] sm:$0xe]
        %v5276 = vld [vmem:[%s1 + $0x780] sm:$0xf]
        %v5277 = vld [vmem:[%s1 + $0x784] sm:$0xf]
        %v5278 = vld [vmem:[%s1 + $0x788] sm:$0xf]
        %v5279 = vld [vmem:[%s1 + $0x78c] sm:$0xf]
        %v5280 = vld [vmem:[%s1 + $0x790] sm:$0xf]
        %v5281 = vld [vmem:[%s1 + $0x794] sm:$0xf]
        %v5282 = vld [vmem:[%s1 + $0x798] sm:$0xf]
        %v5283 = vld [vmem:[%s1 + $0x79c] sm:$0xf]
        %v5285 = vunpack.c.l.b16 %v5275
        %v5286 = vpack.c.b16 %v5204, %v5285
        %v5288 = vshrl.u32 %v5286, 16
        %v5290 = vrot.slane %v5288, 1
        %v5291 = vshll.u32 %v5286, 16
        %v5293 = vrot.slane %v5291, 2
        %v5294 = vor.u32 %v5290, %v5293
        %v5303 = vunpack.c.l.b16 %v5276
        %v5304 = vunpack.c.l.b16 %v5277
        %v5305 = vunpack.c.l.b16 %v5278
        %v5306 = vunpack.c.l.b16 %v5279
        %v5307 = vunpack.c.l.b16 %v5280
        %v5308 = vunpack.c.l.b16 %v5281
        %v5309 = vunpack.c.l.b16 %v5282
        %v5310 = vunpack.c.l.b16 %v5283
        %v5311 = vpack.c.b16 %v5304, %v5303
        %v5312 = vpack.c.b16 %v5306, %v5305
        %v5313 = vpack.c.b16 %v5308, %v5307
        %v5314 = vpack.c.b16 %v5310, %v5309
        %v5320 = vsel %vm273, %v5294, 0
        %5322 = vmatprep.subr.bf16.mxu0 0
        %5323 = vmatpush1.bf16.msra.mxu0 %v5311
        %5324 = vmatprep.subr.bf16.mxu0 0
        %5325 = vmatpush1.bf16.msra.mxu0 %v5312
        %5326 = vmatprep.subr.bf16.mxu0 0
        %5327 = vmatpush1.bf16.msra.mxu0 %v5313
        %5328 = vmatprep.subr.bf16.mxu0 0
        %5329 = vmatpush1.bf16.msra.mxu0 %v5314
        %5330 = vmatprep.subr.bf16.mxu0 0
        %5331 = vmatpush1.bf16.msra.mxu0 0
        %5332 = vmatprep.subr.bf16.mxu0 0
        %5333 = vmatpush1.bf16.msra.mxu0 0
        %5334 = vmatprep.subr.bf16.mxu0 0
        %5335 = vmatpush1.bf16.msra.mxu0 0
        %5336 = vmatprep.subr.bf16.mxu0 0
        %5337 = vmatpush1.bf16.msra.mxu0 0
        %5338 = vmatprep.subr.bf16.mxu0 0
        %5339 = vmatpush1.bf16.msra.mxu0 0
        %5340 = vmatprep.subr.bf16.mxu0 0
        %5341 = vmatpush1.bf16.msra.mxu0 0
        %5342 = vmatprep.subr.bf16.mxu0 0
        %5343 = vmatpush1.bf16.msra.mxu0 0
        %5344 = vmatprep.subr.bf16.mxu0 0
        %5345 = vmatpush1.bf16.msra.mxu0 0
        %5346 = vmatprep.subr.bf16.mxu0 0
        %5347 = vmatpush1.bf16.msra.mxu0 0
        %5348 = vmatprep.subr.bf16.mxu0 0
        %5349 = vmatpush1.bf16.msra.mxu0 0
        %5350 = vmatprep.subr.bf16.mxu0 0
        %5351 = vmatpush1.bf16.msra.mxu0 0
        %5352 = vmatprep.subr.bf16.mxu0 0
        %5353 = vmatpush1.bf16.msra.mxu0 0
        %5354 = vmatprep.mubr.bf16.mxu0 0
        %5355 = vmatmul.mubr.bf16.gmra.mrb[0].mxu0 %v5320
        %v5356 = vpop.f32.mrb[0].mxu0
        %v5357 = vadd.f32 0.0, %v5356
        %v5358 = vpop.f32.mrb[0].mxu0
        %v5359 = vpop.f32.mrb[0].mxu0
        %v5360 = vpop.f32.mrb[0].mxu0
        %5361 = vdwg.mxu0
        %v5362 = vadd.f32 %v5274, %v5357
        %v5363 = vld [vmem:[%s222 + $0x4] sm:$0x1]
        %v5364 = vld [vmem:[%s1 + $0x7a0] sm:$0xf]
        %v5365 = vld [vmem:[%s1 + $0x7a4] sm:$0xf]
        %v5366 = vld [vmem:[%s1 + $0x7a8] sm:$0xf]
        %v5367 = vld [vmem:[%s1 + $0x7ac] sm:$0xf]
        %v5368 = vld [vmem:[%s1 + $0x7b0] sm:$0xf]
        %v5369 = vld [vmem:[%s1 + $0x7b4] sm:$0xf]
        %v5370 = vld [vmem:[%s1 + $0x7b8] sm:$0xf]
        %v5371 = vld [vmem:[%s1 + $0x7bc] sm:$0xf]
        %v5373 = vunpack.c.l.b16 %v5363
        %v5374 = vpack.c.b16 %v5373, %v5285
        %v5375 = vrot.slane %v5374, 1
        %v5384 = vunpack.c.l.b16 %v5364
        %v5385 = vunpack.c.l.b16 %v5365
        %v5386 = vunpack.c.l.b16 %v5366
        %v5387 = vunpack.c.l.b16 %v5367
        %v5388 = vunpack.c.l.b16 %v5368
        %v5389 = vunpack.c.l.b16 %v5369
        %v5390 = vunpack.c.l.b16 %v5370
        %v5391 = vunpack.c.l.b16 %v5371
        %v5392 = vpack.c.b16 %v5385, %v5384
        %v5393 = vpack.c.b16 %v5387, %v5386
        %v5394 = vpack.c.b16 %v5389, %v5388
        %v5395 = vpack.c.b16 %v5391, %v5390
        %v5401 = vsel %vm273, %v5375, 0
        %5403 = vmatprep.subr.bf16.mxu0 0
        %5404 = vmatpush1.bf16.msra.mxu0 %v5392
        %5405 = vmatprep.subr.bf16.mxu0 0
        %5406 = vmatpush1.bf16.msra.mxu0 %v5393
        %5407 = vmatprep.subr.bf16.mxu0 0
        %5408 = vmatpush1.bf16.msra.mxu0 %v5394
        %5409 = vmatprep.subr.bf16.mxu0 0
        %5410 = vmatpush1.bf16.msra.mxu0 %v5395
        %5411 = vmatprep.subr.bf16.mxu0 0
        %5412 = vmatpush1.bf16.msra.mxu0 0
        %5413 = vmatprep.subr.bf16.mxu0 0
        %5414 = vmatpush1.bf16.msra.mxu0 0
        %5415 = vmatprep.subr.bf16.mxu0 0
        %5416 = vmatpush1.bf16.msra.mxu0 0
        %5417 = vmatprep.subr.bf16.mxu0 0
        %5418 = vmatpush1.bf16.msra.mxu0 0
        %5419 = vmatprep.subr.bf16.mxu0 0
        %5420 = vmatpush1.bf16.msra.mxu0 0
        %5421 = vmatprep.subr.bf16.mxu0 0
        %5422 = vmatpush1.bf16.msra.mxu0 0
        %5423 = vmatprep.subr.bf16.mxu0 0
        %5424 = vmatpush1.bf16.msra.mxu0 0
        %5425 = vmatprep.subr.bf16.mxu0 0
        %5426 = vmatpush1.bf16.msra.mxu0 0
        %5427 = vmatprep.subr.bf16.mxu0 0
        %5428 = vmatpush1.bf16.msra.mxu0 0
        %5429 = vmatprep.subr.bf16.mxu0 0
        %5430 = vmatpush1.bf16.msra.mxu0 0
        %5431 = vmatprep.subr.bf16.mxu0 0
        %5432 = vmatpush1.bf16.msra.mxu0 0
        %5433 = vmatprep.subr.bf16.mxu0 0
        %5434 = vmatpush1.bf16.msra.mxu0 0
        %5435 = vmatprep.mubr.bf16.mxu0 0
        %5436 = vmatmul.mubr.bf16.gmra.mrb[0].mxu0 %v5401
        %v5437 = vpop.f32.mrb[0].mxu0
        %v5438 = vadd.f32 0.0, %v5437
        %v5439 = vpop.f32.mrb[0].mxu0
        %v5440 = vpop.f32.mrb[0].mxu0
        %v5441 = vpop.f32.mrb[0].mxu0
        %5442 = vdwg.mxu0
        %v5443 = vadd.f32 %v5362, %v5438
        %v5444 = vld [vmem:[%s222] sm:$0xf]
        %v5445 = vld [vmem:[%s1 + $0x7c0] sm:$0xf]
        %v5446 = vld [vmem:[%s1 + $0x7c4] sm:$0xf]
        %v5447 = vld [vmem:[%s1 + $0x7c8] sm:$0xf]
        %v5448 = vld [vmem:[%s1 + $0x7cc] sm:$0xf]
        %v5449 = vld [vmem:[%s1 + $0x7d0] sm:$0xf]
        %v5450 = vld [vmem:[%s1 + $0x7d4] sm:$0xf]
        %v5451 = vld [vmem:[%s1 + $0x7d8] sm:$0xf]
        %v5452 = vld [vmem:[%s1 + $0x7dc] sm:$0xf]
        %v5454 = vunpack.c.l.b16 %v5444
        %v5455 = vpack.c.b16 %v5373, %v5454
        %v5457 = vshrl.u32 %v5455, 16
        %v5459 = vshll.u32 %v5455, 16
        %v5461 = vrot.slane %v5459, 1
        %v5462 = vor.u32 %v5457, %v5461
        %v5471 = vunpack.c.l.b16 %v5445
        %v5472 = vunpack.c.l.b16 %v5446
        %v5473 = vunpack.c.l.b16 %v5447
        %v5474 = vunpack.c.l.b16 %v5448
        %v5475 = vunpack.c.l.b16 %v5449
        %v5476 = vunpack.c.l.b16 %v5450
        %v5477 = vunpack.c.l.b16 %v5451
        %v5478 = vunpack.c.l.b16 %v5452
        %v5479 = vpack.c.b16 %v5472, %v5471
        %v5480 = vpack.c.b16 %v5474, %v5473
        %v5481 = vpack.c.b16 %v5476, %v5475
        %v5482 = vpack.c.b16 %v5478, %v5477
        %v5488 = vsel %vm273, %v5462, 0
        %5490 = vmatprep.subr.bf16.mxu0 0
        %5491 = vmatpush1.bf16.msra.mxu0 %v5479
        %5492 = vmatprep.subr.bf16.mxu0 0
        %5493 = vmatpush1.bf16.msra.mxu0 %v5480
        %5494 = vmatprep.subr.bf16.mxu0 0
        %5495 = vmatpush1.bf16.msra.mxu0 %v5481
        %5496 = vmatprep.subr.bf16.mxu0 0
        %5497 = vmatpush1.bf16.msra.mxu0 %v5482
        %5498 = vmatprep.subr.bf16.mxu0 0
        %5499 = vmatpush1.bf16.msra.mxu0 0
        %5500 = vmatprep.subr.bf16.mxu0 0
        %5501 = vmatpush1.bf16.msra.mxu0 0
        %5502 = vmatprep.subr.bf16.mxu0 0
        %5503 = vmatpush1.bf16.msra.mxu0 0
        %5504 = vmatprep.subr.bf16.mxu0 0
        %5505 = vmatpush1.bf16.msra.mxu0 0
        %5506 = vmatprep.subr.bf16.mxu0 0
        %5507 = vmatpush1.bf16.msra.mxu0 0
        %5508 = vmatprep.subr.bf16.mxu0 0
        %5509 = vmatpush1.bf16.msra.mxu0 0
        %5510 = vmatprep.subr.bf16.mxu0 0
        %5511 = vmatpush1.bf16.msra.mxu0 0
        %5512 = vmatprep.subr.bf16.mxu0 0
        %5513 = vmatpush1.bf16.msra.mxu0 0
        %5514 = vmatprep.subr.bf16.mxu0 0
        %5515 = vmatpush1.bf16.msra.mxu0 0
        %5516 = vmatprep.subr.bf16.mxu0 0
        %5517 = vmatpush1.bf16.msra.mxu0 0
        %5518 = vmatprep.subr.bf16.mxu0 0
        %5519 = vmatpush1.bf16.msra.mxu0 0
        %5520 = vmatprep.subr.bf16.mxu0 0
        %5521 = vmatpush1.bf16.msra.mxu0 0
        %5522 = vmatprep.mubr.bf16.mxu0 0
        %5523 = vmatmul.mubr.bf16.gmra.mrb[0].mxu0 %v5488
        %v5524 = vpop.f32.mrb[0].mxu0
        %v5525 = vadd.f32 0.0, %v5524
        %v5526 = vpop.f32.mrb[0].mxu0
        %v5527 = vpop.f32.mrb[0].mxu0
        %v5528 = vpop.f32.mrb[0].mxu0
        %5529 = vdwg.mxu0
        %v5530 = vadd.f32 %v5443, %v5525
        %v5531 = vld [vmem:[%s222] sm:$0xf]
        %v5532 = vld [vmem:[%s1 + $0x7e0] sm:$0xf]
        %v5533 = vld [vmem:[%s1 + $0x7e4] sm:$0xf]
        %v5534 = vld [vmem:[%s1 + $0x7e8] sm:$0xf]
        %v5535 = vld [vmem:[%s1 + $0x7ec] sm:$0xf]
        %v5536 = vld [vmem:[%s1 + $0x7f0] sm:$0xf]
        %v5537 = vld [vmem:[%s1 + $0x7f4] sm:$0xf]
        %v5538 = vld [vmem:[%s1 + $0x7f8] sm:$0xf]
        %v5539 = vld [vmem:[%s1 + $0x7fc] sm:$0xf]
        %v5548 = vunpack.c.l.b16 %v5532
        %v5549 = vunpack.c.l.b16 %v5533
        %v5550 = vunpack.c.l.b16 %v5534
        %v5551 = vunpack.c.l.b16 %v5535
        %v5552 = vunpack.c.l.b16 %v5536
        %v5553 = vunpack.c.l.b16 %v5537
        %v5554 = vunpack.c.l.b16 %v5538
        %v5555 = vunpack.c.l.b16 %v5539
        %v5556 = vpack.c.b16 %v5549, %v5548
        %v5557 = vpack.c.b16 %v5551, %v5550
        %v5558 = vpack.c.b16 %v5553, %v5552
        %v5559 = vpack.c.b16 %v5555, %v5554
        %v5565 = vsel %vm273, %v5531, 0
        %5567 = vmatprep.subr.bf16.mxu0 0
        %5568 = vmatpush1.bf16.msra.mxu0 %v5556
        %5569 = vmatprep.subr.bf16.mxu0 0
        %5570 = vmatpush1.bf16.msra.mxu0 %v5557
        %5571 = vmatprep.subr.bf16.mxu0 0
        %5572 = vmatpush1.bf16.msra.mxu0 %v5558
        %5573 = vmatprep.subr.bf16.mxu0 0
        %5574 = vmatpush1.bf16.msra.mxu0 %v5559
        %5575 = vmatprep.subr.bf16.mxu0 0
        %5576 = vmatpush1.bf16.msra.mxu0 0
        %5577 = vmatprep.subr.bf16.mxu0 0
        %5578 = vmatpush1.bf16.msra.mxu0 0
        %5579 = vmatprep.subr.bf16.mxu0 0
        %5580 = vmatpush1.bf16.msra.mxu0 0
        %5581 = vmatprep.subr.bf16.mxu0 0
        %5582 = vmatpush1.bf16.msra.mxu0 0
        %5583 = vmatprep.subr.bf16.mxu0 0
        %5584 = vmatpush1.bf16.msra.mxu0 0
        %5585 = vmatprep.subr.bf16.mxu0 0
        %5586 = vmatpush1.bf16.msra.mxu0 0
        %5587 = vmatprep.subr.bf16.mxu0 0
        %5588 = vmatpush1.bf16.msra.mxu0 0
        %5589 = vmatprep.subr.bf16.mxu0 0
        %5590 = vmatpush1.bf16.msra.mxu0 0
        %5591 = vmatprep.subr.bf16.mxu0 0
        %5592 = vmatpush1.bf16.msra.mxu0 0
        %5593 = vmatprep.subr.bf16.mxu0 0
        %5594 = vmatpush1.bf16.msra.mxu0 0
        %5595 = vmatprep.subr.bf16.mxu0 0
        %5596 = vmatpush1.bf16.msra.mxu0 0
        %5597 = vmatprep.subr.bf16.mxu0 0
        %5598 = vmatpush1.bf16.msra.mxu0 0
        %5599 = vmatprep.mubr.bf16.mxu0 0
        %5600 = vmatmul.mubr.bf16.gmra.mrb[0].mxu0 %v5565
        %v5601 = vpop.f32.mrb[0].mxu0
        %v5602 = vadd.f32 0.0, %v5601
        %v5603 = vpop.f32.mrb[0].mxu0
        %v5604 = vpop.f32.mrb[0].mxu0
        %v5605 = vpop.f32.mrb[0].mxu0
        %5606 = vdwg.mxu0
        %v5607 = vadd.f32 %v5530, %v5602
        %v5608 = vld [vmem:[%s2] sm:$0x1]
        %v5610 = vlaneseq
        %v5611 = vshrl.u32 %v5610, 7
        %v5612 = vsub.s32 0, %v5611
        %v5613 = vrot.slane %v5608, %v5612
        %v5615 = vadd.f32 %v5607, %v5613
        %v5616 = vtanh.pop %v5615
        %v5617 = vpack.c.bf16 %v5616, %v5616
        %v5618 = vld [vmem:[%s3] sm:$0xf]
        %v5619 = vld [vmem:[%s3 + $0x4] sm:$0xf]
        %v5620 = vld [vmem:[%s3 + $0x8] sm:$0xf]
        %v5621 = vld [vmem:[%s3 + $0xc] sm:$0xf]
        %v5622 = vld [vmem:[%s3 + $0x10] sm:$0xf]
        %v5623 = vld [vmem:[%s3 + $0x14] sm:$0xf]
        %v5624 = vld [vmem:[%s3 + $0x18] sm:$0xf]
        %v5625 = vld [vmem:[%s3 + $0x1c] sm:$0xf]
        %v5626 = vld [vmem:[%s3 + $0x20] sm:$0xf]
        %v5627 = vld [vmem:[%s3 + $0x24] sm:$0xf]
        %v5628 = vld [vmem:[%s3 + $0x28] sm:$0xf]
        %v5629 = vld [vmem:[%s3 + $0x2c] sm:$0xf]
        %v5630 = vld [vmem:[%s3 + $0x30] sm:$0xf]
        %v5631 = vld [vmem:[%s3 + $0x34] sm:$0xf]
        %v5632 = vld [vmem:[%s3 + $0x38] sm:$0xf]
        %v5633 = vld [vmem:[%s3 + $0x3c] sm:$0xf]
        %v5634 = vld [vmem:[%s4] sm:$0x1]
        %v5636 = vlaneseq
        %v5637 = vshrl.u32 %v5636, 7
        %v5638 = vsub.s32 0, %v5637
        %v5639 = vrot.slane %v5634, %v5638
        %v5657 = vunpack.c.l.b16 %v5618
        %v5658 = vunpack.c.l.b16 %v5619
        %v5659 = vunpack.c.l.b16 %v5620
        %v5660 = vunpack.c.l.b16 %v5621
        %v5661 = vunpack.c.l.b16 %v5622
        %v5662 = vunpack.c.l.b16 %v5623
        %v5663 = vunpack.c.l.b16 %v5624
        %v5664 = vunpack.c.l.b16 %v5625
        %v5665 = vunpack.c.l.b16 %v5626
        %v5666 = vunpack.c.l.b16 %v5627
        %v5667 = vunpack.c.l.b16 %v5628
        %v5668 = vunpack.c.l.b16 %v5629
        %v5669 = vunpack.c.l.b16 %v5630
        %v5670 = vunpack.c.l.b16 %v5631
        %v5671 = vunpack.c.l.b16 %v5632
        %v5672 = vunpack.c.l.b16 %v5633
        %v5673 = vpack.c.b16 %v5658, %v5657
        %v5674 = vpack.c.b16 %v5660, %v5659
        %v5675 = vpack.c.b16 %v5662, %v5661
        %v5676 = vpack.c.b16 %v5664, %v5663
        %v5677 = vpack.c.b16 %v5666, %v5665
        %v5678 = vpack.c.b16 %v5668, %v5667
        %v5679 = vpack.c.b16 %v5670, %v5669
        %v5680 = vpack.c.b16 %v5672, %v5671
        %5689 = vmatprep.subr.bf16.mxu0 0
        %5690 = vmatpush1.bf16.msra.mxu0 %v5673
        %5691 = vmatprep.subr.bf16.mxu0 0
        %5692 = vmatpush1.bf16.msra.mxu0 %v5674
        %5693 = vmatprep.subr.bf16.mxu0 0
        %5694 = vmatpush1.bf16.msra.mxu0 %v5675
        %5695 = vmatprep.subr.bf16.mxu0 0
        %5696 = vmatpush1.bf16.msra.mxu0 %v5676
        %5697 = vmatprep.subr.bf16.mxu0 0
        %5698 = vmatpush1.bf16.msra.mxu0 %v5677
        %5699 = vmatprep.subr.bf16.mxu0 0
        %5700 = vmatpush1.bf16.msra.mxu0 %v5678
        %5701 = vmatprep.subr.bf16.mxu0 0
        %5702 = vmatpush1.bf16.msra.mxu0 %v5679
        %5703 = vmatprep.subr.bf16.mxu0 0
        %5704 = vmatpush1.bf16.msra.mxu0 %v5680
        %5705 = vmatprep.subr.bf16.mxu0 0
        %5706 = vmatpush1.bf16.msra.mxu0 0
        %5707 = vmatprep.subr.bf16.mxu0 0
        %5708 = vmatpush1.bf16.msra.mxu0 0
        %5709 = vmatprep.subr.bf16.mxu0 0
        %5710 = vmatpush1.bf16.msra.mxu0 0
        %5711 = vmatprep.subr.bf16.mxu0 0
        %5712 = vmatpush1.bf16.msra.mxu0 0
        %5713 = vmatprep.subr.bf16.mxu0 0
        %5714 = vmatpush1.bf16.msra.mxu0 0
        %5715 = vmatprep.subr.bf16.mxu0 0
        %5716 = vmatpush1.bf16.msra.mxu0 0
        %5717 = vmatprep.subr.bf16.mxu0 0
        %5718 = vmatpush1.bf16.msra.mxu0 0
        %5719 = vmatprep.subr.bf16.mxu0 0
        %5720 = vmatpush1.bf16.msra.mxu0 0
        %5721 = vmatprep.mubr.bf16.mxu0 0
        %5722 = vmatmul.mubr.bf16.gmra.mrb[0].mxu0 %v5617
        %v5723 = vpop.f32.mrb[0].mxu0
        %v5724 = vadd.f32 %v5639, %v5723
        %v5725 = vpop.f32.mrb[0].mxu0
        %v5726 = vpop.f32.mrb[0].mxu0
        %v5727 = vpop.f32.mrb[0].mxu0
        %5728 = vdwg.mxu0
        %5729 = vst [vmem:[%s217] sm:$0xff] %v5724
        %s5730 = sand.u32 %s137, 1
        %s5731 = scalar_lea.sflag [#allocation3], %s5730
        %s5732 = sand.u32 %s137, 1
        %s5733 = smul.addr %s5732, 8
        %s5734 = scalar_lea.vmem [#allocation2], %s5733
        // Predicated region
        $region41: #{mlp_lm_forward.1} parent=39 // pred_check
          %p5735 = pneg %p147
        $region42: #{mlp_lm_forward.1} parent=39 // pred_check_branch
          %5737 = sbr.rel (%p5735) target = $region44
        $region43: #{mlp_lm_forward.1} parent=39 // pred_region
          %s5739 = ssub.s32 128, 128
          %5740 = vsyncadd %s5731, %s5739
          %s5741 = smul.addr %s19, 128
          %s5742 = scalar_lea.hbm %s5, %s5741
          %s5744 = sshll.u32 %s5734, 4
          %s5745 = int_to_ptr.vmem [resolvable:$true] %s5744
          %5747 = dma.vmem_to_hbm [thread:$0]  %s5745, 128, %s5742, %s5731
        $region44: #{mlp_lm_forward.1} parent=39 // pred_fallthru
          _
      $region40: #{mlp_lm_forward.1} parent=5 // pred_fallthru
        _
      %p5748 = scmp.le.s32.totalorder 2, %s14
      // Predicated region
      $region45: #{mlp_lm_forward.1} parent=5 // pred_check
        %p5749 = pneg %p5748
      $region46: #{mlp_lm_forward.1} parent=5 // pred_check_branch
        %5751 = sbr.rel (%p5749) target = $region48
      $region47: #{mlp_lm_forward.1} parent=5 // pred_region
        %s5752 = ssub.s32 %s14, 2
        // Predicated region
        $region49: #{mlp_lm_forward.1} parent=47 // pred_check
          %p5753 = pneg %p153
        $region50: #{mlp_lm_forward.1} parent=47 // pred_check_branch
          %5755 = sbr.rel (%p5753) target = $region52
        $region51: #{mlp_lm_forward.1} parent=47 // pred_region
          %s5756 = sand.u32 %s138, 1
          %s5757 = scalar_lea.sflag [#allocation3], %s5756
          %s5758 = sand.u32 %s138, 1
          %s5759 = smul.addr %s5758, 8
          %s5760 = scalar_lea.vmem [#allocation2], %s5759
          %5761 = dma.done %s5757, 128
        $region52: #{mlp_lm_forward.1} parent=47 // pred_fallthru
          _
      $region48: #{mlp_lm_forward.1} parent=5 // pred_fallthru
        _
    $region6: #{mlp_lm_forward.1} parent=1 // loop_footer
      %s18 = sadd.s32 1, %s14
    $region7: #{mlp_lm_forward.1} parent=1 // loop_footer_branch
      %13 = sbr.rel target = $region3
    $region8: #{mlp_lm_forward.1} parent=1 // loop_exit
      _
    %5762 = vsyncpa [#allocation3], 1
    %s5763 = scalar_lea.sflag [#allocation3], 1
    %5764 = vsyncpa %s5763, 1

</llo_original>
